<compile_context>
chip_gen: v7x
topology: tpu7x:2x2x1
jax: 0.10.0
libtpu: 0.0.40
codegen_flags: <defaults>
</compile_context>

<pallas_src>
import jax
import jax.numpy as jnp
import numpy as np
from jax.experimental import pallas as pl
from jax.experimental.pallas import tpu as pltpu

MAX_STROKES = 15


# ----------------------------- glue helpers -----------------------------

def im2col_nchw(x, k, stride):
    """x: (B, C, H, W) -> (B, OH*OW, C*k*k), patch flattened as (C, kh, kw)."""
    B, C, H, W = x.shape
    OH = (H - k) // stride + 1
    OW = (W - k) // stride + 1
    cols = []
    for kh in range(k):
        for kw in range(k):
            cols.append(x[:, :, kh:kh + stride * OH:stride,
                             kw:kw + stride * OW:stride])
    p = jnp.stack(cols, axis=2)            # (B, C, k*k, OH, OW)
    p = p.transpose(0, 3, 4, 1, 2)         # (B, OH, OW, C, k*k)
    return p.reshape(B, OH * OW, C * k * k)


def conv2_tap_selectors(OH1, OW1, k=3, stride=2):
    """Constant 0/1 matrices that gather, per (kh,kw) tap, the conv2 input rows
    out of the (OH1*OW1, C) conv1 activation.  sel[t] @ h1 == the (P2, C) slab
    of conv1 outputs feeding tap t at every conv2 output position."""
    OH2 = (OH1 - k) // stride + 1
    OW2 = (OW1 - k) // stride + 1
    P1 = OH1 * OW1
    P2 = OH2 * OW2
    sel = np.zeros((k * k, P2, P1), np.float32)
    for kh in range(k):
        for kw in range(k):
            t = kh * k + kw
            for oh in range(OH2):
                for ow in range(OW2):
                    r = (stride * oh + kh) * OW1 + (stride * ow + kw)
                    sel[t, oh * OW2 + ow, r] = 1.0
    return sel, P2


# ----------------------------- fused Pallas kernel -----------------------------

def _strokenet_kernel(p1_ref, pts_ref, w1_ref, b1_ref, sel_ref, w2_ref, b2_ref,
                      wlin_ref, blin_ref, wp1_ref, bp1_ref, wp2_ref, bp2_ref,
                      wfp_ref, wfi_ref, bf_ref, wh_ref, bh_ref, out_ref):
    # ---- conv1: Conv2d(3,16,5,stride=2) as im2col matmul + bias + ReLU ----
    h1 = jnp.maximum(
        jnp.dot(p1_ref[0], w1_ref[...], preferred_element_type=jnp.float32)
        + b1_ref[...], 0.0)                                        # (P1, 16)

    # ---- conv2: Conv2d(16,32,3,stride=2) with in-kernel im2col ------------
    # 9 unrolled taps: constant 0/1 selection matmul gathers the rows, then a
    # (P2,16)@(16,32) matmul per tap accumulates into the conv2 output.
    n_taps, P2, _ = sel_ref.shape
    acc = jnp.zeros((P2, 32), jnp.float32)
    for t in range(n_taps):                                        # unrolled (9)
        rows = jnp.dot(sel_ref[t], h1,
                       preferred_element_type=jnp.float32)         # (P2, 16)
        acc = acc + jnp.dot(rows, w2_ref[t],
                            preferred_element_type=jnp.float32)    # (P2, 32)
    h2 = jnp.maximum(acc + b2_ref[...], 0.0)                       # (P2, 32)

    # ---- AdaptiveAvgPool2d((1,1)) + Linear(32,128): pool folded into the
    # ---- Linear (wlin is pre-scaled by 1/P2 in the wrapper) ---------------
    pooled = jnp.sum(h2, axis=0, keepdims=True)                    # (1, 32)
    img_feat = (jnp.dot(pooled, wlin_ref[...],
                        preferred_element_type=jnp.float32)
                + blin_ref[...])                                   # (1, 128)

    # ---- point encoder: Linear(2,64)+ReLU on the VPU, then Linear(64,64) --
    pts = pts_ref[0]                                               # (N, 2)
    wp1 = wp1_ref[...]                                             # (2, 64)
    hp = jnp.maximum(pts[:, 0:1] * wp1[0:1, :]
                     + pts[:, 1:2] * wp1[1:2, :]
                     + bp1_ref[...], 0.0)                          # (N, 64)
    pt_feat = (jnp.dot(hp, wp2_ref[...], preferred_element_type=jnp.float32)
               + bp2_ref[...])                                     # (N, 64)

    # ---- fusion: Linear(192,128)+ReLU, concat folded into two matmuls -----
    img_c = jnp.dot(img_feat, wfi_ref[...],
                    preferred_element_type=jnp.float32)            # (1, 128)
    fused = jnp.maximum(
        jnp.dot(pt_feat, wfp_ref[...], preferred_element_type=jnp.float32)
        + img_c + bf_ref[...], 0.0)                                # (N, 128)

    # ---- merged stroke + order heads: one matmul, one lane-dense store ----
    out_ref[0] = (jnp.dot(fused, wh_ref[...],
                          preferred_element_type=jnp.float32) + bh_ref[...])


# ----------------------------- wrapper -----------------------------

def stroke_net_forward(params, img, points):
    B, C, H, W = img.shape
    N = points.shape[1]
    OH1 = (H - 5) // 2 + 1
    OW1 = (W - 5) // 2 + 1

    # TODO(synk): if image resolution grows, move conv1's im2col in-kernel too
    # (DMA the raw image block and slice in VMEM) to avoid the 25x patch blowup.
    p1 = im2col_nchw(img, 5, 2)                                    # (B, P1, 75)
    P1 = p1.shape[1]

    sel_np, P2 = conv2_tap_selectors(OH1, OW1, k=3, stride=2)
    sel = jnp.asarray(sel_np)                                      # (9, P2, P1)
    # conv2 weight (144, 32), rows ordered (c, kh, kw) -> per-tap (9, 16, 32)
    w2_taps = params["w2"].reshape(16, 9, 32).transpose(1, 0, 2)
    wlin_s = params["wlin"] * (1.0 / P2)        # fold the avg-pool 1/P2 scale
    wh = jnp.concatenate([params["ws"], params["wo"]], axis=1)     # (128, 16)
    bh = jnp.concatenate([params["bs"], params["bo"]], axis=1)     # (1, 16)
    NH = MAX_STROKES + 1

    out = pl.pallas_call(
        _strokenet_kernel,
        out_shape=jax.ShapeDtypeStruct((B, N, NH), jnp.float32),
        grid=(B,),
        in_specs=[
            pl.BlockSpec((1, P1, 75), lambda b: (b, 0, 0)),        # conv1 patches
            pl.BlockSpec((1, N, 2), lambda b: (b, 0, 0)),          # points
            pl.BlockSpec((75, 16), lambda b: (0, 0)),              # w1
            pl.BlockSpec((1, 16), lambda b: (0, 0)),               # b1
            pl.BlockSpec((9, P2, P1), lambda b: (0, 0, 0)),        # conv2 selectors
            pl.BlockSpec((9, 16, 32), lambda b: (0, 0, 0)),        # w2 per tap
            pl.BlockSpec((1, 32), lambda b: (0, 0)),               # b2
            pl.BlockSpec((32, 128), lambda b: (0, 0)),             # wlin (pre-scaled)
            pl.BlockSpec((1, 128), lambda b: (0, 0)),              # blin
            pl.BlockSpec((2, 64), lambda b: (0, 0)),               # wp1
            pl.BlockSpec((1, 64), lambda b: (0, 0)),               # bp1
            pl.BlockSpec((64, 64), lambda b: (0, 0)),              # wp2
            pl.BlockSpec((1, 64), lambda b: (0, 0)),               # bp2
            pl.BlockSpec((64, 128), lambda b: (0, 0)),             # wf_pt
            pl.BlockSpec((128, 128), lambda b: (0, 0)),            # wf_img
            pl.BlockSpec((1, 128), lambda b: (0, 0)),              # bf
            pl.BlockSpec((128, NH), lambda b: (0, 0)),             # merged heads W
            pl.BlockSpec((1, NH), lambda b: (0, 0)),               # merged heads b
        ],
        out_specs=pl.BlockSpec((1, N, NH), lambda b: (b, 0, 0)),
        compiler_params=pltpu.CompilerParams(
            dimension_semantics=("parallel",)),
    )(p1, points, params["w1"], params["b1"], sel, w2_taps, params["b2"],
      wlin_s, params["blin"], params["wp1"], params["bp1"],
      params["wp2"], params["bp2"], params["wf_pt"], params["wf_img"],
      params["bf"], wh, bh)

    stroke_logits = out[..., :MAX_STROKES]
    order_preds = out[..., MAX_STROKES]
    return stroke_logits, order_preds


# ----------------------------- reference (plain JAX) -----------------------------

def reference_forward(params, img, points):
    B, C, H, W = img.shape
    OH1 = (H - 5) // 2 + 1
    OW1 = (W - 5) // 2 + 1
    p1 = im2col_nchw(img, 5, 2)
    h1 = jax.nn.relu(p1 @ params["w1"] + params["b1"])            # (B, P1, 16)
    f1 = h1.reshape(B, OH1, OW1, 16).transpose(0, 3, 1, 2)
    p2 = im2col_nchw(f1, 3, 2)
    h2 = jax.nn.relu(p2 @ params["w2"] + params["b2"])            # (B, P2, 32)
    pooled = h2.mean(axis=1)                                      # (B, 32)
    img_feat = pooled @ params["wlin"] + params["blin"]           # (B, 128)
    hp = jax.nn.relu(points @ params["wp1"] + params["bp1"])
    pt_feat = hp @ params["wp2"] + params["bp2"]                  # (B, N, 64)
    fused = jax.nn.relu(pt_feat @ params["wf_pt"]
                        + (img_feat @ params["wf_img"])[:, None, :]
                        + params["bf"])                           # (B, N, 128)
    stroke = fused @ params["ws"] + params["bs"]
    order = (fused @ params["wo"] + params["bo"])[..., 0]
    return stroke, order


# ----------------------------- params -----------------------------

def init_params(key):
    keys = jax.random.split(key, 18)

    def w(k, fan_in, shape):
        return (jax.random.normal(k, shape, jnp.float32) / np.sqrt(fan_in))

    return {
        # img_enc: Conv2d(3,16,5) -> Conv2d(16,32,3) -> Linear(32,128)
        "w1":     w(keys[0],  3 * 5 * 5, (75, 16)),
        "b1":     w(keys[1],  3 * 5 * 5, (1, 16)),
        "w2":     w(keys[2], 16 * 3 * 3, (144, 32)),
        "b2":     w(keys[3], 16 * 3 * 3, (1, 32)),
        "wlin":   w(keys[4],  32, (32, 128)),
        "blin":   w(keys[5],  32, (1, 128)),
        # pt_enc: Linear(2,64) -> Linear(64,64)
        "wp1":    w(keys[6],   2, (2, 64)),
        "bp1":    w(keys[7],   2, (1, 64)),
        "wp2":    w(keys[8],  64, (64, 64)),
        "bp2":    w(keys[9],  64, (1, 64)),
        # fusion: Linear(192,128) split into pt(64) / img(128) halves of cat order
        "wf_pt":  w(keys[10], 192, (64, 128)),
        "wf_img": w(keys[11], 192, (128, 128)),
        "bf":     w(keys[12], 192, (1, 128)),
        # heads
        "ws":     w(keys[13], 128, (128, MAX_STROKES)),
        "bs":     w(keys[14], 128, (1, MAX_STROKES)),
        "wo":     w(keys[15], 128, (128, 1)),
        "bo":     w(keys[16], 128, (1, 1)),
    }


# ----------------------------- main -----------------------------

if __name__ == "__main__":
    key = jax.random.PRNGKey(0)
    kp, ki, kpt = jax.random.split(key, 3)

    B, N = 2, 8
    params = init_params(kp)
    img = jax.random.normal(ki, (B, 3, 16, 16), jnp.float32)       # NCHW, like PyTorch
    points = jax.random.uniform(kpt, (B, N, 2), jnp.float32)

    stroke_logits, order_preds = stroke_net_forward(params, img, points)
    jax.block_until_ready((stroke_logits, order_preds))

    ref_stroke, ref_order = reference_forward(params, img, points)
    np.testing.assert_allclose(np.asarray(stroke_logits), np.asarray(ref_stroke),
                               rtol=2e-4, atol=2e-4)
    np.testing.assert_allclose(np.asarray(order_preds), np.asarray(ref_order),
                               rtol=2e-4, atol=2e-4)
    assert stroke_logits.shape == (B, N, MAX_STROKES)
    assert order_preds.shape == (B, N)

    print("KERNEL_OK")
</pallas_src>

<mosaic_0001>
module attributes {stable_mosaic.version = 11 : i64} {
  func.func @_strokenet_kernel(%arg0: i32, %arg1: memref<1x36x75xf32, #tpu.memory_space<vmem>>, %arg2: memref<1x8x2xf32, #tpu.memory_space<vmem>>, %arg3: memref<75x16xf32, #tpu.memory_space<vmem>>, %arg4: memref<1x16xf32, #tpu.memory_space<vmem>>, %arg5: memref<9x4x36xf32, #tpu.memory_space<vmem>>, %arg6: memref<9x16x32xf32, #tpu.memory_space<vmem>>, %arg7: memref<1x32xf32, #tpu.memory_space<vmem>>, %arg8: memref<32x128xf32, #tpu.memory_space<vmem>>, %arg9: memref<1x128xf32, #tpu.memory_space<vmem>>, %arg10: memref<2x64xf32, #tpu.memory_space<vmem>>, %arg11: memref<1x64xf32, #tpu.memory_space<vmem>>, %arg12: memref<64x64xf32, #tpu.memory_space<vmem>>, %arg13: memref<1x64xf32, #tpu.memory_space<vmem>>, %arg14: memref<64x128xf32, #tpu.memory_space<vmem>>, %arg15: memref<128x128xf32, #tpu.memory_space<vmem>>, %arg16: memref<1x128xf32, #tpu.memory_space<vmem>>, %arg17: memref<128x16xf32, #tpu.memory_space<vmem>>, %arg18: memref<1x16xf32, #tpu.memory_space<vmem>>, %arg19: memref<1x8x16xf32, #tpu.memory_space<vmem>>) attributes {dimension_semantics = [#tpu.dimension_semantics<parallel>], iteration_bounds = array<i64: 2>, scalar_prefetch = 0 : i64, scratch_operands = 0 : i64, tpu.core_type = #tpu.core_type<tc>, window_params = [{transform_indices = @transform_0, window_bounds = array<i64: 1, 36, 75>}, {transform_indices = @transform_1, window_bounds = array<i64: 1, 8, 2>}, {pipeline_mode = #tpu.pipeline_mode<synchronous>, transform_indices = @transform_2, window_bounds = array<i64: 75, 16>}, {pipeline_mode = #tpu.pipeline_mode<synchronous>, transform_indices = @transform_3, window_bounds = array<i64: 1, 16>}, {pipeline_mode = #tpu.pipeline_mode<synchronous>, transform_indices = @transform_4, window_bounds = array<i64: 9, 4, 36>}, {pipeline_mode = #tpu.pipeline_mode<synchronous>, transform_indices = @transform_5, window_bounds = array<i64: 9, 16, 32>}, {pipeline_mode = #tpu.pipeline_mode<synchronous>, transform_indices = @transform_6, window_bounds = array<i64: 1, 32>}, {pipeline_mode = #tpu.pipeline_mode<synchronous>, transform_indices = @transform_7, window_bounds = array<i64: 32, 128>}, {pipeline_mode = #tpu.pipeline_mode<synchronous>, transform_indices = @transform_8, window_bounds = array<i64: 1, 128>}, {pipeline_mode = #tpu.pipeline_mode<synchronous>, transform_indices = @transform_9, window_bounds = array<i64: 2, 64>}, {pipeline_mode = #tpu.pipeline_mode<synchronous>, transform_indices = @transform_10, window_bounds = array<i64: 1, 64>}, {pipeline_mode = #tpu.pipeline_mode<synchronous>, transform_indices = @transform_11, window_bounds = array<i64: 64, 64>}, {pipeline_mode = #tpu.pipeline_mode<synchronous>, transform_indices = @transform_12, window_bounds = array<i64: 1, 64>}, {pipeline_mode = #tpu.pipeline_mode<synchronous>, transform_indices = @transform_13, window_bounds = array<i64: 64, 128>}, {pipeline_mode = #tpu.pipeline_mode<synchronous>, transform_indices = @transform_14, window_bounds = array<i64: 128, 128>}, {pipeline_mode = #tpu.pipeline_mode<synchronous>, transform_indices = @transform_15, window_bounds = array<i64: 1, 128>}, {pipeline_mode = #tpu.pipeline_mode<synchronous>, transform_indices = @transform_16, window_bounds = array<i64: 128, 16>}, {pipeline_mode = #tpu.pipeline_mode<synchronous>, transform_indices = @transform_17, window_bounds = array<i64: 1, 16>}, {transform_indices = @transform_18, window_bounds = array<i64: 1, 8, 16>}]} {
    %c0 = arith.constant 0 : index
    %c0_0 = arith.constant 0 : index
    %c0_1 = arith.constant 0 : index
    %0 = vector.load %arg1[%c0, %c0_0, %c0_1] : memref<1x36x75xf32, #tpu.memory_space<vmem>>, vector<1x36x75xf32>
    %1 = vector.shape_cast %0 : vector<1x36x75xf32> to vector<36x75xf32>
    %c0_2 = arith.constant 0 : index
    %c0_3 = arith.constant 0 : index
    %2 = vector.load %arg3[%c0_2, %c0_3] : memref<75x16xf32, #tpu.memory_space<vmem>>, vector<75x16xf32>
    %cst = arith.constant dense<0.000000e+00> : vector<36x16xf32>
    %3 = tpu.matmul %1, %2, %cst {dimension_numbers = #tpu.dot_dimension_numbers<[1], [0], [0], [1], [0, 0, 1, 1], [], []>} : vector<36x75xf32>, vector<75x16xf32>, vector<36x16xf32> -> vector<36x16xf32>
    %c0_4 = arith.constant 0 : index
    %c0_5 = arith.constant 0 : index
    %4 = vector.load %arg4[%c0_4, %c0_5] : memref<1x16xf32, #tpu.memory_space<vmem>>, vector<1x16xf32>
    %5 = vector.broadcast %4 : vector<1x16xf32> to vector<36x16xf32>
    %6 = arith.addf %3, %5 : vector<36x16xf32>
    %cst_6 = arith.constant 0.000000e+00 : f32
    %7 = vector.broadcast %cst_6 : f32 to vector<36x16xf32>
    %8 = arith.maximumf %6, %7 : vector<36x16xf32>
    %cst_7 = arith.constant 0.000000e+00 : f32
    %9 = vector.broadcast %cst_7 : f32 to vector<4x32xf32>
    %c0_8 = arith.constant 0 : index
    %c0_9 = arith.constant 0 : index
    %c0_10 = arith.constant 0 : index
    %10 = vector.load %arg5[%c0_8, %c0_9, %c0_10] : memref<9x4x36xf32, #tpu.memory_space<vmem>>, vector<1x4x36xf32>
    %11 = vector.shape_cast %10 : vector<1x4x36xf32> to vector<4x36xf32>
    %cst_11 = arith.constant dense<0.000000e+00> : vector<4x16xf32>
    %12 = tpu.matmul %11, %8, %cst_11 {dimension_numbers = #tpu.dot_dimension_numbers<[1], [0], [0], [1], [0, 0, 1, 1], [], []>} : vector<4x36xf32>, vector<36x16xf32>, vector<4x16xf32> -> vector<4x16xf32>
    %c0_12 = arith.constant 0 : index
    %c0_13 = arith.constant 0 : index
    %c0_14 = arith.constant 0 : index
    %13 = vector.load %arg6[%c0_12, %c0_13, %c0_14] : memref<9x16x32xf32, #tpu.memory_space<vmem>>, vector<1x16x32xf32>
    %14 = vector.shape_cast %13 : vector<1x16x32xf32> to vector<16x32xf32>
    %cst_15 = arith.constant dense<0.000000e+00> : vector<4x32xf32>
    %15 = tpu.matmul %12, %14, %cst_15 {dimension_numbers = #tpu.dot_dimension_numbers<[1], [0], [0], [1], [0, 0, 1, 1], [], []>} : vector<4x16xf32>, vector<16x32xf32>, vector<4x32xf32> -> vector<4x32xf32>
    %16 = arith.addf %9, %15 : vector<4x32xf32>
    %c1 = arith.constant 1 : index
    %c0_16 = arith.constant 0 : index
    %c0_17 = arith.constant 0 : index
    %17 = vector.load %arg5[%c1, %c0_16, %c0_17] : memref<9x4x36xf32, #tpu.memory_space<vmem>>, vector<1x4x36xf32>
    %18 = vector.shape_cast %17 : vector<1x4x36xf32> to vector<4x36xf32>
    %cst_18 = arith.constant dense<0.000000e+00> : vector<4x16xf32>
    %19 = tpu.matmul %18, %8, %cst_18 {dimension_numbers = #tpu.dot_dimension_numbers<[1], [0], [0], [1], [0, 0, 1, 1], [], []>} : vector<4x36xf32>, vector<36x16xf32>, vector<4x16xf32> -> vector<4x16xf32>
    %c1_19 = arith.constant 1 : index
    %c0_20 = arith.constant 0 : index
    %c0_21 = arith.constant 0 : index
    %20 = vector.load %arg6[%c1_19, %c0_20, %c0_21] : memref<9x16x32xf32, #tpu.memory_space<vmem>>, vector<1x16x32xf32>
    %21 = vector.shape_cast %20 : vector<1x16x32xf32> to vector<16x32xf32>
    %cst_22 = arith.constant dense<0.000000e+00> : vector<4x32xf32>
    %22 = tpu.matmul %19, %21, %cst_22 {dimension_numbers = #tpu.dot_dimension_numbers<[1], [0], [0], [1], [0, 0, 1, 1], [], []>} : vector<4x16xf32>, vector<16x32xf32>, vector<4x32xf32> -> vector<4x32xf32>
    %23 = arith.addf %16, %22 : vector<4x32xf32>
    %c2 = arith.constant 2 : index
    %c0_23 = arith.constant 0 : index
    %c0_24 = arith.constant 0 : index
    %24 = vector.load %arg5[%c2, %c0_23, %c0_24] : memref<9x4x36xf32, #tpu.memory_space<vmem>>, vector<1x4x36xf32>
    %25 = vector.shape_cast %24 : vector<1x4x36xf32> to vector<4x36xf32>
    %cst_25 = arith.constant dense<0.000000e+00> : vector<4x16xf32>
    %26 = tpu.matmul %25, %8, %cst_25 {dimension_numbers = #tpu.dot_dimension_numbers<[1], [0], [0], [1], [0, 0, 1, 1], [], []>} : vector<4x36xf32>, vector<36x16xf32>, vector<4x16xf32> -> vector<4x16xf32>
    %c2_26 = arith.constant 2 : index
    %c0_27 = arith.constant 0 : index
    %c0_28 = arith.constant 0 : index
    %27 = vector.load %arg6[%c2_26, %c0_27, %c0_28] : memref<9x16x32xf32, #tpu.memory_space<vmem>>, vector<1x16x32xf32>
    %28 = vector.shape_cast %27 : vector<1x16x32xf32> to vector<16x32xf32>
    %cst_29 = arith.constant dense<0.000000e+00> : vector<4x32xf32>
    %29 = tpu.matmul %26, %28, %cst_29 {dimension_numbers = #tpu.dot_dimension_numbers<[1], [0], [0], [1], [0, 0, 1, 1], [], []>} : vector<4x16xf32>, vector<16x32xf32>, vector<4x32xf32> -> vector<4x32xf32>
    %30 = arith.addf %23, %29 : vector<4x32xf32>
    %c3 = arith.constant 3 : index
    %c0_30 = arith.constant 0 : index
    %c0_31 = arith.constant 0 : index
    %31 = vector.load %arg5[%c3, %c0_30, %c0_31] : memref<9x4x36xf32, #tpu.memory_space<vmem>>, vector<1x4x36xf32>
    %32 = vector.shape_cast %31 : vector<1x4x36xf32> to vector<4x36xf32>
    %cst_32 = arith.constant dense<0.000000e+00> : vector<4x16xf32>
    %33 = tpu.matmul %32, %8, %cst_32 {dimension_numbers = #tpu.dot_dimension_numbers<[1], [0], [0], [1], [0, 0, 1, 1], [], []>} : vector<4x36xf32>, vector<36x16xf32>, vector<4x16xf32> -> vector<4x16xf32>
    %c3_33 = arith.constant 3 : index
    %c0_34 = arith.constant 0 : index
    %c0_35 = arith.constant 0 : index
    %34 = vector.load %arg6[%c3_33, %c0_34, %c0_35] : memref<9x16x32xf32, #tpu.memory_space<vmem>>, vector<1x16x32xf32>
    %35 = vector.shape_cast %34 : vector<1x16x32xf32> to vector<16x32xf32>
    %cst_36 = arith.constant dense<0.000000e+00> : vector<4x32xf32>
    %36 = tpu.matmul %33, %35, %cst_36 {dimension_numbers = #tpu.dot_dimension_numbers<[1], [0], [0], [1], [0, 0, 1, 1], [], []>} : vector<4x16xf32>, vector<16x32xf32>, vector<4x32xf32> -> vector<4x32xf32>
    %37 = arith.addf %30, %36 : vector<4x32xf32>
    %c4 = arith.constant 4 : index
    %c0_37 = arith.constant 0 : index
    %c0_38 = arith.constant 0 : index
    %38 = vector.load %arg5[%c4, %c0_37, %c0_38] : memref<9x4x36xf32, #tpu.memory_space<vmem>>, vector<1x4x36xf32>
    %39 = vector.shape_cast %38 : vector<1x4x36xf32> to vector<4x36xf32>
    %cst_39 = arith.constant dense<0.000000e+00> : vector<4x16xf32>
    %40 = tpu.matmul %39, %8, %cst_39 {dimension_numbers = #tpu.dot_dimension_numbers<[1], [0], [0], [1], [0, 0, 1, 1], [], []>} : vector<4x36xf32>, vector<36x16xf32>, vector<4x16xf32> -> vector<4x16xf32>
    %c4_40 = arith.constant 4 : index
    %c0_41 = arith.constant 0 : index
    %c0_42 = arith.constant 0 : index
    %41 = vector.load %arg6[%c4_40, %c0_41, %c0_42] : memref<9x16x32xf32, #tpu.memory_space<vmem>>, vector<1x16x32xf32>
    %42 = vector.shape_cast %41 : vector<1x16x32xf32> to vector<16x32xf32>
    %cst_43 = arith.constant dense<0.000000e+00> : vector<4x32xf32>
    %43 = tpu.matmul %40, %42, %cst_43 {dimension_numbers = #tpu.dot_dimension_numbers<[1], [0], [0], [1], [0, 0, 1, 1], [], []>} : vector<4x16xf32>, vector<16x32xf32>, vector<4x32xf32> -> vector<4x32xf32>
    %44 = arith.addf %37, %43 : vector<4x32xf32>
    %c5 = arith.constant 5 : index
    %c0_44 = arith.constant 0 : index
    %c0_45 = arith.constant 0 : index
    %45 = vector.load %arg5[%c5, %c0_44, %c0_45] : memref<9x4x36xf32, #tpu.memory_space<vmem>>, vector<1x4x36xf32>
    %46 = vector.shape_cast %45 : vector<1x4x36xf32> to vector<4x36xf32>
    %cst_46 = arith.constant dense<0.000000e+00> : vector<4x16xf32>
    %47 = tpu.matmul %46, %8, %cst_46 {dimension_numbers = #tpu.dot_dimension_numbers<[1], [0], [0], [1], [0, 0, 1, 1], [], []>} : vector<4x36xf32>, vector<36x16xf32>, vector<4x16xf32> -> vector<4x16xf32>
    %c5_47 = arith.constant 5 : index
    %c0_48 = arith.constant 0 : index
    %c0_49 = arith.constant 0 : index
    %48 = vector.load %arg6[%c5_47, %c0_48, %c0_49] : memref<9x16x32xf32, #tpu.memory_space<vmem>>, vector<1x16x32xf32>
    %49 = vector.shape_cast %48 : vector<1x16x32xf32> to vector<16x32xf32>
    %cst_50 = arith.constant dense<0.000000e+00> : vector<4x32xf32>
    %50 = tpu.matmul %47, %49, %cst_50 {dimension_numbers = #tpu.dot_dimension_numbers<[1], [0], [0], [1], [0, 0, 1, 1], [], []>} : vector<4x16xf32>, vector<16x32xf32>, vector<4x32xf32> -> vector<4x32xf32>
    %51 = arith.addf %44, %50 : vector<4x32xf32>
    %c6 = arith.constant 6 : index
    %c0_51 = arith.constant 0 : index
    %c0_52 = arith.constant 0 : index
    %52 = vector.load %arg5[%c6, %c0_51, %c0_52] : memref<9x4x36xf32, #tpu.memory_space<vmem>>, vector<1x4x36xf32>
    %53 = vector.shape_cast %52 : vector<1x4x36xf32> to vector<4x36xf32>
    %cst_53 = arith.constant dense<0.000000e+00> : vector<4x16xf32>
    %54 = tpu.matmul %53, %8, %cst_53 {dimension_numbers = #tpu.dot_dimension_numbers<[1], [0], [0], [1], [0, 0, 1, 1], [], []>} : vector<4x36xf32>, vector<36x16xf32>, vector<4x16xf32> -> vector<4x16xf32>
    %c6_54 = arith.constant 6 : index
    %c0_55 = arith.constant 0 : index
    %c0_56 = arith.constant 0 : index
    %55 = vector.load %arg6[%c6_54, %c0_55, %c0_56] : memref<9x16x32xf32, #tpu.memory_space<vmem>>, vector<1x16x32xf32>
    %56 = vector.shape_cast %55 : vector<1x16x32xf32> to vector<16x32xf32>
    %cst_57 = arith.constant dense<0.000000e+00> : vector<4x32xf32>
    %57 = tpu.matmul %54, %56, %cst_57 {dimension_numbers = #tpu.dot_dimension_numbers<[1], [0], [0], [1], [0, 0, 1, 1], [], []>} : vector<4x16xf32>, vector<16x32xf32>, vector<4x32xf32> -> vector<4x32xf32>
    %58 = arith.addf %51, %57 : vector<4x32xf32>
    %c7 = arith.constant 7 : index
    %c0_58 = arith.constant 0 : index
    %c0_59 = arith.constant 0 : index
    %59 = vector.load %arg5[%c7, %c0_58, %c0_59] : memref<9x4x36xf32, #tpu.memory_space<vmem>>, vector<1x4x36xf32>
    %60 = vector.shape_cast %59 : vector<1x4x36xf32> to vector<4x36xf32>
    %cst_60 = arith.constant dense<0.000000e+00> : vector<4x16xf32>
    %61 = tpu.matmul %60, %8, %cst_60 {dimension_numbers = #tpu.dot_dimension_numbers<[1], [0], [0], [1], [0, 0, 1, 1], [], []>} : vector<4x36xf32>, vector<36x16xf32>, vector<4x16xf32> -> vector<4x16xf32>
    %c7_61 = arith.constant 7 : index
    %c0_62 = arith.constant 0 : index
    %c0_63 = arith.constant 0 : index
    %62 = vector.load %arg6[%c7_61, %c0_62, %c0_63] : memref<9x16x32xf32, #tpu.memory_space<vmem>>, vector<1x16x32xf32>
    %63 = vector.shape_cast %62 : vector<1x16x32xf32> to vector<16x32xf32>
    %cst_64 = arith.constant dense<0.000000e+00> : vector<4x32xf32>
    %64 = tpu.matmul %61, %63, %cst_64 {dimension_numbers = #tpu.dot_dimension_numbers<[1], [0], [0], [1], [0, 0, 1, 1], [], []>} : vector<4x16xf32>, vector<16x32xf32>, vector<4x32xf32> -> vector<4x32xf32>
    %65 = arith.addf %58, %64 : vector<4x32xf32>
    %c8 = arith.constant 8 : index
    %c0_65 = arith.constant 0 : index
    %c0_66 = arith.constant 0 : index
    %66 = vector.load %arg5[%c8, %c0_65, %c0_66] : memref<9x4x36xf32, #tpu.memory_space<vmem>>, vector<1x4x36xf32>
    %67 = vector.shape_cast %66 : vector<1x4x36xf32> to vector<4x36xf32>
    %cst_67 = arith.constant dense<0.000000e+00> : vector<4x16xf32>
    %68 = tpu.matmul %67, %8, %cst_67 {dimension_numbers = #tpu.dot_dimension_numbers<[1], [0], [0], [1], [0, 0, 1, 1], [], []>} : vector<4x36xf32>, vector<36x16xf32>, vector<4x16xf32> -> vector<4x16xf32>
    %c8_68 = arith.constant 8 : index
    %c0_69 = arith.constant 0 : index
    %c0_70 = arith.constant 0 : index
    %69 = vector.load %arg6[%c8_68, %c0_69, %c0_70] : memref<9x16x32xf32, #tpu.memory_space<vmem>>, vector<1x16x32xf32>
    %70 = vector.shape_cast %69 : vector<1x16x32xf32> to vector<16x32xf32>
    %cst_71 = arith.constant dense<0.000000e+00> : vector<4x32xf32>
    %71 = tpu.matmul %68, %70, %cst_71 {dimension_numbers = #tpu.dot_dimension_numbers<[1], [0], [0], [1], [0, 0, 1, 1], [], []>} : vector<4x16xf32>, vector<16x32xf32>, vector<4x32xf32> -> vector<4x32xf32>
    %72 = arith.addf %65, %71 : vector<4x32xf32>
    %c0_72 = arith.constant 0 : index
    %c0_73 = arith.constant 0 : index
    %73 = vector.load %arg7[%c0_72, %c0_73] : memref<1x32xf32, #tpu.memory_space<vmem>>, vector<1x32xf32>
    %74 = vector.broadcast %73 : vector<1x32xf32> to vector<4x32xf32>
    %75 = arith.addf %72, %74 : vector<4x32xf32>
    %cst_74 = arith.constant 0.000000e+00 : f32
    %76 = vector.broadcast %cst_74 : f32 to vector<4x32xf32>
    %77 = arith.maximumf %75, %76 : vector<4x32xf32>
    %cst_75 = arith.constant dense<0.000000e+00> : vector<32xf32>
    %78 = vector.multi_reduction <add>, %77, %cst_75 [0] : vector<4x32xf32> to vector<32xf32>
    %79 = vector.shape_cast %78 : vector<32xf32> to vector<1x32xf32>
    %c0_76 = arith.constant 0 : index
    %c0_77 = arith.constant 0 : index
    %80 = vector.load %arg8[%c0_76, %c0_77] : memref<32x128xf32, #tpu.memory_space<vmem>>, vector<32x128xf32>
    %cst_78 = arith.constant dense<0.000000e+00> : vector<1x128xf32>
    %81 = tpu.matmul %79, %80, %cst_78 {dimension_numbers = #tpu.dot_dimension_numbers<[1], [0], [0], [1], [0, 0, 1, 1], [], []>} : vector<1x32xf32>, vector<32x128xf32>, vector<1x128xf32> -> vector<1x128xf32>
    %c0_79 = arith.constant 0 : index
    %c0_80 = arith.constant 0 : index
    %82 = vector.load %arg9[%c0_79, %c0_80] : memref<1x128xf32, #tpu.memory_space<vmem>>, vector<1x128xf32>
    %83 = arith.addf %81, %82 : vector<1x128xf32>
    %c0_81 = arith.constant 0 : index
    %c0_82 = arith.constant 0 : index
    %c0_83 = arith.constant 0 : index
    %84 = vector.load %arg2[%c0_81, %c0_82, %c0_83] : memref<1x8x2xf32, #tpu.memory_space<vmem>>, vector<1x8x2xf32>
    %85 = vector.shape_cast %84 : vector<1x8x2xf32> to vector<8x2xf32>
    %c0_84 = arith.constant 0 : index
    %c0_85 = arith.constant 0 : index
    %86 = vector.load %arg10[%c0_84, %c0_85] : memref<2x64xf32, #tpu.memory_space<vmem>>, vector<2x64xf32>
    %87 = vector.extract_strided_slice %85 {offsets = [0, 0], sizes = [8, 1], strides = [1, 1]} : vector<8x2xf32> to vector<8x1xf32>
    %88 = vector.extract_strided_slice %86 {offsets = [0, 0], sizes = [1, 64], strides = [1, 1]} : vector<2x64xf32> to vector<1x64xf32>
    %89 = vector.broadcast %87 : vector<8x1xf32> to vector<8x64xf32>
    %90 = vector.broadcast %88 : vector<1x64xf32> to vector<8x64xf32>
    %91 = arith.mulf %89, %90 : vector<8x64xf32>
    %92 = vector.extract_strided_slice %85 {offsets = [0, 1], sizes = [8, 1], strides = [1, 1]} : vector<8x2xf32> to vector<8x1xf32>
    %93 = vector.extract_strided_slice %86 {offsets = [1, 0], sizes = [1, 64], strides = [1, 1]} : vector<2x64xf32> to vector<1x64xf32>
    %94 = vector.broadcast %92 : vector<8x1xf32> to vector<8x64xf32>
    %95 = vector.broadcast %93 : vector<1x64xf32> to vector<8x64xf32>
    %96 = arith.mulf %94, %95 : vector<8x64xf32>
    %97 = arith.addf %91, %96 : vector<8x64xf32>
    %c0_86 = arith.constant 0 : index
    %c0_87 = arith.constant 0 : index
    %98 = vector.load %arg11[%c0_86, %c0_87] : memref<1x64xf32, #tpu.memory_space<vmem>>, vector<1x64xf32>
    %99 = vector.broadcast %98 : vector<1x64xf32> to vector<8x64xf32>
    %100 = arith.addf %97, %99 : vector<8x64xf32>
    %cst_88 = arith.constant 0.000000e+00 : f32
    %101 = vector.broadcast %cst_88 : f32 to vector<8x64xf32>
    %102 = arith.maximumf %100, %101 : vector<8x64xf32>
    %c0_89 = arith.constant 0 : index
    %c0_90 = arith.constant 0 : index
    %103 = vector.load %arg12[%c0_89, %c0_90] : memref<64x64xf32, #tpu.memory_space<vmem>>, vector<64x64xf32>
    %cst_91 = arith.constant dense<0.000000e+00> : vector<8x64xf32>
    %104 = tpu.matmul %102, %103, %cst_91 {dimension_numbers = #tpu.dot_dimension_numbers<[1], [0], [0], [1], [0, 0, 1, 1], [], []>} : vector<8x64xf32>, vector<64x64xf32>, vector<8x64xf32> -> vector<8x64xf32>
    %c0_92 = arith.constant 0 : index
    %c0_93 = arith.constant 0 : index
    %105 = vector.load %arg13[%c0_92, %c0_93] : memref<1x64xf32, #tpu.memory_space<vmem>>, vector<1x64xf32>
    %106 = vector.broadcast %105 : vector<1x64xf32> to vector<8x64xf32>
    %107 = arith.addf %104, %106 : vector<8x64xf32>
    %c0_94 = arith.constant 0 : index
    %c0_95 = arith.constant 0 : index
    %108 = vector.load %arg15[%c0_94, %c0_95] : memref<128x128xf32, #tpu.memory_space<vmem>>, vector<128x128xf32>
    %cst_96 = arith.constant dense<0.000000e+00> : vector<1x128xf32>
    %109 = tpu.matmul %83, %108, %cst_96 {dimension_numbers = #tpu.dot_dimension_numbers<[1], [0], [0], [1], [0, 0, 1, 1], [], []>} : vector<1x128xf32>, vector<128x128xf32>, vector<1x128xf32> -> vector<1x128xf32>
    %c0_97 = arith.constant 0 : index
    %c0_98 = arith.constant 0 : index
    %110 = vector.load %arg14[%c0_97, %c0_98] : memref<64x128xf32, #tpu.memory_space<vmem>>, vector<64x128xf32>
    %cst_99 = arith.constant dense<0.000000e+00> : vector<8x128xf32>
    %111 = tpu.matmul %107, %110, %cst_99 {dimension_numbers = #tpu.dot_dimension_numbers<[1], [0], [0], [1], [0, 0, 1, 1], [], []>} : vector<8x64xf32>, vector<64x128xf32>, vector<8x128xf32> -> vector<8x128xf32>
    %112 = vector.broadcast %109 : vector<1x128xf32> to vector<8x128xf32>
    %113 = arith.addf %111, %112 : vector<8x128xf32>
    %c0_100 = arith.constant 0 : index
    %c0_101 = arith.constant 0 : index
    %114 = vector.load %arg16[%c0_100, %c0_101] : memref<1x128xf32, #tpu.memory_space<vmem>>, vector<1x128xf32>
    %115 = vector.broadcast %114 : vector<1x128xf32> to vector<8x128xf32>
    %116 = arith.addf %113, %115 : vector<8x128xf32>
    %cst_102 = arith.constant 0.000000e+00 : f32
    %117 = vector.broadcast %cst_102 : f32 to vector<8x128xf32>
    %118 = arith.maximumf %116, %117 : vector<8x128xf32>
    %c0_103 = arith.constant 0 : index
    %c0_104 = arith.constant 0 : index
    %119 = vector.load %arg17[%c0_103, %c0_104] : memref<128x16xf32, #tpu.memory_space<vmem>>, vector<128x16xf32>
    %cst_105 = arith.constant dense<0.000000e+00> : vector<8x16xf32>
    %120 = tpu.matmul %118, %119, %cst_105 {dimension_numbers = #tpu.dot_dimension_numbers<[1], [0], [0], [1], [0, 0, 1, 1], [], []>} : vector<8x128xf32>, vector<128x16xf32>, vector<8x16xf32> -> vector<8x16xf32>
    %c0_106 = arith.constant 0 : index
    %c0_107 = arith.constant 0 : index
    %121 = vector.load %arg18[%c0_106, %c0_107] : memref<1x16xf32, #tpu.memory_space<vmem>>, vector<1x16xf32>
    %122 = vector.broadcast %121 : vector<1x16xf32> to vector<8x16xf32>
    %123 = arith.addf %120, %122 : vector<8x16xf32>
    %c0_108 = arith.constant 0 : index
    %c0_109 = arith.constant 0 : index
    %c0_110 = arith.constant 0 : index
    %124 = vector.load %arg19[%c0_108, %c0_109, %c0_110] : memref<1x8x16xf32, #tpu.memory_space<vmem>>, vector<1x8x16xf32>
    %125 = vector.shape_cast %124 : vector<1x8x16xf32> to vector<8x16xf32>
    %126 = vector.shape_cast %123 : vector<8x16xf32> to vector<1x8x16xf32>
    tpu.vector_store %arg19[%c0_108, %c0_109, %c0_110], %126 {strides = array<i32>} : memref<1x8x16xf32, #tpu.memory_space<vmem>>, vector<1x8x16xf32>,
    return
  }
  func.func @transform_0(%arg0: i32) -> (i32, i32, i32) {
    %c0_i32 = arith.constant 0 : i32
    %c0_i32_0 = arith.constant 0 : i32
    %c0_i32_1 = arith.constant 0 : i32
    return %arg0, %c0_i32, %c0_i32_0 : i32, i32, i32
  }
  func.func @transform_1(%arg0: i32) -> (i32, i32, i32) {
    %c0_i32 = arith.constant 0 : i32
    %c0_i32_0 = arith.constant 0 : i32
    %c0_i32_1 = arith.constant 0 : i32
    return %arg0, %c0_i32, %c0_i32_0 : i32, i32, i32
  }
  func.func @transform_2(%arg0: i32) -> (i32, i32) {
    %c0_i32 = arith.constant 0 : i32
    %c0_i32_0 = arith.constant 0 : i32
    %c0_i32_1 = arith.constant 0 : i32
    return %c0_i32, %c0_i32_0 : i32, i32
  }
  func.func @transform_3(%arg0: i32) -> (i32, i32) {
    %c0_i32 = arith.constant 0 : i32
    %c0_i32_0 = arith.constant 0 : i32
    %c0_i32_1 = arith.constant 0 : i32
    return %c0_i32, %c0_i32_0 : i32, i32
  }
  func.func @transform_4(%arg0: i32) -> (i32, i32, i32) {
    %c0_i32 = arith.constant 0 : i32
    %c0_i32_0 = arith.constant 0 : i32
    %c0_i32_1 = arith.constant 0 : i32
    %c0_i32_2 = arith.constant 0 : i32
    return %c0_i32, %c0_i32_0, %c0_i32_1 : i32, i32, i32
  }
  func.func @transform_5(%arg0: i32) -> (i32, i32, i32) {
    %c0_i32 = arith.constant 0 : i32
    %c0_i32_0 = arith.constant 0 : i32
    %c0_i32_1 = arith.constant 0 : i32
    %c0_i32_2 = arith.constant 0 : i32
    return %c0_i32, %c0_i32_0, %c0_i32_1 : i32, i32, i32
  }
  func.func @transform_6(%arg0: i32) -> (i32, i32) {
    %c0_i32 = arith.constant 0 : i32
    %c0_i32_0 = arith.constant 0 : i32
    %c0_i32_1 = arith.constant 0 : i32
    return %c0_i32, %c0_i32_0 : i32, i32
  }
  func.func @transform_7(%arg0: i32) -> (i32, i32) {
    %c0_i32 = arith.constant 0 : i32
    %c0_i32_0 = arith.constant 0 : i32
    %c0_i32_1 = arith.constant 0 : i32
    return %c0_i32, %c0_i32_0 : i32, i32
  }
  func.func @transform_8(%arg0: i32) -> (i32, i32) {
    %c0_i32 = arith.constant 0 : i32
    %c0_i32_0 = arith.constant 0 : i32
    %c0_i32_1 = arith.constant 0 : i32
    return %c0_i32, %c0_i32_0 : i32, i32
  }
  func.func @transform_9(%arg0: i32) -> (i32, i32) {
    %c0_i32 = arith.constant 0 : i32
    %c0_i32_0 = arith.constant 0 : i32
    %c0_i32_1 = arith.constant 0 : i32
    return %c0_i32, %c0_i32_0 : i32, i32
  }
  func.func @transform_10(%arg0: i32) -> (i32, i32) {
    %c0_i32 = arith.constant 0 : i32
    %c0_i32_0 = arith.constant 0 : i32
    %c0_i32_1 = arith.constant 0 : i32
    return %c0_i32, %c0_i32_0 : i32, i32
  }
  func.func @transform_11(%arg0: i32) -> (i32, i32) {
    %c0_i32 = arith.constant 0 : i32
    %c0_i32_0 = arith.constant 0 : i32
    %c0_i32_1 = arith.constant 0 : i32
    return %c0_i32, %c0_i32_0 : i32, i32
  }
  func.func @transform_12(%arg0: i32) -> (i32, i32) {
    %c0_i32 = arith.constant 0 : i32
    %c0_i32_0 = arith.constant 0 : i32
    %c0_i32_1 = arith.constant 0 : i32
    return %c0_i32, %c0_i32_0 : i32, i32
  }
  func.func @transform_13(%arg0: i32) -> (i32, i32) {
    %c0_i32 = arith.constant 0 : i32
    %c0_i32_0 = arith.constant 0 : i32
    %c0_i32_1 = arith.constant 0 : i32
    return %c0_i32, %c0_i32_0 : i32, i32
  }
  func.func @transform_14(%arg0: i32) -> (i32, i32) {
    %c0_i32 = arith.constant 0 : i32
    %c0_i32_0 = arith.constant 0 : i32
    %c0_i32_1 = arith.constant 0 : i32
    return %c0_i32, %c0_i32_0 : i32, i32
  }
  func.func @transform_15(%arg0: i32) -> (i32, i32) {
    %c0_i32 = arith.constant 0 : i32
    %c0_i32_0 = arith.constant 0 : i32
    %c0_i32_1 = arith.constant 0 : i32
    return %c0_i32, %c0_i32_0 : i32, i32
  }
  func.func @transform_16(%arg0: i32) -> (i32, i32) {
    %c0_i32 = arith.constant 0 : i32
    %c0_i32_0 = arith.constant 0 : i32
    %c0_i32_1 = arith.constant 0 : i32
    return %c0_i32, %c0_i32_0 : i32, i32
  }
  func.func @transform_17(%arg0: i32) -> (i32, i32) {
    %c0_i32 = arith.constant 0 : i32
    %c0_i32_0 = arith.constant 0 : i32
    %c0_i32_1 = arith.constant 0 : i32
    return %c0_i32, %c0_i32_0 : i32, i32
  }
  func.func @transform_18(%arg0: i32) -> (i32, i32, i32) {
    %c0_i32 = arith.constant 0 : i32
    %c0_i32_0 = arith.constant 0 : i32
    %c0_i32_1 = arith.constant 0 : i32
    return %arg0, %c0_i32, %c0_i32_0 : i32, i32, i32
  }
}

</mosaic_0001>

<llo_original>
// kernel: tpu_custom_call.1
$region0: #{tpu_custom_call.1}
  #allocation0 [shape = 'u32[]', space=smem, size = 0x4, offset = 0x4, fixed_abs, tag = 'smem constant byte address 0x4 - core index']
  #allocation1 [shape = 'u32[144,128]{1,0:T(1,128)}', space=vmem, size = 0x12000, scoped, tag = 'internal scratch']
  %s0 = inlined_call_operand.vmem [shape: f32[2,36,75], index: 0, kind: input, shape index: {}]
  %s1 = inlined_call_operand.vmem [shape: f32[2,8,2], index: 1, kind: input, shape index: {}]
  %s2 = inlined_call_operand.vmem [shape: f32[75,16], index: 2, kind: input, shape index: {}]
  %s3 = inlined_call_operand.vmem [shape: f32[1,16], index: 3, kind: input, shape index: {}]
  %s4 = inlined_call_operand.hbm [shape: f32[9,4,36], index: 4, kind: input, shape index: {}]
  %s5 = inlined_call_operand.vmem [shape: f32[9,16,32], index: 5, kind: input, shape index: {}]
  %s6 = inlined_call_operand.hbm [shape: f32[1,32], index: 6, kind: input, shape index: {}]
  %s7 = inlined_call_operand.vmem [shape: f32[32,128], index: 7, kind: input, shape index: {}]
  %s8 = inlined_call_operand.hbm [shape: f32[1,128], index: 8, kind: input, shape index: {}]
  %s9 = inlined_call_operand.hbm [shape: f32[2,64], index: 9, kind: input, shape index: {}]
  %s10 = inlined_call_operand.hbm [shape: f32[1,64], index: 10, kind: input, shape index: {}]
  %s11 = inlined_call_operand.vmem [shape: f32[64,64], index: 11, kind: input, shape index: {}]
  %s12 = inlined_call_operand.vmem [shape: f32[1,64], index: 12, kind: input, shape index: {}]
  %s13 = inlined_call_operand.vmem [shape: f32[64,128], index: 13, kind: input, shape index: {}]
  %s14 = inlined_call_operand.vmem [shape: f32[128,128], index: 14, kind: input, shape index: {}]
  %s15 = inlined_call_operand.vmem [shape: f32[1,128], index: 15, kind: input, shape index: {}]
  %s16 = inlined_call_operand.vmem [shape: f32[128,16], index: 16, kind: input, shape index: {}]
  %s17 = inlined_call_operand.vmem [shape: f32[1,16], index: 17, kind: input, shape index: {}]
  %s18 = inlined_call_operand.hbm [shape: f32[2,8,16], index: 18, kind: output, shape index: {}]
  %s19 = sld [smem:[#allocation0]]
  $region125: #{tpu_custom_call.1} parent=0
    _
  %s21 = ssub.s32 1, %s19
  %s22 = scalar_select 0, %s21, %s19
  $region1: #{tpu_custom_call.1} parent=0
    #allocation2 [shape = 'u8[18432]{0}', space=vmem, size = 0x4800, scoped, tag = 'input window, operand 4, single buffered']
    #allocation3 [shape = 's32[2]{0}', space=sflag, size = 0x8, scoped, tag = 'scoped memory for tpu_custom_call.1']
    #allocation4 [shape = 's32[2]{0}', space=sflag, size = 0x8, scoped, tag = 'scoped memory for tpu_custom_call.1']
    #allocation5 [shape = 'u8[512]{0}', space=vmem, size = 0x400, scoped, tag = 'input window, operand 6, single buffered']
    #allocation6 [shape = 's32[1]{0}', space=sflag, size = 0x4, scoped, tag = 'scoped memory for tpu_custom_call.1']
    #allocation7 [shape = 'u8[512]{0}', space=vmem, size = 0x400, scoped, tag = 'input window, operand 8, single buffered']
    #allocation8 [shape = 'u8[1024]{0}', space=vmem, size = 0x400, scoped, tag = 'input window, operand 9, single buffered']
    #allocation9 [shape = 's32[1]{0}', space=sflag, size = 0x4, scoped, tag = 'scoped memory for tpu_custom_call.1']
    #allocation10 [shape = 'u8[512]{0}', space=vmem, size = 0x400, scoped, tag = 'input window, operand 10, single buffered']
    #allocation11 [shape = 'u8[8192]{0}', space=vmem, size = 0x2000, scoped, tag = 'output window, operand 0']
    %23 = vsyncpa [#allocation3], 0
    %24 = vsyncpa [#allocation6], 0
    %25 = vsyncpa [#allocation9], 0
    %26 = vsyncpa [#allocation4], 0
    %s27 = scalar_lea.sflag [#allocation4], 1
    %28 = vsyncpa %s27, 0
    loop: start=0, step=1, limit=4
    $region2: #{tpu_custom_call.1} parent=1 // loop_pre_header
      _
    $region3: #{tpu_custom_call.1} parent=1 // loop_header
      %s30 = sphi 0, %s34
      %p31 = scmp.ge.s32.totalorder %s30, 4
      %s40 = sphi 0, %s42
      %s43 = sphi 0, %s40
      %s44 = sphi 0, %s43
      %s60 = sphi 0, %s44
      %s66 = sphi 0, %s68
      %s69 = sphi 0, %s66
      %s70 = sphi 0, %s69
      %s86 = sphi 0, %s70
      %s90 = sphi 0, %s90
      %s92 = sphi 0, %s90
      %s93 = sphi 0, %s92
      %s107 = sphi 0, %s93
      %s111 = sphi 0, %s111
      %s113 = sphi 0, %s111
      %s114 = sphi 0, %s113
      %s128 = sphi 0, %s114
      %s132 = sphi 0, %s132
      %s134 = sphi 0, %s132
      %s135 = sphi 0, %s134
      %s149 = sphi 0, %s135
      %s153 = sphi 0, %s153
      %s155 = sphi 0, %s153
      %s156 = sphi 0, %s155
      %s170 = sphi 0, %s156
      %s174 = sphi 0, %s174
      %s176 = sphi 0, %s174
      %s177 = sphi 0, %s176
      %s191 = sphi 0, %s177
      %s195 = sphi 0, %s195
      %s197 = sphi 0, %s195
      %s198 = sphi 0, %s197
      %s212 = sphi 0, %s198
      %s216 = sphi 0, %s216
      %s218 = sphi 0, %s216
      %s219 = sphi 0, %s218
      %s233 = sphi 0, %s219
      %s237 = sphi 0, %s237
      %s239 = sphi 0, %s237
      %s240 = sphi 0, %s239
      %s254 = sphi 0, %s240
      %s258 = sphi 0, %s258
      %s260 = sphi 0, %s258
      %s261 = sphi 0, %s260
      %s275 = sphi 0, %s261
      %s279 = sphi 0, %s279
      %s281 = sphi 0, %s279
      %s282 = sphi 0, %s281
      %s296 = sphi 0, %s282
      %s300 = sphi 0, %s300
      %s302 = sphi 0, %s300
      %s303 = sphi 0, %s302
      %s317 = sphi 0, %s303
      %s321 = sphi 0, %s321
      %s323 = sphi 0, %s321
      %s324 = sphi 0, %s323
      %s338 = sphi 0, %s324
      %s342 = sphi 0, %s342
      %s344 = sphi 0, %s342
      %s345 = sphi 0, %s344
      %s359 = sphi 0, %s345
      %s363 = sphi 0, %s363
      %s365 = sphi 0, %s363
      %s366 = sphi 0, %s365
      %s380 = sphi 0, %s366
      %s384 = sphi 0, %s384
      %s386 = sphi 0, %s384
      %s387 = sphi 0, %s386
      %s401 = sphi 0, %s387
      %s405 = sphi 0, %s405
      %s407 = sphi 0, %s405
      %s408 = sphi 0, %s407
      %s422 = sphi 0, %s408
      %s428 = sphi 0, %s430
      %s431 = sphi 0, %s428
      %s432 = sphi 0, %s431
      %s448 = sphi 0, %s432
    $region4: #{tpu_custom_call.1} parent=1 // loop_header_branch
      %33 = sbr.rel (%p31) target = $region8
    $region5: #{tpu_custom_call.1} parent=1 // loop_body
      %s35 = ssub.s32 %s30, 1
      %s36 = ssub.s32 %s30, 2
      %s37 = sadd.s32 %s30, 1
      %s38 = ssub.s32 %s30, %s37
      %p39 = scmp.eq.s32.totalorder %s38, 0
      %s41 = sadd.s32 %s40, 1
      %s42 = scalar_select %p39, %s40, %s41
      %p45 = pneg %p39
      %p46 = scmp.eq.s32.totalorder %s30, 1
      %p47 = por %p45, %p46
      %p48 = scmp.ne.s32.totalorder %s40, %s43
      %p49 = scmp.eq.s32.totalorder %s30, 0
      %p50 = por %p48, %p49
      %p51 = scmp.ne.s32.totalorder %s40, %s43
      %p52 = scmp.eq.s32.totalorder %s35, 1
      %p53 = por %p51, %p52
      %p54 = scmp.ne.s32.totalorder %s43, %s44
      %p55 = scmp.eq.s32.totalorder %s35, 0
      %p56 = por %p54, %p55
      %p57 = scmp.ne.s32.totalorder %s43, %s44
      %p58 = scmp.eq.s32.totalorder %s36, 1
      %p59 = por %p57, %p58
      %p61 = scmp.ne.s32.totalorder %s44, %s60
      %p62 = scmp.eq.s32.totalorder %s36, 0
      %p63 = por %p61, %p62
      %s64 = ssub.s32 %s30, %s37
      %p65 = scmp.eq.s32.totalorder %s64, 0
      %s67 = sadd.s32 %s66, 1
      %s68 = scalar_select %p65, %s66, %s67
      %p71 = pneg %p65
      %p72 = scmp.eq.s32.totalorder %s30, 1
      %p73 = por %p71, %p72
      %p74 = scmp.ne.s32.totalorder %s66, %s69
      %p75 = scmp.eq.s32.totalorder %s30, 0
      %p76 = por %p74, %p75
      %p77 = scmp.ne.s32.totalorder %s66, %s69
      %p78 = scmp.eq.s32.totalorder %s35, 1
      %p79 = por %p77, %p78
      %p80 = scmp.ne.s32.totalorder %s69, %s70
      %p81 = scmp.eq.s32.totalorder %s35, 0
      %p82 = por %p80, %p81
      %p83 = scmp.ne.s32.totalorder %s69, %s70
      %p84 = scmp.eq.s32.totalorder %s36, 1
      %p85 = por %p83, %p84
      %p87 = scmp.ne.s32.totalorder %s70, %s86
      %p88 = scmp.eq.s32.totalorder %s36, 0
      %p89 = por %p87, %p88
      %s91 = sadd.s32 %s90, 1
      %p94 = scmp.eq.s32.totalorder %s30, 1
      %p95 = scmp.ne.s32.totalorder %s90, %s92
      %p96 = scmp.eq.s32.totalorder %s30, 0
      %p97 = por %p95, %p96
      %p98 = scmp.ne.s32.totalorder %s90, %s92
      %p99 = scmp.eq.s32.totalorder %s35, 1
      %p100 = por %p98, %p99
      %p101 = scmp.ne.s32.totalorder %s92, %s93
      %p102 = scmp.eq.s32.totalorder %s35, 0
      %p103 = por %p101, %p102
      %p104 = scmp.ne.s32.totalorder %s92, %s93
      %p105 = scmp.eq.s32.totalorder %s36, 1
      %p106 = por %p104, %p105
      %p108 = scmp.ne.s32.totalorder %s93, %s107
      %p109 = scmp.eq.s32.totalorder %s36, 0
      %p110 = por %p108, %p109
      %s112 = sadd.s32 %s111, 1
      %p115 = scmp.eq.s32.totalorder %s30, 1
      %p116 = scmp.ne.s32.totalorder %s111, %s113
      %p117 = scmp.eq.s32.totalorder %s30, 0
      %p118 = por %p116, %p117
      %p119 = scmp.ne.s32.totalorder %s111, %s113
      %p120 = scmp.eq.s32.totalorder %s35, 1
      %p121 = por %p119, %p120
      %p122 = scmp.ne.s32.totalorder %s113, %s114
      %p123 = scmp.eq.s32.totalorder %s35, 0
      %p124 = por %p122, %p123
      %p125 = scmp.ne.s32.totalorder %s113, %s114
      %p126 = scmp.eq.s32.totalorder %s36, 1
      %p127 = por %p125, %p126
      %p129 = scmp.ne.s32.totalorder %s114, %s128
      %p130 = scmp.eq.s32.totalorder %s36, 0
      %p131 = por %p129, %p130
      %s133 = sadd.s32 %s132, 1
      %p136 = scmp.eq.s32.totalorder %s30, 1
      %p137 = scmp.ne.s32.totalorder %s132, %s134
      %p138 = scmp.eq.s32.totalorder %s30, 0
      %p139 = por %p137, %p138
      %p140 = scmp.ne.s32.totalorder %s132, %s134
      %p141 = scmp.eq.s32.totalorder %s35, 1
      %p142 = por %p140, %p141
      %p143 = scmp.ne.s32.totalorder %s134, %s135
      %p144 = scmp.eq.s32.totalorder %s35, 0
      %p145 = por %p143, %p144
      %p146 = scmp.ne.s32.totalorder %s134, %s135
      %p147 = scmp.eq.s32.totalorder %s36, 1
      %p148 = por %p146, %p147
      %p150 = scmp.ne.s32.totalorder %s135, %s149
      %p151 = scmp.eq.s32.totalorder %s36, 0
      %p152 = por %p150, %p151
      %s154 = sadd.s32 %s153, 1
      %p157 = scmp.eq.s32.totalorder %s30, 1
      %p158 = scmp.ne.s32.totalorder %s153, %s155
      %p159 = scmp.eq.s32.totalorder %s30, 0
      %p160 = por %p158, %p159
      %p161 = scmp.ne.s32.totalorder %s153, %s155
      %p162 = scmp.eq.s32.totalorder %s35, 1
      %p163 = por %p161, %p162
      %p164 = scmp.ne.s32.totalorder %s155, %s156
      %p165 = scmp.eq.s32.totalorder %s35, 0
      %p166 = por %p164, %p165
      %p167 = scmp.ne.s32.totalorder %s155, %s156
      %p168 = scmp.eq.s32.totalorder %s36, 1
      %p169 = por %p167, %p168
      %p171 = scmp.ne.s32.totalorder %s156, %s170
      %p172 = scmp.eq.s32.totalorder %s36, 0
      %p173 = por %p171, %p172
      %s175 = sadd.s32 %s174, 1
      %p178 = scmp.eq.s32.totalorder %s30, 1
      %p179 = scmp.ne.s32.totalorder %s174, %s176
      %p180 = scmp.eq.s32.totalorder %s30, 0
      %p181 = por %p179, %p180
      %p182 = scmp.ne.s32.totalorder %s174, %s176
      %p183 = scmp.eq.s32.totalorder %s35, 1
      %p184 = por %p182, %p183
      %p185 = scmp.ne.s32.totalorder %s176, %s177
      %p186 = scmp.eq.s32.totalorder %s35, 0
      %p187 = por %p185, %p186
      %p188 = scmp.ne.s32.totalorder %s176, %s177
      %p189 = scmp.eq.s32.totalorder %s36, 1
      %p190 = por %p188, %p189
      %p192 = scmp.ne.s32.totalorder %s177, %s191
      %p193 = scmp.eq.s32.totalorder %s36, 0
      %p194 = por %p192, %p193
      %s196 = sadd.s32 %s195, 1
      %p199 = scmp.eq.s32.totalorder %s30, 1
      %p200 = scmp.ne.s32.totalorder %s195, %s197
      %p201 = scmp.eq.s32.totalorder %s30, 0
      %p202 = por %p200, %p201
      %p203 = scmp.ne.s32.totalorder %s195, %s197
      %p204 = scmp.eq.s32.totalorder %s35, 1
      %p205 = por %p203, %p204
      %p206 = scmp.ne.s32.totalorder %s197, %s198
      %p207 = scmp.eq.s32.totalorder %s35, 0
      %p208 = por %p206, %p207
      %p209 = scmp.ne.s32.totalorder %s197, %s198
      %p210 = scmp.eq.s32.totalorder %s36, 1
      %p211 = por %p209, %p210
      %p213 = scmp.ne.s32.totalorder %s198, %s212
      %p214 = scmp.eq.s32.totalorder %s36, 0
      %p215 = por %p213, %p214
      %s217 = sadd.s32 %s216, 1
      %p220 = scmp.eq.s32.totalorder %s30, 1
      %p221 = scmp.ne.s32.totalorder %s216, %s218
      %p222 = scmp.eq.s32.totalorder %s30, 0
      %p223 = por %p221, %p222
      %p224 = scmp.ne.s32.totalorder %s216, %s218
      %p225 = scmp.eq.s32.totalorder %s35, 1
      %p226 = por %p224, %p225
      %p227 = scmp.ne.s32.totalorder %s218, %s219
      %p228 = scmp.eq.s32.totalorder %s35, 0
      %p229 = por %p227, %p228
      %p230 = scmp.ne.s32.totalorder %s218, %s219
      %p231 = scmp.eq.s32.totalorder %s36, 1
      %p232 = por %p230, %p231
      %p234 = scmp.ne.s32.totalorder %s219, %s233
      %p235 = scmp.eq.s32.totalorder %s36, 0
      %p236 = por %p234, %p235
      %s238 = sadd.s32 %s237, 1
      %p241 = scmp.eq.s32.totalorder %s30, 1
      %p242 = scmp.ne.s32.totalorder %s237, %s239
      %p243 = scmp.eq.s32.totalorder %s30, 0
      %p244 = por %p242, %p243
      %p245 = scmp.ne.s32.totalorder %s237, %s239
      %p246 = scmp.eq.s32.totalorder %s35, 1
      %p247 = por %p245, %p246
      %p248 = scmp.ne.s32.totalorder %s239, %s240
      %p249 = scmp.eq.s32.totalorder %s35, 0
      %p250 = por %p248, %p249
      %p251 = scmp.ne.s32.totalorder %s239, %s240
      %p252 = scmp.eq.s32.totalorder %s36, 1
      %p253 = por %p251, %p252
      %p255 = scmp.ne.s32.totalorder %s240, %s254
      %p256 = scmp.eq.s32.totalorder %s36, 0
      %p257 = por %p255, %p256
      %s259 = sadd.s32 %s258, 1
      %p262 = scmp.eq.s32.totalorder %s30, 1
      %p263 = scmp.ne.s32.totalorder %s258, %s260
      %p264 = scmp.eq.s32.totalorder %s30, 0
      %p265 = por %p263, %p264
      %p266 = scmp.ne.s32.totalorder %s258, %s260
      %p267 = scmp.eq.s32.totalorder %s35, 1
      %p268 = por %p266, %p267
      %p269 = scmp.ne.s32.totalorder %s260, %s261
      %p270 = scmp.eq.s32.totalorder %s35, 0
      %p271 = por %p269, %p270
      %p272 = scmp.ne.s32.totalorder %s260, %s261
      %p273 = scmp.eq.s32.totalorder %s36, 1
      %p274 = por %p272, %p273
      %p276 = scmp.ne.s32.totalorder %s261, %s275
      %p277 = scmp.eq.s32.totalorder %s36, 0
      %p278 = por %p276, %p277
      %s280 = sadd.s32 %s279, 1
      %p283 = scmp.eq.s32.totalorder %s30, 1
      %p284 = scmp.ne.s32.totalorder %s279, %s281
      %p285 = scmp.eq.s32.totalorder %s30, 0
      %p286 = por %p284, %p285
      %p287 = scmp.ne.s32.totalorder %s279, %s281
      %p288 = scmp.eq.s32.totalorder %s35, 1
      %p289 = por %p287, %p288
      %p290 = scmp.ne.s32.totalorder %s281, %s282
      %p291 = scmp.eq.s32.totalorder %s35, 0
      %p292 = por %p290, %p291
      %p293 = scmp.ne.s32.totalorder %s281, %s282
      %p294 = scmp.eq.s32.totalorder %s36, 1
      %p295 = por %p293, %p294
      %p297 = scmp.ne.s32.totalorder %s282, %s296
      %p298 = scmp.eq.s32.totalorder %s36, 0
      %p299 = por %p297, %p298
      %s301 = sadd.s32 %s300, 1
      %p304 = scmp.eq.s32.totalorder %s30, 1
      %p305 = scmp.ne.s32.totalorder %s300, %s302
      %p306 = scmp.eq.s32.totalorder %s30, 0
      %p307 = por %p305, %p306
      %p308 = scmp.ne.s32.totalorder %s300, %s302
      %p309 = scmp.eq.s32.totalorder %s35, 1
      %p310 = por %p308, %p309
      %p311 = scmp.ne.s32.totalorder %s302, %s303
      %p312 = scmp.eq.s32.totalorder %s35, 0
      %p313 = por %p311, %p312
      %p314 = scmp.ne.s32.totalorder %s302, %s303
      %p315 = scmp.eq.s32.totalorder %s36, 1
      %p316 = por %p314, %p315
      %p318 = scmp.ne.s32.totalorder %s303, %s317
      %p319 = scmp.eq.s32.totalorder %s36, 0
      %p320 = por %p318, %p319
      %s322 = sadd.s32 %s321, 1
      %p325 = scmp.eq.s32.totalorder %s30, 1
      %p326 = scmp.ne.s32.totalorder %s321, %s323
      %p327 = scmp.eq.s32.totalorder %s30, 0
      %p328 = por %p326, %p327
      %p329 = scmp.ne.s32.totalorder %s321, %s323
      %p330 = scmp.eq.s32.totalorder %s35, 1
      %p331 = por %p329, %p330
      %p332 = scmp.ne.s32.totalorder %s323, %s324
      %p333 = scmp.eq.s32.totalorder %s35, 0
      %p334 = por %p332, %p333
      %p335 = scmp.ne.s32.totalorder %s323, %s324
      %p336 = scmp.eq.s32.totalorder %s36, 1
      %p337 = por %p335, %p336
      %p339 = scmp.ne.s32.totalorder %s324, %s338
      %p340 = scmp.eq.s32.totalorder %s36, 0
      %p341 = por %p339, %p340
      %s343 = sadd.s32 %s342, 1
      %p346 = scmp.eq.s32.totalorder %s30, 1
      %p347 = scmp.ne.s32.totalorder %s342, %s344
      %p348 = scmp.eq.s32.totalorder %s30, 0
      %p349 = por %p347, %p348
      %p350 = scmp.ne.s32.totalorder %s342, %s344
      %p351 = scmp.eq.s32.totalorder %s35, 1
      %p352 = por %p350, %p351
      %p353 = scmp.ne.s32.totalorder %s344, %s345
      %p354 = scmp.eq.s32.totalorder %s35, 0
      %p355 = por %p353, %p354
      %p356 = scmp.ne.s32.totalorder %s344, %s345
      %p357 = scmp.eq.s32.totalorder %s36, 1
      %p358 = por %p356, %p357
      %p360 = scmp.ne.s32.totalorder %s345, %s359
      %p361 = scmp.eq.s32.totalorder %s36, 0
      %p362 = por %p360, %p361
      %s364 = sadd.s32 %s363, 1
      %p367 = scmp.eq.s32.totalorder %s30, 1
      %p368 = scmp.ne.s32.totalorder %s363, %s365
      %p369 = scmp.eq.s32.totalorder %s30, 0
      %p370 = por %p368, %p369
      %p371 = scmp.ne.s32.totalorder %s363, %s365
      %p372 = scmp.eq.s32.totalorder %s35, 1
      %p373 = por %p371, %p372
      %p374 = scmp.ne.s32.totalorder %s365, %s366
      %p375 = scmp.eq.s32.totalorder %s35, 0
      %p376 = por %p374, %p375
      %p377 = scmp.ne.s32.totalorder %s365, %s366
      %p378 = scmp.eq.s32.totalorder %s36, 1
      %p379 = por %p377, %p378
      %p381 = scmp.ne.s32.totalorder %s366, %s380
      %p382 = scmp.eq.s32.totalorder %s36, 0
      %p383 = por %p381, %p382
      %s385 = sadd.s32 %s384, 1
      %p388 = scmp.eq.s32.totalorder %s30, 1
      %p389 = scmp.ne.s32.totalorder %s384, %s386
      %p390 = scmp.eq.s32.totalorder %s30, 0
      %p391 = por %p389, %p390
      %p392 = scmp.ne.s32.totalorder %s384, %s386
      %p393 = scmp.eq.s32.totalorder %s35, 1
      %p394 = por %p392, %p393
      %p395 = scmp.ne.s32.totalorder %s386, %s387
      %p396 = scmp.eq.s32.totalorder %s35, 0
      %p397 = por %p395, %p396
      %p398 = scmp.ne.s32.totalorder %s386, %s387
      %p399 = scmp.eq.s32.totalorder %s36, 1
      %p400 = por %p398, %p399
      %p402 = scmp.ne.s32.totalorder %s387, %s401
      %p403 = scmp.eq.s32.totalorder %s36, 0
      %p404 = por %p402, %p403
      %s406 = sadd.s32 %s405, 1
      %p409 = scmp.eq.s32.totalorder %s30, 1
      %p410 = scmp.ne.s32.totalorder %s405, %s407
      %p411 = scmp.eq.s32.totalorder %s30, 0
      %p412 = por %p410, %p411
      %p413 = scmp.ne.s32.totalorder %s405, %s407
      %p414 = scmp.eq.s32.totalorder %s35, 1
      %p415 = por %p413, %p414
      %p416 = scmp.ne.s32.totalorder %s407, %s408
      %p417 = scmp.eq.s32.totalorder %s35, 0
      %p418 = por %p416, %p417
      %p419 = scmp.ne.s32.totalorder %s407, %s408
      %p420 = scmp.eq.s32.totalorder %s36, 1
      %p421 = por %p419, %p420
      %p423 = scmp.ne.s32.totalorder %s408, %s422
      %p424 = scmp.eq.s32.totalorder %s36, 0
      %p425 = por %p423, %p424
      %s426 = ssub.s32 %s30, %s37
      %p427 = scmp.eq.s32.totalorder %s426, 0
      %s429 = sadd.s32 %s428, 1
      %s430 = scalar_select %p427, %s428, %s429
      %p433 = pneg %p427
      %p434 = scmp.eq.s32.totalorder %s30, 1
      %p435 = por %p433, %p434
      %p436 = scmp.ne.s32.totalorder %s428, %s431
      %p437 = scmp.eq.s32.totalorder %s30, 0
      %p438 = por %p436, %p437
      %p439 = scmp.ne.s32.totalorder %s428, %s431
      %p440 = scmp.eq.s32.totalorder %s35, 1
      %p441 = por %p439, %p440
      %p442 = scmp.ne.s32.totalorder %s431, %s432
      %p443 = scmp.eq.s32.totalorder %s35, 0
      %p444 = por %p442, %p443
      %p445 = scmp.ne.s32.totalorder %s431, %s432
      %p446 = scmp.eq.s32.totalorder %s36, 1
      %p447 = por %p445, %p446
      %p449 = scmp.ne.s32.totalorder %s432, %s448
      %p450 = scmp.eq.s32.totalorder %s36, 0
      %p451 = por %p449, %p450
      %p452 = scmp.le.s32.totalorder 1, %s30
      %p453 = scmp.lt.s32.totalorder %s30, 3
      %p454 = pnand %p452, %p453
      %p455 = pneg %p454
      // Predicated region
      $region9: #{tpu_custom_call.1} parent=5 // pred_check
        _
      $region10: #{tpu_custom_call.1} parent=5 // pred_check_branch
        %457 = sbr.rel (%p454) target = $region12
      $region11: #{tpu_custom_call.1} parent=5 // pred_region
        %s458 = ssub.s32 %s30, 1
        // Predicated region
        $region13: #{tpu_custom_call.1} parent=11 // pred_check
          %p459 = pneg %p103
        $region14: #{tpu_custom_call.1} parent=11 // pred_check_branch
          %461 = sbr.rel (%p459) target = $region16
        $region15: #{tpu_custom_call.1} parent=11 // pred_region
          _
        $region16: #{tpu_custom_call.1} parent=11 // pred_fallthru
          _
        // Predicated region
        $region17: #{tpu_custom_call.1} parent=11 // pred_check
          %p462 = pneg %p124
        $region18: #{tpu_custom_call.1} parent=11 // pred_check_branch
          %464 = sbr.rel (%p462) target = $region20
        $region19: #{tpu_custom_call.1} parent=11 // pred_region
          _
        $region20: #{tpu_custom_call.1} parent=11 // pred_fallthru
          _
        // Predicated region
        $region21: #{tpu_custom_call.1} parent=11 // pred_check
          %p465 = pneg %p145
        $region22: #{tpu_custom_call.1} parent=11 // pred_check_branch
          %467 = sbr.rel (%p465) target = $region24
        $region23: #{tpu_custom_call.1} parent=11 // pred_region
          %s469 = ssub.s32 576, 576
          %470 = vsyncadd [#allocation3], %s469
          %s471 = sshll.u32 [#allocation2], 4
          %s472 = int_to_ptr.vmem [resolvable:$true] %s471
          %477 = dma.hbm_to_vmem [thread:$0]  %s4, 576, %s472, [#allocation3], 64, 64, 4
        $region24: #{tpu_custom_call.1} parent=11 // pred_fallthru
          _
        // Predicated region
        $region25: #{tpu_custom_call.1} parent=11 // pred_check
          %p478 = pneg %p166
        $region26: #{tpu_custom_call.1} parent=11 // pred_check_branch
          %480 = sbr.rel (%p478) target = $region28
        $region27: #{tpu_custom_call.1} parent=11 // pred_region
          _
        $region28: #{tpu_custom_call.1} parent=11 // pred_fallthru
          _
        // Predicated region
        $region29: #{tpu_custom_call.1} parent=11 // pred_check
          %p481 = pneg %p187
        $region30: #{tpu_custom_call.1} parent=11 // pred_check_branch
          %483 = sbr.rel (%p481) target = $region32
        $region31: #{tpu_custom_call.1} parent=11 // pred_region
          %s485 = ssub.s32 16, 16
          %486 = vsyncadd [#allocation6], %s485
          %s488 = sshll.u32 [#allocation5], 4
          %s489 = int_to_ptr.vmem [resolvable:$true] %s488
          %491 = dma.hbm_to_vmem [thread:$0]  %s6, 16, %s489, [#allocation6]
        $region32: #{tpu_custom_call.1} parent=11 // pred_fallthru
          _
        // Predicated region
        $region33: #{tpu_custom_call.1} parent=11 // pred_check
          %p492 = pneg %p208
        $region34: #{tpu_custom_call.1} parent=11 // pred_check_branch
          %494 = sbr.rel (%p492) target = $region36
        $region35: #{tpu_custom_call.1} parent=11 // pred_region
          _
        $region36: #{tpu_custom_call.1} parent=11 // pred_fallthru
          _
        // Predicated region
        $region37: #{tpu_custom_call.1} parent=11 // pred_check
          %p495 = pneg %p229
        $region38: #{tpu_custom_call.1} parent=11 // pred_check_branch
          %497 = sbr.rel (%p495) target = $region40
        $region39: #{tpu_custom_call.1} parent=11 // pred_region
          %s499 = ssub.s32 16, 16
          %500 = vsyncadd [#allocation6], %s499
          %s502 = sshll.u32 [#allocation7], 4
          %s503 = int_to_ptr.vmem [resolvable:$true] %s502
          %505 = dma.hbm_to_vmem [thread:$0]  %s8, 16, %s503, [#allocation6]
        $region40: #{tpu_custom_call.1} parent=11 // pred_fallthru
          _
        // Predicated region
        $region41: #{tpu_custom_call.1} parent=11 // pred_check
          %p506 = pneg %p250
        $region42: #{tpu_custom_call.1} parent=11 // pred_check_branch
          %508 = sbr.rel (%p506) target = $region44
        $region43: #{tpu_custom_call.1} parent=11 // pred_region
          %s510 = ssub.s32 32, 32
          %511 = vsyncadd [#allocation9], %s510
          %s513 = sshll.u32 [#allocation8], 4
          %s514 = int_to_ptr.vmem [resolvable:$true] %s513
          %516 = dma.hbm_to_vmem [thread:$0]  %s9, 32, %s514, [#allocation9]
        $region44: #{tpu_custom_call.1} parent=11 // pred_fallthru
          _
        // Predicated region
        $region45: #{tpu_custom_call.1} parent=11 // pred_check
          %p517 = pneg %p271
        $region46: #{tpu_custom_call.1} parent=11 // pred_check_branch
          %519 = sbr.rel (%p517) target = $region48
        $region47: #{tpu_custom_call.1} parent=11 // pred_region
          %s521 = ssub.s32 16, 16
          %522 = vsyncadd [#allocation9], %s521
          %s524 = sshll.u32 [#allocation10], 4
          %s525 = int_to_ptr.vmem [resolvable:$true] %s524
          %527 = dma.hbm_to_vmem [thread:$0]  %s10, 16, %s525, [#allocation9]
        $region48: #{tpu_custom_call.1} parent=11 // pred_fallthru
          _
        // Predicated region
        $region49: #{tpu_custom_call.1} parent=11 // pred_check
          %p528 = pneg %p292
        $region50: #{tpu_custom_call.1} parent=11 // pred_check_branch
          %530 = sbr.rel (%p528) target = $region52
        $region51: #{tpu_custom_call.1} parent=11 // pred_region
          _
        $region52: #{tpu_custom_call.1} parent=11 // pred_fallthru
          _
        // Predicated region
        $region53: #{tpu_custom_call.1} parent=11 // pred_check
          %p531 = pneg %p313
        $region54: #{tpu_custom_call.1} parent=11 // pred_check_branch
          %533 = sbr.rel (%p531) target = $region56
        $region55: #{tpu_custom_call.1} parent=11 // pred_region
          _
        $region56: #{tpu_custom_call.1} parent=11 // pred_fallthru
          _
        // Predicated region
        $region57: #{tpu_custom_call.1} parent=11 // pred_check
          %p534 = pneg %p334
        $region58: #{tpu_custom_call.1} parent=11 // pred_check_branch
          %536 = sbr.rel (%p534) target = $region60
        $region59: #{tpu_custom_call.1} parent=11 // pred_region
          _
        $region60: #{tpu_custom_call.1} parent=11 // pred_fallthru
          _
        // Predicated region
        $region61: #{tpu_custom_call.1} parent=11 // pred_check
          %p537 = pneg %p355
        $region62: #{tpu_custom_call.1} parent=11 // pred_check_branch
          %539 = sbr.rel (%p537) target = $region64
        $region63: #{tpu_custom_call.1} parent=11 // pred_region
          _
        $region64: #{tpu_custom_call.1} parent=11 // pred_fallthru
          _
        // Predicated region
        $region65: #{tpu_custom_call.1} parent=11 // pred_check
          %p540 = pneg %p376
        $region66: #{tpu_custom_call.1} parent=11 // pred_check_branch
          %542 = sbr.rel (%p540) target = $region68
        $region67: #{tpu_custom_call.1} parent=11 // pred_region
          _
        $region68: #{tpu_custom_call.1} parent=11 // pred_fallthru
          _
        // Predicated region
        $region69: #{tpu_custom_call.1} parent=11 // pred_check
          %p543 = pneg %p397
        $region70: #{tpu_custom_call.1} parent=11 // pred_check_branch
          %545 = sbr.rel (%p543) target = $region72
        $region71: #{tpu_custom_call.1} parent=11 // pred_region
          _
        $region72: #{tpu_custom_call.1} parent=11 // pred_fallthru
          _
        // Predicated region
        $region73: #{tpu_custom_call.1} parent=11 // pred_check
          %p546 = pneg %p418
        $region74: #{tpu_custom_call.1} parent=11 // pred_check_branch
          %548 = sbr.rel (%p546) target = $region76
        $region75: #{tpu_custom_call.1} parent=11 // pred_region
          _
        $region76: #{tpu_custom_call.1} parent=11 // pred_fallthru
          _
      $region12: #{tpu_custom_call.1} parent=5 // pred_fallthru
        _
      %p549 = scmp.lt.s32.totalorder %s30, 2
      // Predicated region
      $region77: #{tpu_custom_call.1} parent=5 // pred_check
        %p550 = pneg %p549
      $region78: #{tpu_custom_call.1} parent=5 // pred_check_branch
        %552 = sbr.rel (%p550) target = $region80
      $region79: #{tpu_custom_call.1} parent=5 // pred_region
        // Predicated region
        $region81: #{tpu_custom_call.1} parent=79 // pred_check
          %p553 = pneg %p50
        $region82: #{tpu_custom_call.1} parent=79 // pred_check_branch
          %555 = sbr.rel (%p553) target = $region84
        $region83: #{tpu_custom_call.1} parent=79 // pred_region
          %p556 = scmp.lt.s32.totalorder %s30, 1
          %s557 = scalar_select %p556, %s30, 1
          %s558 = smul.addr %s557, 5
          %s559 = smul.addr %s558, 8
          %s560 = scalar_lea.vmem %s0, %s559
        $region84: #{tpu_custom_call.1} parent=79 // pred_fallthru
          _
        // Predicated region
        $region85: #{tpu_custom_call.1} parent=79 // pred_check
          %p561 = pneg %p76
        $region86: #{tpu_custom_call.1} parent=79 // pred_check_branch
          %563 = sbr.rel (%p561) target = $region88
        $region87: #{tpu_custom_call.1} parent=79 // pred_region
          %p564 = scmp.lt.s32.totalorder %s30, 1
          %s565 = scalar_select %p564, %s30, 1
          %s566 = smul.addr %s565, 8
          %s567 = scalar_lea.vmem %s1, %s566
        $region88: #{tpu_custom_call.1} parent=79 // pred_fallthru
          _
      $region80: #{tpu_custom_call.1} parent=5 // pred_fallthru
        _
      %p568 = scmp.le.s32.totalorder 1, %s30
      %p569 = scmp.lt.s32.totalorder %s30, 3
      %p570 = pnand %p568, %p569
      %p571 = pneg %p570
      // Predicated region
      $region89: #{tpu_custom_call.1} parent=5 // pred_check
        _
      $region90: #{tpu_custom_call.1} parent=5 // pred_check_branch
        %573 = sbr.rel (%p570) target = $region92
      $region91: #{tpu_custom_call.1} parent=5 // pred_region
        %s574 = ssub.s32 %s30, 1
        // Predicated region
        $region93: #{tpu_custom_call.1} parent=91 // pred_check
          %p575 = pneg %p145
        $region94: #{tpu_custom_call.1} parent=91 // pred_check_branch
          %577 = sbr.rel (%p575) target = $region96
        $region95: #{tpu_custom_call.1} parent=91 // pred_region
          %578 = dma.done [#allocation3], 576
        $region96: #{tpu_custom_call.1} parent=91 // pred_fallthru
          _
        // Predicated region
        $region97: #{tpu_custom_call.1} parent=91 // pred_check
          %p579 = pneg %p187
        $region98: #{tpu_custom_call.1} parent=91 // pred_check_branch
          %581 = sbr.rel (%p579) target = $region100
        $region99: #{tpu_custom_call.1} parent=91 // pred_region
          %582 = dma.done [#allocation6], 16
        $region100: #{tpu_custom_call.1} parent=91 // pred_fallthru
          _
        // Predicated region
        $region101: #{tpu_custom_call.1} parent=91 // pred_check
          %p583 = pneg %p229
        $region102: #{tpu_custom_call.1} parent=91 // pred_check_branch
          %585 = sbr.rel (%p583) target = $region104
        $region103: #{tpu_custom_call.1} parent=91 // pred_region
          %586 = dma.done [#allocation6], 16
        $region104: #{tpu_custom_call.1} parent=91 // pred_fallthru
          _
        // Predicated region
        $region105: #{tpu_custom_call.1} parent=91 // pred_check
          %p587 = pneg %p250
        $region106: #{tpu_custom_call.1} parent=91 // pred_check_branch
          %589 = sbr.rel (%p587) target = $region108
        $region107: #{tpu_custom_call.1} parent=91 // pred_region
          %590 = dma.done [#allocation9], 32
        $region108: #{tpu_custom_call.1} parent=91 // pred_fallthru
          _
        // Predicated region
        $region109: #{tpu_custom_call.1} parent=91 // pred_check
          %p591 = pneg %p271
        $region110: #{tpu_custom_call.1} parent=91 // pred_check_branch
          %593 = sbr.rel (%p591) target = $region112
        $region111: #{tpu_custom_call.1} parent=91 // pred_region
          %594 = dma.done [#allocation9], 16
        $region112: #{tpu_custom_call.1} parent=91 // pred_fallthru
          _
        %p595 = scmp.lt.s32.totalorder %s35, 1
        %s596 = scalar_select %p595, %s35, 1
        %s597 = smul.addr %s596, 5
        %s598 = smul.addr %s597, 8
        %s599 = scalar_lea.vmem %s0, %s598
        %p600 = pneg %p56
        %p601 = pneg %p53
        %p602 = scmp.lt.s32.totalorder %s35, 1
        %s603 = scalar_select %p602, %s35, 1
        %s604 = smul.addr %s603, 8
        %s605 = scalar_lea.vmem %s1, %s604
        %p606 = pneg %p82
        %p607 = pneg %p79
        %p608 = pneg %p103
        %p609 = pneg %p100
        %p610 = pneg %p124
        %p611 = pneg %p121
        %p612 = pneg %p145
        %p613 = pneg %p142
        %p614 = pneg %p166
        %p615 = pneg %p163
        %p616 = pneg %p187
        %p617 = pneg %p184
        %p618 = pneg %p208
        %p619 = pneg %p205
        %p620 = pneg %p229
        %p621 = pneg %p226
        %p622 = pneg %p250
        %p623 = pneg %p247
        %p624 = pneg %p271
        %p625 = pneg %p268
        %p626 = pneg %p292
        %p627 = pneg %p289
        %p628 = pneg %p313
        %p629 = pneg %p310
        %p630 = pneg %p334
        %p631 = pneg %p331
        %p632 = pneg %p355
        %p633 = pneg %p352
        %p634 = pneg %p376
        %p635 = pneg %p373
        %p636 = pneg %p397
        %p637 = pneg %p394
        %p638 = pneg %p418
        %p639 = pneg %p415
        %p640 = pneg %p444
        %p641 = pneg %p441
        %s642 = sand.u32 %s431, 1
        %s643 = scalar_lea.sflag [#allocation4], %s642
        %s644 = sand.u32 %s431, 1
        %s645 = smul.addr %s644, 8
        %s646 = scalar_lea.vmem [#allocation11], %s645
        %p647 = scmp.lt.s32.totalorder %s35, 1
        %s648 = scalar_select %p647, %s35, 1
        %s649 = smul.addr %s648, 5
        %s650 = smul.addr %s649, 8
        %s651 = scalar_lea.vmem %s0, %s650
        %p652 = scmp.lt.s32.totalorder %s35, 1
        %s653 = scalar_select %p652, %s35, 1
        %s654 = smul.addr %s653, 8
        %s655 = scalar_lea.vmem %s1, %s654
        %v656 = vld [vmem:[%s651] sm:$0xff]
        %v657 = vld [vmem:[%s651 + $0x8] sm:$0xff]
        %v658 = vld [vmem:[%s651 + $0x10] sm:$0xff]
        %v659 = vld [vmem:[%s651 + $0x18] sm:$0xff]
        %v660 = vld [vmem:[%s651 + $0x20] sm:$0xf]
        %v661 = vld [vmem:[%s2] sm:$0xff]
        %v662 = vld [vmem:[%s2 + $0x8] sm:$0xff]
        %v663 = vld [vmem:[%s2 + $0x10] sm:$0xff]
        %v664 = vld [vmem:[%s2 + $0x18] sm:$0xff]
        %v665 = vld [vmem:[%s2 + $0x20] sm:$0xff]
        %v666 = vld [vmem:[%s2 + $0x28] sm:$0xff]
        %v667 = vld [vmem:[%s2 + $0x30] sm:$0xff]
        %v668 = vld [vmem:[%s2 + $0x38] sm:$0xff]
        %v669 = vld [vmem:[%s2 + $0x40] sm:$0xff]
        %v670 = vld [vmem:[%s2 + $0x48] sm:$0x7]
        %v671 = vld [vmem:[%s3] sm:$0x1]
        %v673 = vlaneseq
        %v674 = vshrl.u32 %v673, 7
        %v675 = vsub.s32 0, %v674
        %v676 = vrot.slane %v671, %v675
        %vm678 = vcmask 613376
        %v680 = vsel %vm678, %v656, 0
        %v683 = vsel %vm678, %v657, 0
        %v686 = vsel %vm678, %v658, 0
        %v689 = vsel %vm678, %v659, 0
        %v692 = vsel %vm678, %v660, 0
        %vm694 = vcmask 1042432
        %v696 = vsel %vm694, %v670, 0
        %698 = vmatprep.subr.mxu0 0.0
        %699 = vmatpush1.msra.mxu0 %v661
        %700 = vmatprep.subr.mxu0 0.0
        %701 = vmatpush1.msra.mxu0 %v662
        %702 = vmatprep.subr.mxu0 0.0
        %703 = vmatpush1.msra.mxu0 %v663
        %704 = vmatprep.subr.mxu0 0.0
        %705 = vmatpush1.msra.mxu0 %v664
        %706 = vmatprep.subr.mxu0 0.0
        %707 = vmatpush1.msra.mxu0 %v665
        %708 = vmatprep.subr.mxu0 0.0
        %709 = vmatpush1.msra.mxu0 %v666
        %710 = vmatprep.subr.mxu0 0.0
        %711 = vmatpush1.msra.mxu0 %v667
        %712 = vmatprep.subr.mxu0 0.0
        %713 = vmatpush1.msra.mxu0 %v668
        %714 = vmatprep.subr.mxu0 0.0
        %715 = vmatpush1.msra.mxu0 %v669
        %716 = vmatprep.subr.mxu0 0.0
        %717 = vmatpush1.msra.mxu0 %v696
        %718 = vmatprep.subr.mxu0 0.0
        %719 = vmatpush1.msra.mxu0 0.0
        %720 = vmatprep.subr.mxu0 0.0
        %721 = vmatpush1.msra.mxu0 0.0
        %722 = vmatprep.subr.mxu0 0.0
        %723 = vmatpush1.msra.mxu0 0.0
        %724 = vmatprep.subr.mxu0 0.0
        %725 = vmatpush1.msra.mxu0 0.0
        %726 = vmatprep.subr.mxu0 0.0
        %727 = vmatpush1.msra.mxu0 0.0
        %728 = vmatprep.subr.mxu0 0.0
        %729 = vmatpush1.msra.mxu0 0.0
        %730 = vmatprep.subr.mxu0 0.0
        %731 = vmatpush1.msra.mxu0 0.0
        %732 = vmatprep.subr.mxu0 0.0
        %733 = vmatpush1.msra.mxu0 0.0
        %734 = vmatprep.subr.mxu0 0.0
        %735 = vmatpush1.msra.mxu0 0.0
        %736 = vmatprep.subr.mxu0 0.0
        %737 = vmatpush1.msra.mxu0 0.0
        %738 = vmatprep.subr.mxu0 0.0
        %739 = vmatpush1.msra.mxu0 0.0
        %740 = vmatprep.subr.mxu0 0.0
        %741 = vmatpush1.msra.mxu0 0.0
        %742 = vmatprep.subr.mxu0 0.0
        %743 = vmatpush1.msra.mxu0 0.0
        %744 = vmatprep.subr.mxu0 0.0
        %745 = vmatpush1.msra.mxu0 0.0
        %746 = vmatprep.subr.mxu0 0.0
        %747 = vmatpush1.msra.mxu0 0.0
        %748 = vmatprep.subr.mxu0 0.0
        %749 = vmatpush1.msra.mxu0 0.0
        %750 = vmatprep.subr.mxu0 0.0
        %751 = vmatpush1.msra.mxu0 0.0
        %752 = vmatprep.subr.mxu0 0.0
        %753 = vmatpush1.msra.mxu0 0.0
        %754 = vmatprep.subr.mxu0 0.0
        %755 = vmatpush1.msra.mxu0 0.0
        %756 = vmatprep.subr.mxu0 0.0
        %757 = vmatpush1.msra.mxu0 0.0
        %758 = vmatprep.subr.mxu0 0.0
        %759 = vmatpush1.msra.mxu0 0.0
        %760 = vmatprep.subr.mxu0 0.0
        %761 = vmatpush1.msra.mxu0 0.0
        %762 = vmatprep.mubr.f32.mxu0 0.0
        %763 = vmatmul.mubr.f32.gmra.mrb[0].mxu0 %v680
        %v764 = vpop.f32.mrb[0].mxu0
        %v765 = vadd.f32 %v676, %v764
        %v766 = vpop.f32.mrb[0].mxu0
        %767 = vmatprep.mubr.f32.mxu0 0.0
        %768 = vmatmul.mubr.f32.gmra.mrb[0].mxu0 %v683
        %v769 = vpop.f32.mrb[0].mxu0
        %v770 = vadd.f32 %v676, %v769
        %v771 = vpop.f32.mrb[0].mxu0
        %772 = vmatprep.mubr.f32.mxu0 0.0
        %773 = vmatmul.mubr.f32.gmra.mrb[0].mxu0 %v686
        %v774 = vpop.f32.mrb[0].mxu0
        %v775 = vadd.f32 %v676, %v774
        %v776 = vpop.f32.mrb[0].mxu0
        %777 = vmatprep.mubr.f32.mxu0 0.0
        %778 = vmatmul.mubr.f32.gmra.mrb[0].mxu0 %v689
        %v779 = vpop.f32.mrb[0].mxu0
        %v780 = vadd.f32 %v676, %v779
        %v781 = vpop.f32.mrb[0].mxu0
        %782 = vmatprep.mubr.f32.mxu0 0.0
        %783 = vmatmul.mubr.f32.gmra.mrb[0].mxu0 %v692
        %v784 = vpop.f32.mrb[0].mxu0
        %v785 = vadd.f32 %v676, %v784
        %v786 = vpop.f32.mrb[0].mxu0
        %787 = vdwg.mxu0
        %v788 = vmax.f32 %v765, 0.0
        %v789 = vmax.f32 %v770, 0.0
        %v790 = vmax.f32 %v775, 0.0
        %v791 = vmax.f32 %v780, 0.0
        %v792 = vmax.f32 %v785, 0.0
        %v793 = vld [vmem:[#allocation2] sm:$0xf]
        %vm794 = vcmask 293888
        %v796 = vsel %vm794, %v793, 0
        %vm798 = vcmask 1043456
        %v800 = vsel %vm798, %v792, 0
        %802 = vmatprep.subr.mxu0 0.0
        %803 = vmatpush1.msra.mxu0 %v788
        %804 = vmatprep.subr.mxu0 0.0
        %805 = vmatpush1.msra.mxu0 %v789
        %806 = vmatprep.subr.mxu0 0.0
        %807 = vmatpush1.msra.mxu0 %v790
        %808 = vmatprep.subr.mxu0 0.0
        %809 = vmatpush1.msra.mxu0 %v791
        %810 = vmatprep.subr.mxu0 0.0
        %811 = vmatpush1.msra.mxu0 %v800
        %812 = vmatprep.subr.mxu0 0.0
        %813 = vmatpush1.msra.mxu0 0.0
        %814 = vmatprep.subr.mxu0 0.0
        %815 = vmatpush1.msra.mxu0 0.0
        %816 = vmatprep.subr.mxu0 0.0
        %817 = vmatpush1.msra.mxu0 0.0
        %818 = vmatprep.subr.mxu0 0.0
        %819 = vmatpush1.msra.mxu0 0.0
        %820 = vmatprep.subr.mxu0 0.0
        %821 = vmatpush1.msra.mxu0 0.0
        %822 = vmatprep.subr.mxu0 0.0
        %823 = vmatpush1.msra.mxu0 0.0
        %824 = vmatprep.subr.mxu0 0.0
        %825 = vmatpush1.msra.mxu0 0.0
        %826 = vmatprep.subr.mxu0 0.0
        %827 = vmatpush1.msra.mxu0 0.0
        %828 = vmatprep.subr.mxu0 0.0
        %829 = vmatpush1.msra.mxu0 0.0
        %830 = vmatprep.subr.mxu0 0.0
        %831 = vmatpush1.msra.mxu0 0.0
        %832 = vmatprep.subr.mxu0 0.0
        %833 = vmatpush1.msra.mxu0 0.0
        %834 = vmatprep.subr.mxu0 0.0
        %835 = vmatpush1.msra.mxu0 0.0
        %836 = vmatprep.subr.mxu0 0.0
        %837 = vmatpush1.msra.mxu0 0.0
        %838 = vmatprep.subr.mxu0 0.0
        %839 = vmatpush1.msra.mxu0 0.0
        %840 = vmatprep.subr.mxu0 0.0
        %841 = vmatpush1.msra.mxu0 0.0
        %842 = vmatprep.subr.mxu0 0.0
        %843 = vmatpush1.msra.mxu0 0.0
        %844 = vmatprep.subr.mxu0 0.0
        %845 = vmatpush1.msra.mxu0 0.0
        %846 = vmatprep.subr.mxu0 0.0
        %847 = vmatpush1.msra.mxu0 0.0
        %848 = vmatprep.subr.mxu0 0.0
        %849 = vmatpush1.msra.mxu0 0.0
        %850 = vmatprep.subr.mxu0 0.0
        %851 = vmatpush1.msra.mxu0 0.0
        %852 = vmatprep.subr.mxu0 0.0
        %853 = vmatpush1.msra.mxu0 0.0
        %854 = vmatprep.subr.mxu0 0.0
        %855 = vmatpush1.msra.mxu0 0.0
        %856 = vmatprep.subr.mxu0 0.0
        %857 = vmatpush1.msra.mxu0 0.0
        %858 = vmatprep.subr.mxu0 0.0
        %859 = vmatpush1.msra.mxu0 0.0
        %860 = vmatprep.subr.mxu0 0.0
        %861 = vmatpush1.msra.mxu0 0.0
        %862 = vmatprep.subr.mxu0 0.0
        %863 = vmatpush1.msra.mxu0 0.0
        %864 = vmatprep.subr.mxu0 0.0
        %865 = vmatpush1.msra.mxu0 0.0
        %866 = vmatprep.mubr.f32.mxu0 0.0
        %867 = vmatmul.mubr.f32.gmra.mrb[0].mxu0 %v796
        %v868 = vpop.f32.mrb[0].mxu0
        %v869 = vadd.f32 0.0, %v868
        %v870 = vpop.f32.mrb[0].mxu0
        %871 = vdwg.mxu0
        %v872 = vld [vmem:[%s5] sm:$0xff]
        %v873 = vld [vmem:[%s5 + $0x8] sm:$0xff]
        %s874 = scalar_lea.vmem [#allocation2], 4
        %v875 = vld [vmem:[%s874] sm:$0xf]
        %v877 = vsel %vm794, %v875, 0
        %879 = vmatprep.subr.mxu0 0.0
        %880 = vmatpush1.msra.mxu0 %v788
        %881 = vmatprep.subr.mxu0 0.0
        %882 = vmatpush1.msra.mxu0 %v789
        %883 = vmatprep.subr.mxu0 0.0
        %884 = vmatpush1.msra.mxu0 %v790
        %885 = vmatprep.subr.mxu0 0.0
        %886 = vmatpush1.msra.mxu0 %v791
        %887 = vmatprep.subr.mxu0 0.0
        %888 = vmatpush1.msra.mxu0 %v800
        %889 = vmatprep.subr.mxu0 0.0
        %890 = vmatpush1.msra.mxu0 0.0
        %891 = vmatprep.subr.mxu0 0.0
        %892 = vmatpush1.msra.mxu0 0.0
        %893 = vmatprep.subr.mxu0 0.0
        %894 = vmatpush1.msra.mxu0 0.0
        %895 = vmatprep.subr.mxu0 0.0
        %896 = vmatpush1.msra.mxu0 0.0
        %897 = vmatprep.subr.mxu0 0.0
        %898 = vmatpush1.msra.mxu0 0.0
        %899 = vmatprep.subr.mxu0 0.0
        %900 = vmatpush1.msra.mxu0 0.0
        %901 = vmatprep.subr.mxu0 0.0
        %902 = vmatpush1.msra.mxu0 0.0
        %903 = vmatprep.subr.mxu0 0.0
        %904 = vmatpush1.msra.mxu0 0.0
        %905 = vmatprep.subr.mxu0 0.0
        %906 = vmatpush1.msra.mxu0 0.0
        %907 = vmatprep.subr.mxu0 0.0
        %908 = vmatpush1.msra.mxu0 0.0
        %909 = vmatprep.subr.mxu0 0.0
        %910 = vmatpush1.msra.mxu0 0.0
        %911 = vmatprep.subr.mxu0 0.0
        %912 = vmatpush1.msra.mxu0 0.0
        %913 = vmatprep.subr.mxu0 0.0
        %914 = vmatpush1.msra.mxu0 0.0
        %915 = vmatprep.subr.mxu0 0.0
        %916 = vmatpush1.msra.mxu0 0.0
        %917 = vmatprep.subr.mxu0 0.0
        %918 = vmatpush1.msra.mxu0 0.0
        %919 = vmatprep.subr.mxu0 0.0
        %920 = vmatpush1.msra.mxu0 0.0
        %921 = vmatprep.subr.mxu0 0.0
        %922 = vmatpush1.msra.mxu0 0.0
        %923 = vmatprep.subr.mxu0 0.0
        %924 = vmatpush1.msra.mxu0 0.0
        %925 = vmatprep.subr.mxu0 0.0
        %926 = vmatpush1.msra.mxu0 0.0
        %927 = vmatprep.subr.mxu0 0.0
        %928 = vmatpush1.msra.mxu0 0.0
        %929 = vmatprep.subr.mxu0 0.0
        %930 = vmatpush1.msra.mxu0 0.0
        %931 = vmatprep.subr.mxu0 0.0
        %932 = vmatpush1.msra.mxu0 0.0
        %933 = vmatprep.subr.mxu0 0.0
        %934 = vmatpush1.msra.mxu0 0.0
        %935 = vmatprep.subr.mxu0 0.0
        %936 = vmatpush1.msra.mxu0 0.0
        %937 = vmatprep.subr.mxu0 0.0
        %938 = vmatpush1.msra.mxu0 0.0
        %939 = vmatprep.subr.mxu0 0.0
        %940 = vmatpush1.msra.mxu0 0.0
        %941 = vmatprep.subr.mxu0 0.0
        %942 = vmatpush1.msra.mxu0 0.0
        %943 = vmatprep.mubr.f32.mxu0 0.0
        %944 = vmatmul.mubr.f32.gmra.mrb[0].mxu0 %v877
        %v945 = vpop.f32.mrb[0].mxu0
        %v946 = vadd.f32 0.0, %v945
        %v947 = vpop.f32.mrb[0].mxu0
        %948 = vdwg.mxu0
        %s949 = scalar_lea.vmem %s5, 16
        %v950 = vld [vmem:[%s949] sm:$0xff]
        %v951 = vld [vmem:[%s949 + $0x8] sm:$0xff]
        %vm952 = vcmask 130048
        %v954 = vsel %vm952, %v946, 0
        %956 = vmatprep.subr.mxu0 0.0
        %957 = vmatpush1.msra.mxu0 %v950
        %958 = vmatprep.subr.mxu0 0.0
        %959 = vmatpush1.msra.mxu0 %v951
        %960 = vmatprep.subr.mxu0 0.0
        %961 = vmatpush1.msra.mxu0 0.0
        %962 = vmatprep.subr.mxu0 0.0
        %963 = vmatpush1.msra.mxu0 0.0
        %964 = vmatprep.subr.mxu0 0.0
        %965 = vmatpush1.msra.mxu0 0.0
        %966 = vmatprep.subr.mxu0 0.0
        %967 = vmatpush1.msra.mxu0 0.0
        %968 = vmatprep.subr.mxu0 0.0
        %969 = vmatpush1.msra.mxu0 0.0
        %970 = vmatprep.subr.mxu0 0.0
        %971 = vmatpush1.msra.mxu0 0.0
        %972 = vmatprep.subr.mxu0 0.0
        %973 = vmatpush1.msra.mxu0 0.0
        %974 = vmatprep.subr.mxu0 0.0
        %975 = vmatpush1.msra.mxu0 0.0
        %976 = vmatprep.subr.mxu0 0.0
        %977 = vmatpush1.msra.mxu0 0.0
        %978 = vmatprep.subr.mxu0 0.0
        %979 = vmatpush1.msra.mxu0 0.0
        %980 = vmatprep.subr.mxu0 0.0
        %981 = vmatpush1.msra.mxu0 0.0
        %982 = vmatprep.subr.mxu0 0.0
        %983 = vmatpush1.msra.mxu0 0.0
        %984 = vmatprep.subr.mxu0 0.0
        %985 = vmatpush1.msra.mxu0 0.0
        %986 = vmatprep.subr.mxu0 0.0
        %987 = vmatpush1.msra.mxu0 0.0
        %988 = vmatprep.subr.mxu0 0.0
        %989 = vmatpush1.msra.mxu0 0.0
        %990 = vmatprep.subr.mxu0 0.0
        %991 = vmatpush1.msra.mxu0 0.0
        %992 = vmatprep.subr.mxu0 0.0
        %993 = vmatpush1.msra.mxu0 0.0
        %994 = vmatprep.subr.mxu0 0.0
        %995 = vmatpush1.msra.mxu0 0.0
        %996 = vmatprep.subr.mxu0 0.0
        %997 = vmatpush1.msra.mxu0 0.0
        %998 = vmatprep.subr.mxu0 0.0
        %999 = vmatpush1.msra.mxu0 0.0
        %1000 = vmatprep.subr.mxu0 0.0
        %1001 = vmatpush1.msra.mxu0 0.0
        %1002 = vmatprep.subr.mxu0 0.0
        %1003 = vmatpush1.msra.mxu0 0.0
        %1004 = vmatprep.subr.mxu0 0.0
        %1005 = vmatpush1.msra.mxu0 0.0
        %1006 = vmatprep.subr.mxu0 0.0
        %1007 = vmatpush1.msra.mxu0 0.0
        %1008 = vmatprep.subr.mxu0 0.0
        %1009 = vmatpush1.msra.mxu0 0.0
        %1010 = vmatprep.subr.mxu0 0.0
        %1011 = vmatpush1.msra.mxu0 0.0
        %1012 = vmatprep.subr.mxu0 0.0
        %1013 = vmatpush1.msra.mxu0 0.0
        %1014 = vmatprep.subr.mxu0 0.0
        %1015 = vmatpush1.msra.mxu0 0.0
        %1016 = vmatprep.subr.mxu0 0.0
        %1017 = vmatpush1.msra.mxu0 0.0
        %1018 = vmatprep.subr.mxu0 0.0
        %1019 = vmatpush1.msra.mxu0 0.0
        %1020 = vmatprep.mubr.f32.mxu0 0.0
        %1021 = vmatmul.mubr.f32.gmra.mrb[0].mxu0 %v954
        %v1022 = vpop.f32.mrb[0].mxu0
        %v1023 = vadd.f32 0.0, %v1022
        %v1024 = vpop.f32.mrb[0].mxu0
        %1025 = vdwg.mxu0
        %v1027 = vsel %vm952, %v869, 0
        %1029 = vmatprep.subr.mxu0 0.0
        %1030 = vmatpush1.msra.mxu0 %v872
        %1031 = vmatprep.subr.mxu0 0.0
        %1032 = vmatpush1.msra.mxu0 %v873
        %1033 = vmatprep.subr.mxu0 0.0
        %1034 = vmatpush1.msra.mxu0 0.0
        %1035 = vmatprep.subr.mxu0 0.0
        %1036 = vmatpush1.msra.mxu0 0.0
        %1037 = vmatprep.subr.mxu0 0.0
        %1038 = vmatpush1.msra.mxu0 0.0
        %1039 = vmatprep.subr.mxu0 0.0
        %1040 = vmatpush1.msra.mxu0 0.0
        %1041 = vmatprep.subr.mxu0 0.0
        %1042 = vmatpush1.msra.mxu0 0.0
        %1043 = vmatprep.subr.mxu0 0.0
        %1044 = vmatpush1.msra.mxu0 0.0
        %1045 = vmatprep.subr.mxu0 0.0
        %1046 = vmatpush1.msra.mxu0 0.0
        %1047 = vmatprep.subr.mxu0 0.0
        %1048 = vmatpush1.msra.mxu0 0.0
        %1049 = vmatprep.subr.mxu0 0.0
        %1050 = vmatpush1.msra.mxu0 0.0
        %1051 = vmatprep.subr.mxu0 0.0
        %1052 = vmatpush1.msra.mxu0 0.0
        %1053 = vmatprep.subr.mxu0 0.0
        %1054 = vmatpush1.msra.mxu0 0.0
        %1055 = vmatprep.subr.mxu0 0.0
        %1056 = vmatpush1.msra.mxu0 0.0
        %1057 = vmatprep.subr.mxu0 0.0
        %1058 = vmatpush1.msra.mxu0 0.0
        %1059 = vmatprep.subr.mxu0 0.0
        %1060 = vmatpush1.msra.mxu0 0.0
        %1061 = vmatprep.subr.mxu0 0.0
        %1062 = vmatpush1.msra.mxu0 0.0
        %1063 = vmatprep.subr.mxu0 0.0
        %1064 = vmatpush1.msra.mxu0 0.0
        %1065 = vmatprep.subr.mxu0 0.0
        %1066 = vmatpush1.msra.mxu0 0.0
        %1067 = vmatprep.subr.mxu0 0.0
        %1068 = vmatpush1.msra.mxu0 0.0
        %1069 = vmatprep.subr.mxu0 0.0
        %1070 = vmatpush1.msra.mxu0 0.0
        %1071 = vmatprep.subr.mxu0 0.0
        %1072 = vmatpush1.msra.mxu0 0.0
        %1073 = vmatprep.subr.mxu0 0.0
        %1074 = vmatpush1.msra.mxu0 0.0
        %1075 = vmatprep.subr.mxu0 0.0
        %1076 = vmatpush1.msra.mxu0 0.0
        %1077 = vmatprep.subr.mxu0 0.0
        %1078 = vmatpush1.msra.mxu0 0.0
        %1079 = vmatprep.subr.mxu0 0.0
        %1080 = vmatpush1.msra.mxu0 0.0
        %1081 = vmatprep.subr.mxu0 0.0
        %1082 = vmatpush1.msra.mxu0 0.0
        %1083 = vmatprep.subr.mxu0 0.0
        %1084 = vmatpush1.msra.mxu0 0.0
        %1085 = vmatprep.subr.mxu0 0.0
        %1086 = vmatpush1.msra.mxu0 0.0
        %1087 = vmatprep.subr.mxu0 0.0
        %1088 = vmatpush1.msra.mxu0 0.0
        %1089 = vmatprep.subr.mxu0 0.0
        %1090 = vmatpush1.msra.mxu0 0.0
        %1091 = vmatprep.subr.mxu0 0.0
        %1092 = vmatpush1.msra.mxu0 0.0
        %1093 = vmatprep.mubr.f32.mxu0 0.0
        %1094 = vmatmul.mubr.f32.gmra.mrb[0].mxu0 %v1027
        %v1095 = vpop.f32.mrb[0].mxu0
        %v1096 = vadd.f32 %v1023, %v1095
        %v1097 = vpop.f32.mrb[0].mxu0
        %1098 = vdwg.mxu0
        %s1099 = scalar_lea.vmem [#allocation2], 8
        %v1100 = vld [vmem:[%s1099] sm:$0xf]
        %v1102 = vsel %vm794, %v1100, 0
        %1104 = vmatprep.subr.mxu0 0.0
        %1105 = vmatpush1.msra.mxu0 %v788
        %1106 = vmatprep.subr.mxu0 0.0
        %1107 = vmatpush1.msra.mxu0 %v789
        %1108 = vmatprep.subr.mxu0 0.0
        %1109 = vmatpush1.msra.mxu0 %v790
        %1110 = vmatprep.subr.mxu0 0.0
        %1111 = vmatpush1.msra.mxu0 %v791
        %1112 = vmatprep.subr.mxu0 0.0
        %1113 = vmatpush1.msra.mxu0 %v800
        %1114 = vmatprep.subr.mxu0 0.0
        %1115 = vmatpush1.msra.mxu0 0.0
        %1116 = vmatprep.subr.mxu0 0.0
        %1117 = vmatpush1.msra.mxu0 0.0
        %1118 = vmatprep.subr.mxu0 0.0
        %1119 = vmatpush1.msra.mxu0 0.0
        %1120 = vmatprep.subr.mxu0 0.0
        %1121 = vmatpush1.msra.mxu0 0.0
        %1122 = vmatprep.subr.mxu0 0.0
        %1123 = vmatpush1.msra.mxu0 0.0
        %1124 = vmatprep.subr.mxu0 0.0
        %1125 = vmatpush1.msra.mxu0 0.0
        %1126 = vmatprep.subr.mxu0 0.0
        %1127 = vmatpush1.msra.mxu0 0.0
        %1128 = vmatprep.subr.mxu0 0.0
        %1129 = vmatpush1.msra.mxu0 0.0
        %1130 = vmatprep.subr.mxu0 0.0
        %1131 = vmatpush1.msra.mxu0 0.0
        %1132 = vmatprep.subr.mxu0 0.0
        %1133 = vmatpush1.msra.mxu0 0.0
        %1134 = vmatprep.subr.mxu0 0.0
        %1135 = vmatpush1.msra.mxu0 0.0
        %1136 = vmatprep.subr.mxu0 0.0
        %1137 = vmatpush1.msra.mxu0 0.0
        %1138 = vmatprep.subr.mxu0 0.0
        %1139 = vmatpush1.msra.mxu0 0.0
        %1140 = vmatprep.subr.mxu0 0.0
        %1141 = vmatpush1.msra.mxu0 0.0
        %1142 = vmatprep.subr.mxu0 0.0
        %1143 = vmatpush1.msra.mxu0 0.0
        %1144 = vmatprep.subr.mxu0 0.0
        %1145 = vmatpush1.msra.mxu0 0.0
        %1146 = vmatprep.subr.mxu0 0.0
        %1147 = vmatpush1.msra.mxu0 0.0
        %1148 = vmatprep.subr.mxu0 0.0
        %1149 = vmatpush1.msra.mxu0 0.0
        %1150 = vmatprep.subr.mxu0 0.0
        %1151 = vmatpush1.msra.mxu0 0.0
        %1152 = vmatprep.subr.mxu0 0.0
        %1153 = vmatpush1.msra.mxu0 0.0
        %1154 = vmatprep.subr.mxu0 0.0
        %1155 = vmatpush1.msra.mxu0 0.0
        %1156 = vmatprep.subr.mxu0 0.0
        %1157 = vmatpush1.msra.mxu0 0.0
        %1158 = vmatprep.subr.mxu0 0.0
        %1159 = vmatpush1.msra.mxu0 0.0
        %1160 = vmatprep.subr.mxu0 0.0
        %1161 = vmatpush1.msra.mxu0 0.0
        %1162 = vmatprep.subr.mxu0 0.0
        %1163 = vmatpush1.msra.mxu0 0.0
        %1164 = vmatprep.subr.mxu0 0.0
        %1165 = vmatpush1.msra.mxu0 0.0
        %1166 = vmatprep.subr.mxu0 0.0
        %1167 = vmatpush1.msra.mxu0 0.0
        %1168 = vmatprep.mubr.f32.mxu0 0.0
        %1169 = vmatmul.mubr.f32.gmra.mrb[0].mxu0 %v1102
        %v1170 = vpop.f32.mrb[0].mxu0
        %v1171 = vadd.f32 0.0, %v1170
        %v1172 = vpop.f32.mrb[0].mxu0
        %1173 = vdwg.mxu0
        %s1174 = scalar_lea.vmem %s5, 32
        %v1175 = vld [vmem:[%s1174] sm:$0xff]
        %v1176 = vld [vmem:[%s1174 + $0x8] sm:$0xff]
        %v1178 = vsel %vm952, %v1171, 0
        %1180 = vmatprep.subr.mxu0 0.0
        %1181 = vmatpush1.msra.mxu0 %v1175
        %1182 = vmatprep.subr.mxu0 0.0
        %1183 = vmatpush1.msra.mxu0 %v1176
        %1184 = vmatprep.subr.mxu0 0.0
        %1185 = vmatpush1.msra.mxu0 0.0
        %1186 = vmatprep.subr.mxu0 0.0
        %1187 = vmatpush1.msra.mxu0 0.0
        %1188 = vmatprep.subr.mxu0 0.0
        %1189 = vmatpush1.msra.mxu0 0.0
        %1190 = vmatprep.subr.mxu0 0.0
        %1191 = vmatpush1.msra.mxu0 0.0
        %1192 = vmatprep.subr.mxu0 0.0
        %1193 = vmatpush1.msra.mxu0 0.0
        %1194 = vmatprep.subr.mxu0 0.0
        %1195 = vmatpush1.msra.mxu0 0.0
        %1196 = vmatprep.subr.mxu0 0.0
        %1197 = vmatpush1.msra.mxu0 0.0
        %1198 = vmatprep.subr.mxu0 0.0
        %1199 = vmatpush1.msra.mxu0 0.0
        %1200 = vmatprep.subr.mxu0 0.0
        %1201 = vmatpush1.msra.mxu0 0.0
        %1202 = vmatprep.subr.mxu0 0.0
        %1203 = vmatpush1.msra.mxu0 0.0
        %1204 = vmatprep.subr.mxu0 0.0
        %1205 = vmatpush1.msra.mxu0 0.0
        %1206 = vmatprep.subr.mxu0 0.0
        %1207 = vmatpush1.msra.mxu0 0.0
        %1208 = vmatprep.subr.mxu0 0.0
        %1209 = vmatpush1.msra.mxu0 0.0
        %1210 = vmatprep.subr.mxu0 0.0
        %1211 = vmatpush1.msra.mxu0 0.0
        %1212 = vmatprep.subr.mxu0 0.0
        %1213 = vmatpush1.msra.mxu0 0.0
        %1214 = vmatprep.subr.mxu0 0.0
        %1215 = vmatpush1.msra.mxu0 0.0
        %1216 = vmatprep.subr.mxu0 0.0
        %1217 = vmatpush1.msra.mxu0 0.0
        %1218 = vmatprep.subr.mxu0 0.0
        %1219 = vmatpush1.msra.mxu0 0.0
        %1220 = vmatprep.subr.mxu0 0.0
        %1221 = vmatpush1.msra.mxu0 0.0
        %1222 = vmatprep.subr.mxu0 0.0
        %1223 = vmatpush1.msra.mxu0 0.0
        %1224 = vmatprep.subr.mxu0 0.0
        %1225 = vmatpush1.msra.mxu0 0.0
        %1226 = vmatprep.subr.mxu0 0.0
        %1227 = vmatpush1.msra.mxu0 0.0
        %1228 = vmatprep.subr.mxu0 0.0
        %1229 = vmatpush1.msra.mxu0 0.0
        %1230 = vmatprep.subr.mxu0 0.0
        %1231 = vmatpush1.msra.mxu0 0.0
        %1232 = vmatprep.subr.mxu0 0.0
        %1233 = vmatpush1.msra.mxu0 0.0
        %1234 = vmatprep.subr.mxu0 0.0
        %1235 = vmatpush1.msra.mxu0 0.0
        %1236 = vmatprep.subr.mxu0 0.0
        %1237 = vmatpush1.msra.mxu0 0.0
        %1238 = vmatprep.subr.mxu0 0.0
        %1239 = vmatpush1.msra.mxu0 0.0
        %1240 = vmatprep.subr.mxu0 0.0
        %1241 = vmatpush1.msra.mxu0 0.0
        %1242 = vmatprep.subr.mxu0 0.0
        %1243 = vmatpush1.msra.mxu0 0.0
        %1244 = vmatprep.mubr.f32.mxu0 0.0
        %1245 = vmatmul.mubr.f32.gmra.mrb[0].mxu0 %v1178
        %v1246 = vpop.f32.mrb[0].mxu0
        %v1247 = vadd.f32 0.0, %v1246
        %v1248 = vpop.f32.mrb[0].mxu0
        %1249 = vdwg.mxu0
        %v1250 = vadd.f32 %v1096, %v1247
        %s1251 = scalar_lea.vmem [#allocation2], 12
        %v1252 = vld [vmem:[%s1251] sm:$0xf]
        %v1254 = vsel %vm794, %v1252, 0
        %1256 = vmatprep.subr.mxu0 0.0
        %1257 = vmatpush1.msra.mxu0 %v788
        %1258 = vmatprep.subr.mxu0 0.0
        %1259 = vmatpush1.msra.mxu0 %v789
        %1260 = vmatprep.subr.mxu0 0.0
        %1261 = vmatpush1.msra.mxu0 %v790
        %1262 = vmatprep.subr.mxu0 0.0
        %1263 = vmatpush1.msra.mxu0 %v791
        %1264 = vmatprep.subr.mxu0 0.0
        %1265 = vmatpush1.msra.mxu0 %v800
        %1266 = vmatprep.subr.mxu0 0.0
        %1267 = vmatpush1.msra.mxu0 0.0
        %1268 = vmatprep.subr.mxu0 0.0
        %1269 = vmatpush1.msra.mxu0 0.0
        %1270 = vmatprep.subr.mxu0 0.0
        %1271 = vmatpush1.msra.mxu0 0.0
        %1272 = vmatprep.subr.mxu0 0.0
        %1273 = vmatpush1.msra.mxu0 0.0
        %1274 = vmatprep.subr.mxu0 0.0
        %1275 = vmatpush1.msra.mxu0 0.0
        %1276 = vmatprep.subr.mxu0 0.0
        %1277 = vmatpush1.msra.mxu0 0.0
        %1278 = vmatprep.subr.mxu0 0.0
        %1279 = vmatpush1.msra.mxu0 0.0
        %1280 = vmatprep.subr.mxu0 0.0
        %1281 = vmatpush1.msra.mxu0 0.0
        %1282 = vmatprep.subr.mxu0 0.0
        %1283 = vmatpush1.msra.mxu0 0.0
        %1284 = vmatprep.subr.mxu0 0.0
        %1285 = vmatpush1.msra.mxu0 0.0
        %1286 = vmatprep.subr.mxu0 0.0
        %1287 = vmatpush1.msra.mxu0 0.0
        %1288 = vmatprep.subr.mxu0 0.0
        %1289 = vmatpush1.msra.mxu0 0.0
        %1290 = vmatprep.subr.mxu0 0.0
        %1291 = vmatpush1.msra.mxu0 0.0
        %1292 = vmatprep.subr.mxu0 0.0
        %1293 = vmatpush1.msra.mxu0 0.0
        %1294 = vmatprep.subr.mxu0 0.0
        %1295 = vmatpush1.msra.mxu0 0.0
        %1296 = vmatprep.subr.mxu0 0.0
        %1297 = vmatpush1.msra.mxu0 0.0
        %1298 = vmatprep.subr.mxu0 0.0
        %1299 = vmatpush1.msra.mxu0 0.0
        %1300 = vmatprep.subr.mxu0 0.0
        %1301 = vmatpush1.msra.mxu0 0.0
        %1302 = vmatprep.subr.mxu0 0.0
        %1303 = vmatpush1.msra.mxu0 0.0
        %1304 = vmatprep.subr.mxu0 0.0
        %1305 = vmatpush1.msra.mxu0 0.0
        %1306 = vmatprep.subr.mxu0 0.0
        %1307 = vmatpush1.msra.mxu0 0.0
        %1308 = vmatprep.subr.mxu0 0.0
        %1309 = vmatpush1.msra.mxu0 0.0
        %1310 = vmatprep.subr.mxu0 0.0
        %1311 = vmatpush1.msra.mxu0 0.0
        %1312 = vmatprep.subr.mxu0 0.0
        %1313 = vmatpush1.msra.mxu0 0.0
        %1314 = vmatprep.subr.mxu0 0.0
        %1315 = vmatpush1.msra.mxu0 0.0
        %1316 = vmatprep.subr.mxu0 0.0
        %1317 = vmatpush1.msra.mxu0 0.0
        %1318 = vmatprep.subr.mxu0 0.0
        %1319 = vmatpush1.msra.mxu0 0.0
        %1320 = vmatprep.mubr.f32.mxu0 0.0
        %1321 = vmatmul.mubr.f32.gmra.mrb[0].mxu0 %v1254
        %v1322 = vpop.f32.mrb[0].mxu0
        %v1323 = vadd.f32 0.0, %v1322
        %v1324 = vpop.f32.mrb[0].mxu0
        %1325 = vdwg.mxu0
        %s1326 = scalar_lea.vmem %s5, 48
        %v1327 = vld [vmem:[%s1326] sm:$0xff]
        %v1328 = vld [vmem:[%s1326 + $0x8] sm:$0xff]
        %v1330 = vsel %vm952, %v1323, 0
        %1332 = vmatprep.subr.mxu0 0.0
        %1333 = vmatpush1.msra.mxu0 %v1327
        %1334 = vmatprep.subr.mxu0 0.0
        %1335 = vmatpush1.msra.mxu0 %v1328
        %1336 = vmatprep.subr.mxu0 0.0
        %1337 = vmatpush1.msra.mxu0 0.0
        %1338 = vmatprep.subr.mxu0 0.0
        %1339 = vmatpush1.msra.mxu0 0.0
        %1340 = vmatprep.subr.mxu0 0.0
        %1341 = vmatpush1.msra.mxu0 0.0
        %1342 = vmatprep.subr.mxu0 0.0
        %1343 = vmatpush1.msra.mxu0 0.0
        %1344 = vmatprep.subr.mxu0 0.0
        %1345 = vmatpush1.msra.mxu0 0.0
        %1346 = vmatprep.subr.mxu0 0.0
        %1347 = vmatpush1.msra.mxu0 0.0
        %1348 = vmatprep.subr.mxu0 0.0
        %1349 = vmatpush1.msra.mxu0 0.0
        %1350 = vmatprep.subr.mxu0 0.0
        %1351 = vmatpush1.msra.mxu0 0.0
        %1352 = vmatprep.subr.mxu0 0.0
        %1353 = vmatpush1.msra.mxu0 0.0
        %1354 = vmatprep.subr.mxu0 0.0
        %1355 = vmatpush1.msra.mxu0 0.0
        %1356 = vmatprep.subr.mxu0 0.0
        %1357 = vmatpush1.msra.mxu0 0.0
        %1358 = vmatprep.subr.mxu0 0.0
        %1359 = vmatpush1.msra.mxu0 0.0
        %1360 = vmatprep.subr.mxu0 0.0
        %1361 = vmatpush1.msra.mxu0 0.0
        %1362 = vmatprep.subr.mxu0 0.0
        %1363 = vmatpush1.msra.mxu0 0.0
        %1364 = vmatprep.subr.mxu0 0.0
        %1365 = vmatpush1.msra.mxu0 0.0
        %1366 = vmatprep.subr.mxu0 0.0
        %1367 = vmatpush1.msra.mxu0 0.0
        %1368 = vmatprep.subr.mxu0 0.0
        %1369 = vmatpush1.msra.mxu0 0.0
        %1370 = vmatprep.subr.mxu0 0.0
        %1371 = vmatpush1.msra.mxu0 0.0
        %1372 = vmatprep.subr.mxu0 0.0
        %1373 = vmatpush1.msra.mxu0 0.0
        %1374 = vmatprep.subr.mxu0 0.0
        %1375 = vmatpush1.msra.mxu0 0.0
        %1376 = vmatprep.subr.mxu0 0.0
        %1377 = vmatpush1.msra.mxu0 0.0
        %1378 = vmatprep.subr.mxu0 0.0
        %1379 = vmatpush1.msra.mxu0 0.0
        %1380 = vmatprep.subr.mxu0 0.0
        %1381 = vmatpush1.msra.mxu0 0.0
        %1382 = vmatprep.subr.mxu0 0.0
        %1383 = vmatpush1.msra.mxu0 0.0
        %1384 = vmatprep.subr.mxu0 0.0
        %1385 = vmatpush1.msra.mxu0 0.0
        %1386 = vmatprep.subr.mxu0 0.0
        %1387 = vmatpush1.msra.mxu0 0.0
        %1388 = vmatprep.subr.mxu0 0.0
        %1389 = vmatpush1.msra.mxu0 0.0
        %1390 = vmatprep.subr.mxu0 0.0
        %1391 = vmatpush1.msra.mxu0 0.0
        %1392 = vmatprep.subr.mxu0 0.0
        %1393 = vmatpush1.msra.mxu0 0.0
        %1394 = vmatprep.subr.mxu0 0.0
        %1395 = vmatpush1.msra.mxu0 0.0
        %1396 = vmatprep.mubr.f32.mxu0 0.0
        %1397 = vmatmul.mubr.f32.gmra.mrb[0].mxu0 %v1330
        %v1398 = vpop.f32.mrb[0].mxu0
        %v1399 = vadd.f32 0.0, %v1398
        %v1400 = vpop.f32.mrb[0].mxu0
        %1401 = vdwg.mxu0
        %v1402 = vadd.f32 %v1250, %v1399
        %s1403 = scalar_lea.vmem [#allocation2], 16
        %v1404 = vld [vmem:[%s1403] sm:$0xf]
        %v1406 = vsel %vm794, %v1404, 0
        %1408 = vmatprep.subr.mxu0 0.0
        %1409 = vmatpush1.msra.mxu0 %v788
        %1410 = vmatprep.subr.mxu0 0.0
        %1411 = vmatpush1.msra.mxu0 %v789
        %1412 = vmatprep.subr.mxu0 0.0
        %1413 = vmatpush1.msra.mxu0 %v790
        %1414 = vmatprep.subr.mxu0 0.0
        %1415 = vmatpush1.msra.mxu0 %v791
        %1416 = vmatprep.subr.mxu0 0.0
        %1417 = vmatpush1.msra.mxu0 %v800
        %1418 = vmatprep.subr.mxu0 0.0
        %1419 = vmatpush1.msra.mxu0 0.0
        %1420 = vmatprep.subr.mxu0 0.0
        %1421 = vmatpush1.msra.mxu0 0.0
        %1422 = vmatprep.subr.mxu0 0.0
        %1423 = vmatpush1.msra.mxu0 0.0
        %1424 = vmatprep.subr.mxu0 0.0
        %1425 = vmatpush1.msra.mxu0 0.0
        %1426 = vmatprep.subr.mxu0 0.0
        %1427 = vmatpush1.msra.mxu0 0.0
        %1428 = vmatprep.subr.mxu0 0.0
        %1429 = vmatpush1.msra.mxu0 0.0
        %1430 = vmatprep.subr.mxu0 0.0
        %1431 = vmatpush1.msra.mxu0 0.0
        %1432 = vmatprep.subr.mxu0 0.0
        %1433 = vmatpush1.msra.mxu0 0.0
        %1434 = vmatprep.subr.mxu0 0.0
        %1435 = vmatpush1.msra.mxu0 0.0
        %1436 = vmatprep.subr.mxu0 0.0
        %1437 = vmatpush1.msra.mxu0 0.0
        %1438 = vmatprep.subr.mxu0 0.0
        %1439 = vmatpush1.msra.mxu0 0.0
        %1440 = vmatprep.subr.mxu0 0.0
        %1441 = vmatpush1.msra.mxu0 0.0
        %1442 = vmatprep.subr.mxu0 0.0
        %1443 = vmatpush1.msra.mxu0 0.0
        %1444 = vmatprep.subr.mxu0 0.0
        %1445 = vmatpush1.msra.mxu0 0.0
        %1446 = vmatprep.subr.mxu0 0.0
        %1447 = vmatpush1.msra.mxu0 0.0
        %1448 = vmatprep.subr.mxu0 0.0
        %1449 = vmatpush1.msra.mxu0 0.0
        %1450 = vmatprep.subr.mxu0 0.0
        %1451 = vmatpush1.msra.mxu0 0.0
        %1452 = vmatprep.subr.mxu0 0.0
        %1453 = vmatpush1.msra.mxu0 0.0
        %1454 = vmatprep.subr.mxu0 0.0
        %1455 = vmatpush1.msra.mxu0 0.0
        %1456 = vmatprep.subr.mxu0 0.0
        %1457 = vmatpush1.msra.mxu0 0.0
        %1458 = vmatprep.subr.mxu0 0.0
        %1459 = vmatpush1.msra.mxu0 0.0
        %1460 = vmatprep.subr.mxu0 0.0
        %1461 = vmatpush1.msra.mxu0 0.0
        %1462 = vmatprep.subr.mxu0 0.0
        %1463 = vmatpush1.msra.mxu0 0.0
        %1464 = vmatprep.subr.mxu0 0.0
        %1465 = vmatpush1.msra.mxu0 0.0
        %1466 = vmatprep.subr.mxu0 0.0
        %1467 = vmatpush1.msra.mxu0 0.0
        %1468 = vmatprep.subr.mxu0 0.0
        %1469 = vmatpush1.msra.mxu0 0.0
        %1470 = vmatprep.subr.mxu0 0.0
        %1471 = vmatpush1.msra.mxu0 0.0
        %1472 = vmatprep.mubr.f32.mxu0 0.0
        %1473 = vmatmul.mubr.f32.gmra.mrb[0].mxu0 %v1406
        %v1474 = vpop.f32.mrb[0].mxu0
        %v1475 = vadd.f32 0.0, %v1474
        %v1476 = vpop.f32.mrb[0].mxu0
        %1477 = vdwg.mxu0
        %s1478 = scalar_lea.vmem %s5, 64
        %v1479 = vld [vmem:[%s1478] sm:$0xff]
        %v1480 = vld [vmem:[%s1478 + $0x8] sm:$0xff]
        %v1482 = vsel %vm952, %v1475, 0
        %1484 = vmatprep.subr.mxu0 0.0
        %1485 = vmatpush1.msra.mxu0 %v1479
        %1486 = vmatprep.subr.mxu0 0.0
        %1487 = vmatpush1.msra.mxu0 %v1480
        %1488 = vmatprep.subr.mxu0 0.0
        %1489 = vmatpush1.msra.mxu0 0.0
        %1490 = vmatprep.subr.mxu0 0.0
        %1491 = vmatpush1.msra.mxu0 0.0
        %1492 = vmatprep.subr.mxu0 0.0
        %1493 = vmatpush1.msra.mxu0 0.0
        %1494 = vmatprep.subr.mxu0 0.0
        %1495 = vmatpush1.msra.mxu0 0.0
        %1496 = vmatprep.subr.mxu0 0.0
        %1497 = vmatpush1.msra.mxu0 0.0
        %1498 = vmatprep.subr.mxu0 0.0
        %1499 = vmatpush1.msra.mxu0 0.0
        %1500 = vmatprep.subr.mxu0 0.0
        %1501 = vmatpush1.msra.mxu0 0.0
        %1502 = vmatprep.subr.mxu0 0.0
        %1503 = vmatpush1.msra.mxu0 0.0
        %1504 = vmatprep.subr.mxu0 0.0
        %1505 = vmatpush1.msra.mxu0 0.0
        %1506 = vmatprep.subr.mxu0 0.0
        %1507 = vmatpush1.msra.mxu0 0.0
        %1508 = vmatprep.subr.mxu0 0.0
        %1509 = vmatpush1.msra.mxu0 0.0
        %1510 = vmatprep.subr.mxu0 0.0
        %1511 = vmatpush1.msra.mxu0 0.0
        %1512 = vmatprep.subr.mxu0 0.0
        %1513 = vmatpush1.msra.mxu0 0.0
        %1514 = vmatprep.subr.mxu0 0.0
        %1515 = vmatpush1.msra.mxu0 0.0
        %1516 = vmatprep.subr.mxu0 0.0
        %1517 = vmatpush1.msra.mxu0 0.0
        %1518 = vmatprep.subr.mxu0 0.0
        %1519 = vmatpush1.msra.mxu0 0.0
        %1520 = vmatprep.subr.mxu0 0.0
        %1521 = vmatpush1.msra.mxu0 0.0
        %1522 = vmatprep.subr.mxu0 0.0
        %1523 = vmatpush1.msra.mxu0 0.0
        %1524 = vmatprep.subr.mxu0 0.0
        %1525 = vmatpush1.msra.mxu0 0.0
        %1526 = vmatprep.subr.mxu0 0.0
        %1527 = vmatpush1.msra.mxu0 0.0
        %1528 = vmatprep.subr.mxu0 0.0
        %1529 = vmatpush1.msra.mxu0 0.0
        %1530 = vmatprep.subr.mxu0 0.0
        %1531 = vmatpush1.msra.mxu0 0.0
        %1532 = vmatprep.subr.mxu0 0.0
        %1533 = vmatpush1.msra.mxu0 0.0
        %1534 = vmatprep.subr.mxu0 0.0
        %1535 = vmatpush1.msra.mxu0 0.0
        %1536 = vmatprep.subr.mxu0 0.0
        %1537 = vmatpush1.msra.mxu0 0.0
        %1538 = vmatprep.subr.mxu0 0.0
        %1539 = vmatpush1.msra.mxu0 0.0
        %1540 = vmatprep.subr.mxu0 0.0
        %1541 = vmatpush1.msra.mxu0 0.0
        %1542 = vmatprep.subr.mxu0 0.0
        %1543 = vmatpush1.msra.mxu0 0.0
        %1544 = vmatprep.subr.mxu0 0.0
        %1545 = vmatpush1.msra.mxu0 0.0
        %1546 = vmatprep.subr.mxu0 0.0
        %1547 = vmatpush1.msra.mxu0 0.0
        %1548 = vmatprep.mubr.f32.mxu0 0.0
        %1549 = vmatmul.mubr.f32.gmra.mrb[0].mxu0 %v1482
        %v1550 = vpop.f32.mrb[0].mxu0
        %v1551 = vadd.f32 0.0, %v1550
        %v1552 = vpop.f32.mrb[0].mxu0
        %1553 = vdwg.mxu0
        %v1554 = vadd.f32 %v1402, %v1551
        %s1555 = scalar_lea.vmem [#allocation2], 20
        %v1556 = vld [vmem:[%s1555] sm:$0xf]
        %v1558 = vsel %vm794, %v1556, 0
        %1560 = vmatprep.subr.mxu0 0.0
        %1561 = vmatpush1.msra.mxu0 %v788
        %1562 = vmatprep.subr.mxu0 0.0
        %1563 = vmatpush1.msra.mxu0 %v789
        %1564 = vmatprep.subr.mxu0 0.0
        %1565 = vmatpush1.msra.mxu0 %v790
        %1566 = vmatprep.subr.mxu0 0.0
        %1567 = vmatpush1.msra.mxu0 %v791
        %1568 = vmatprep.subr.mxu0 0.0
        %1569 = vmatpush1.msra.mxu0 %v800
        %1570 = vmatprep.subr.mxu0 0.0
        %1571 = vmatpush1.msra.mxu0 0.0
        %1572 = vmatprep.subr.mxu0 0.0
        %1573 = vmatpush1.msra.mxu0 0.0
        %1574 = vmatprep.subr.mxu0 0.0
        %1575 = vmatpush1.msra.mxu0 0.0
        %1576 = vmatprep.subr.mxu0 0.0
        %1577 = vmatpush1.msra.mxu0 0.0
        %1578 = vmatprep.subr.mxu0 0.0
        %1579 = vmatpush1.msra.mxu0 0.0
        %1580 = vmatprep.subr.mxu0 0.0
        %1581 = vmatpush1.msra.mxu0 0.0
        %1582 = vmatprep.subr.mxu0 0.0
        %1583 = vmatpush1.msra.mxu0 0.0
        %1584 = vmatprep.subr.mxu0 0.0
        %1585 = vmatpush1.msra.mxu0 0.0
        %1586 = vmatprep.subr.mxu0 0.0
        %1587 = vmatpush1.msra.mxu0 0.0
        %1588 = vmatprep.subr.mxu0 0.0
        %1589 = vmatpush1.msra.mxu0 0.0
        %1590 = vmatprep.subr.mxu0 0.0
        %1591 = vmatpush1.msra.mxu0 0.0
        %1592 = vmatprep.subr.mxu0 0.0
        %1593 = vmatpush1.msra.mxu0 0.0
        %1594 = vmatprep.subr.mxu0 0.0
        %1595 = vmatpush1.msra.mxu0 0.0
        %1596 = vmatprep.subr.mxu0 0.0
        %1597 = vmatpush1.msra.mxu0 0.0
        %1598 = vmatprep.subr.mxu0 0.0
        %1599 = vmatpush1.msra.mxu0 0.0
        %1600 = vmatprep.subr.mxu0 0.0
        %1601 = vmatpush1.msra.mxu0 0.0
        %1602 = vmatprep.subr.mxu0 0.0
        %1603 = vmatpush1.msra.mxu0 0.0
        %1604 = vmatprep.subr.mxu0 0.0
        %1605 = vmatpush1.msra.mxu0 0.0
        %1606 = vmatprep.subr.mxu0 0.0
        %1607 = vmatpush1.msra.mxu0 0.0
        %1608 = vmatprep.subr.mxu0 0.0
        %1609 = vmatpush1.msra.mxu0 0.0
        %1610 = vmatprep.subr.mxu0 0.0
        %1611 = vmatpush1.msra.mxu0 0.0
        %1612 = vmatprep.subr.mxu0 0.0
        %1613 = vmatpush1.msra.mxu0 0.0
        %1614 = vmatprep.subr.mxu0 0.0
        %1615 = vmatpush1.msra.mxu0 0.0
        %1616 = vmatprep.subr.mxu0 0.0
        %1617 = vmatpush1.msra.mxu0 0.0
        %1618 = vmatprep.subr.mxu0 0.0
        %1619 = vmatpush1.msra.mxu0 0.0
        %1620 = vmatprep.subr.mxu0 0.0
        %1621 = vmatpush1.msra.mxu0 0.0
        %1622 = vmatprep.subr.mxu0 0.0
        %1623 = vmatpush1.msra.mxu0 0.0
        %1624 = vmatprep.mubr.f32.mxu0 0.0
        %1625 = vmatmul.mubr.f32.gmra.mrb[0].mxu0 %v1558
        %v1626 = vpop.f32.mrb[0].mxu0
        %v1627 = vadd.f32 0.0, %v1626
        %v1628 = vpop.f32.mrb[0].mxu0
        %1629 = vdwg.mxu0
        %s1630 = scalar_lea.vmem %s5, 80
        %v1631 = vld [vmem:[%s1630] sm:$0xff]
        %v1632 = vld [vmem:[%s1630 + $0x8] sm:$0xff]
        %v1634 = vsel %vm952, %v1627, 0
        %1636 = vmatprep.subr.mxu0 0.0
        %1637 = vmatpush1.msra.mxu0 %v1631
        %1638 = vmatprep.subr.mxu0 0.0
        %1639 = vmatpush1.msra.mxu0 %v1632
        %1640 = vmatprep.subr.mxu0 0.0
        %1641 = vmatpush1.msra.mxu0 0.0
        %1642 = vmatprep.subr.mxu0 0.0
        %1643 = vmatpush1.msra.mxu0 0.0
        %1644 = vmatprep.subr.mxu0 0.0
        %1645 = vmatpush1.msra.mxu0 0.0
        %1646 = vmatprep.subr.mxu0 0.0
        %1647 = vmatpush1.msra.mxu0 0.0
        %1648 = vmatprep.subr.mxu0 0.0
        %1649 = vmatpush1.msra.mxu0 0.0
        %1650 = vmatprep.subr.mxu0 0.0
        %1651 = vmatpush1.msra.mxu0 0.0
        %1652 = vmatprep.subr.mxu0 0.0
        %1653 = vmatpush1.msra.mxu0 0.0
        %1654 = vmatprep.subr.mxu0 0.0
        %1655 = vmatpush1.msra.mxu0 0.0
        %1656 = vmatprep.subr.mxu0 0.0
        %1657 = vmatpush1.msra.mxu0 0.0
        %1658 = vmatprep.subr.mxu0 0.0
        %1659 = vmatpush1.msra.mxu0 0.0
        %1660 = vmatprep.subr.mxu0 0.0
        %1661 = vmatpush1.msra.mxu0 0.0
        %1662 = vmatprep.subr.mxu0 0.0
        %1663 = vmatpush1.msra.mxu0 0.0
        %1664 = vmatprep.subr.mxu0 0.0
        %1665 = vmatpush1.msra.mxu0 0.0
        %1666 = vmatprep.subr.mxu0 0.0
        %1667 = vmatpush1.msra.mxu0 0.0
        %1668 = vmatprep.subr.mxu0 0.0
        %1669 = vmatpush1.msra.mxu0 0.0
        %1670 = vmatprep.subr.mxu0 0.0
        %1671 = vmatpush1.msra.mxu0 0.0
        %1672 = vmatprep.subr.mxu0 0.0
        %1673 = vmatpush1.msra.mxu0 0.0
        %1674 = vmatprep.subr.mxu0 0.0
        %1675 = vmatpush1.msra.mxu0 0.0
        %1676 = vmatprep.subr.mxu0 0.0
        %1677 = vmatpush1.msra.mxu0 0.0
        %1678 = vmatprep.subr.mxu0 0.0
        %1679 = vmatpush1.msra.mxu0 0.0
        %1680 = vmatprep.subr.mxu0 0.0
        %1681 = vmatpush1.msra.mxu0 0.0
        %1682 = vmatprep.subr.mxu0 0.0
        %1683 = vmatpush1.msra.mxu0 0.0
        %1684 = vmatprep.subr.mxu0 0.0
        %1685 = vmatpush1.msra.mxu0 0.0
        %1686 = vmatprep.subr.mxu0 0.0
        %1687 = vmatpush1.msra.mxu0 0.0
        %1688 = vmatprep.subr.mxu0 0.0
        %1689 = vmatpush1.msra.mxu0 0.0
        %1690 = vmatprep.subr.mxu0 0.0
        %1691 = vmatpush1.msra.mxu0 0.0
        %1692 = vmatprep.subr.mxu0 0.0
        %1693 = vmatpush1.msra.mxu0 0.0
        %1694 = vmatprep.subr.mxu0 0.0
        %1695 = vmatpush1.msra.mxu0 0.0
        %1696 = vmatprep.subr.mxu0 0.0
        %1697 = vmatpush1.msra.mxu0 0.0
        %1698 = vmatprep.subr.mxu0 0.0
        %1699 = vmatpush1.msra.mxu0 0.0
        %1700 = vmatprep.mubr.f32.mxu0 0.0
        %1701 = vmatmul.mubr.f32.gmra.mrb[0].mxu0 %v1634
        %v1702 = vpop.f32.mrb[0].mxu0
        %v1703 = vadd.f32 0.0, %v1702
        %v1704 = vpop.f32.mrb[0].mxu0
        %1705 = vdwg.mxu0
        %v1706 = vadd.f32 %v1554, %v1703
        %s1707 = scalar_lea.vmem [#allocation2], 24
        %v1708 = vld [vmem:[%s1707] sm:$0xf]
        %v1710 = vsel %vm794, %v1708, 0
        %1712 = vmatprep.subr.mxu0 0.0
        %1713 = vmatpush1.msra.mxu0 %v788
        %1714 = vmatprep.subr.mxu0 0.0
        %1715 = vmatpush1.msra.mxu0 %v789
        %1716 = vmatprep.subr.mxu0 0.0
        %1717 = vmatpush1.msra.mxu0 %v790
        %1718 = vmatprep.subr.mxu0 0.0
        %1719 = vmatpush1.msra.mxu0 %v791
        %1720 = vmatprep.subr.mxu0 0.0
        %1721 = vmatpush1.msra.mxu0 %v800
        %1722 = vmatprep.subr.mxu0 0.0
        %1723 = vmatpush1.msra.mxu0 0.0
        %1724 = vmatprep.subr.mxu0 0.0
        %1725 = vmatpush1.msra.mxu0 0.0
        %1726 = vmatprep.subr.mxu0 0.0
        %1727 = vmatpush1.msra.mxu0 0.0
        %1728 = vmatprep.subr.mxu0 0.0
        %1729 = vmatpush1.msra.mxu0 0.0
        %1730 = vmatprep.subr.mxu0 0.0
        %1731 = vmatpush1.msra.mxu0 0.0
        %1732 = vmatprep.subr.mxu0 0.0
        %1733 = vmatpush1.msra.mxu0 0.0
        %1734 = vmatprep.subr.mxu0 0.0
        %1735 = vmatpush1.msra.mxu0 0.0
        %1736 = vmatprep.subr.mxu0 0.0
        %1737 = vmatpush1.msra.mxu0 0.0
        %1738 = vmatprep.subr.mxu0 0.0
        %1739 = vmatpush1.msra.mxu0 0.0
        %1740 = vmatprep.subr.mxu0 0.0
        %1741 = vmatpush1.msra.mxu0 0.0
        %1742 = vmatprep.subr.mxu0 0.0
        %1743 = vmatpush1.msra.mxu0 0.0
        %1744 = vmatprep.subr.mxu0 0.0
        %1745 = vmatpush1.msra.mxu0 0.0
        %1746 = vmatprep.subr.mxu0 0.0
        %1747 = vmatpush1.msra.mxu0 0.0
        %1748 = vmatprep.subr.mxu0 0.0
        %1749 = vmatpush1.msra.mxu0 0.0
        %1750 = vmatprep.subr.mxu0 0.0
        %1751 = vmatpush1.msra.mxu0 0.0
        %1752 = vmatprep.subr.mxu0 0.0
        %1753 = vmatpush1.msra.mxu0 0.0
        %1754 = vmatprep.subr.mxu0 0.0
        %1755 = vmatpush1.msra.mxu0 0.0
        %1756 = vmatprep.subr.mxu0 0.0
        %1757 = vmatpush1.msra.mxu0 0.0
        %1758 = vmatprep.subr.mxu0 0.0
        %1759 = vmatpush1.msra.mxu0 0.0
        %1760 = vmatprep.subr.mxu0 0.0
        %1761 = vmatpush1.msra.mxu0 0.0
        %1762 = vmatprep.subr.mxu0 0.0
        %1763 = vmatpush1.msra.mxu0 0.0
        %1764 = vmatprep.subr.mxu0 0.0
        %1765 = vmatpush1.msra.mxu0 0.0
        %1766 = vmatprep.subr.mxu0 0.0
        %1767 = vmatpush1.msra.mxu0 0.0
        %1768 = vmatprep.subr.mxu0 0.0
        %1769 = vmatpush1.msra.mxu0 0.0
        %1770 = vmatprep.subr.mxu0 0.0
        %1771 = vmatpush1.msra.mxu0 0.0
        %1772 = vmatprep.subr.mxu0 0.0
        %1773 = vmatpush1.msra.mxu0 0.0
        %1774 = vmatprep.subr.mxu0 0.0
        %1775 = vmatpush1.msra.mxu0 0.0
        %1776 = vmatprep.mubr.f32.mxu0 0.0
        %1777 = vmatmul.mubr.f32.gmra.mrb[0].mxu0 %v1710
        %v1778 = vpop.f32.mrb[0].mxu0
        %v1779 = vadd.f32 0.0, %v1778
        %v1780 = vpop.f32.mrb[0].mxu0
        %1781 = vdwg.mxu0
        %s1782 = scalar_lea.vmem %s5, 96
        %v1783 = vld [vmem:[%s1782] sm:$0xff]
        %v1784 = vld [vmem:[%s1782 + $0x8] sm:$0xff]
        %v1786 = vsel %vm952, %v1779, 0
        %1788 = vmatprep.subr.mxu0 0.0
        %1789 = vmatpush1.msra.mxu0 %v1783
        %1790 = vmatprep.subr.mxu0 0.0
        %1791 = vmatpush1.msra.mxu0 %v1784
        %1792 = vmatprep.subr.mxu0 0.0
        %1793 = vmatpush1.msra.mxu0 0.0
        %1794 = vmatprep.subr.mxu0 0.0
        %1795 = vmatpush1.msra.mxu0 0.0
        %1796 = vmatprep.subr.mxu0 0.0
        %1797 = vmatpush1.msra.mxu0 0.0
        %1798 = vmatprep.subr.mxu0 0.0
        %1799 = vmatpush1.msra.mxu0 0.0
        %1800 = vmatprep.subr.mxu0 0.0
        %1801 = vmatpush1.msra.mxu0 0.0
        %1802 = vmatprep.subr.mxu0 0.0
        %1803 = vmatpush1.msra.mxu0 0.0
        %1804 = vmatprep.subr.mxu0 0.0
        %1805 = vmatpush1.msra.mxu0 0.0
        %1806 = vmatprep.subr.mxu0 0.0
        %1807 = vmatpush1.msra.mxu0 0.0
        %1808 = vmatprep.subr.mxu0 0.0
        %1809 = vmatpush1.msra.mxu0 0.0
        %1810 = vmatprep.subr.mxu0 0.0
        %1811 = vmatpush1.msra.mxu0 0.0
        %1812 = vmatprep.subr.mxu0 0.0
        %1813 = vmatpush1.msra.mxu0 0.0
        %1814 = vmatprep.subr.mxu0 0.0
        %1815 = vmatpush1.msra.mxu0 0.0
        %1816 = vmatprep.subr.mxu0 0.0
        %1817 = vmatpush1.msra.mxu0 0.0
        %1818 = vmatprep.subr.mxu0 0.0
        %1819 = vmatpush1.msra.mxu0 0.0
        %1820 = vmatprep.subr.mxu0 0.0
        %1821 = vmatpush1.msra.mxu0 0.0
        %1822 = vmatprep.subr.mxu0 0.0
        %1823 = vmatpush1.msra.mxu0 0.0
        %1824 = vmatprep.subr.mxu0 0.0
        %1825 = vmatpush1.msra.mxu0 0.0
        %1826 = vmatprep.subr.mxu0 0.0
        %1827 = vmatpush1.msra.mxu0 0.0
        %1828 = vmatprep.subr.mxu0 0.0
        %1829 = vmatpush1.msra.mxu0 0.0
        %1830 = vmatprep.subr.mxu0 0.0
        %1831 = vmatpush1.msra.mxu0 0.0
        %1832 = vmatprep.subr.mxu0 0.0
        %1833 = vmatpush1.msra.mxu0 0.0
        %1834 = vmatprep.subr.mxu0 0.0
        %1835 = vmatpush1.msra.mxu0 0.0
        %1836 = vmatprep.subr.mxu0 0.0
        %1837 = vmatpush1.msra.mxu0 0.0
        %1838 = vmatprep.subr.mxu0 0.0
        %1839 = vmatpush1.msra.mxu0 0.0
        %1840 = vmatprep.subr.mxu0 0.0
        %1841 = vmatpush1.msra.mxu0 0.0
        %1842 = vmatprep.subr.mxu0 0.0
        %1843 = vmatpush1.msra.mxu0 0.0
        %1844 = vmatprep.subr.mxu0 0.0
        %1845 = vmatpush1.msra.mxu0 0.0
        %1846 = vmatprep.subr.mxu0 0.0
        %1847 = vmatpush1.msra.mxu0 0.0
        %1848 = vmatprep.subr.mxu0 0.0
        %1849 = vmatpush1.msra.mxu0 0.0
        %1850 = vmatprep.subr.mxu0 0.0
        %1851 = vmatpush1.msra.mxu0 0.0
        %1852 = vmatprep.mubr.f32.mxu0 0.0
        %1853 = vmatmul.mubr.f32.gmra.mrb[0].mxu0 %v1786
        %v1854 = vpop.f32.mrb[0].mxu0
        %v1855 = vadd.f32 0.0, %v1854
        %v1856 = vpop.f32.mrb[0].mxu0
        %1857 = vdwg.mxu0
        %v1858 = vadd.f32 %v1706, %v1855
        %s1859 = scalar_lea.vmem [#allocation2], 28
        %v1860 = vld [vmem:[%s1859] sm:$0xf]
        %v1862 = vsel %vm794, %v1860, 0
        %1864 = vmatprep.subr.mxu0 0.0
        %1865 = vmatpush1.msra.mxu0 %v788
        %1866 = vmatprep.subr.mxu0 0.0
        %1867 = vmatpush1.msra.mxu0 %v789
        %1868 = vmatprep.subr.mxu0 0.0
        %1869 = vmatpush1.msra.mxu0 %v790
        %1870 = vmatprep.subr.mxu0 0.0
        %1871 = vmatpush1.msra.mxu0 %v791
        %1872 = vmatprep.subr.mxu0 0.0
        %1873 = vmatpush1.msra.mxu0 %v800
        %1874 = vmatprep.subr.mxu0 0.0
        %1875 = vmatpush1.msra.mxu0 0.0
        %1876 = vmatprep.subr.mxu0 0.0
        %1877 = vmatpush1.msra.mxu0 0.0
        %1878 = vmatprep.subr.mxu0 0.0
        %1879 = vmatpush1.msra.mxu0 0.0
        %1880 = vmatprep.subr.mxu0 0.0
        %1881 = vmatpush1.msra.mxu0 0.0
        %1882 = vmatprep.subr.mxu0 0.0
        %1883 = vmatpush1.msra.mxu0 0.0
        %1884 = vmatprep.subr.mxu0 0.0
        %1885 = vmatpush1.msra.mxu0 0.0
        %1886 = vmatprep.subr.mxu0 0.0
        %1887 = vmatpush1.msra.mxu0 0.0
        %1888 = vmatprep.subr.mxu0 0.0
        %1889 = vmatpush1.msra.mxu0 0.0
        %1890 = vmatprep.subr.mxu0 0.0
        %1891 = vmatpush1.msra.mxu0 0.0
        %1892 = vmatprep.subr.mxu0 0.0
        %1893 = vmatpush1.msra.mxu0 0.0
        %1894 = vmatprep.subr.mxu0 0.0
        %1895 = vmatpush1.msra.mxu0 0.0
        %1896 = vmatprep.subr.mxu0 0.0
        %1897 = vmatpush1.msra.mxu0 0.0
        %1898 = vmatprep.subr.mxu0 0.0
        %1899 = vmatpush1.msra.mxu0 0.0
        %1900 = vmatprep.subr.mxu0 0.0
        %1901 = vmatpush1.msra.mxu0 0.0
        %1902 = vmatprep.subr.mxu0 0.0
        %1903 = vmatpush1.msra.mxu0 0.0
        %1904 = vmatprep.subr.mxu0 0.0
        %1905 = vmatpush1.msra.mxu0 0.0
        %1906 = vmatprep.subr.mxu0 0.0
        %1907 = vmatpush1.msra.mxu0 0.0
        %1908 = vmatprep.subr.mxu0 0.0
        %1909 = vmatpush1.msra.mxu0 0.0
        %1910 = vmatprep.subr.mxu0 0.0
        %1911 = vmatpush1.msra.mxu0 0.0
        %1912 = vmatprep.subr.mxu0 0.0
        %1913 = vmatpush1.msra.mxu0 0.0
        %1914 = vmatprep.subr.mxu0 0.0
        %1915 = vmatpush1.msra.mxu0 0.0
        %1916 = vmatprep.subr.mxu0 0.0
        %1917 = vmatpush1.msra.mxu0 0.0
        %1918 = vmatprep.subr.mxu0 0.0
        %1919 = vmatpush1.msra.mxu0 0.0
        %1920 = vmatprep.subr.mxu0 0.0
        %1921 = vmatpush1.msra.mxu0 0.0
        %1922 = vmatprep.subr.mxu0 0.0
        %1923 = vmatpush1.msra.mxu0 0.0
        %1924 = vmatprep.subr.mxu0 0.0
        %1925 = vmatpush1.msra.mxu0 0.0
        %1926 = vmatprep.subr.mxu0 0.0
        %1927 = vmatpush1.msra.mxu0 0.0
        %1928 = vmatprep.mubr.f32.mxu0 0.0
        %1929 = vmatmul.mubr.f32.gmra.mrb[0].mxu0 %v1862
        %v1930 = vpop.f32.mrb[0].mxu0
        %v1931 = vadd.f32 0.0, %v1930
        %v1932 = vpop.f32.mrb[0].mxu0
        %1933 = vdwg.mxu0
        %s1934 = scalar_lea.vmem %s5, 112
        %v1935 = vld [vmem:[%s1934] sm:$0xff]
        %v1936 = vld [vmem:[%s1934 + $0x8] sm:$0xff]
        %v1938 = vsel %vm952, %v1931, 0
        %1940 = vmatprep.subr.mxu0 0.0
        %1941 = vmatpush1.msra.mxu0 %v1935
        %1942 = vmatprep.subr.mxu0 0.0
        %1943 = vmatpush1.msra.mxu0 %v1936
        %1944 = vmatprep.subr.mxu0 0.0
        %1945 = vmatpush1.msra.mxu0 0.0
        %1946 = vmatprep.subr.mxu0 0.0
        %1947 = vmatpush1.msra.mxu0 0.0
        %1948 = vmatprep.subr.mxu0 0.0
        %1949 = vmatpush1.msra.mxu0 0.0
        %1950 = vmatprep.subr.mxu0 0.0
        %1951 = vmatpush1.msra.mxu0 0.0
        %1952 = vmatprep.subr.mxu0 0.0
        %1953 = vmatpush1.msra.mxu0 0.0
        %1954 = vmatprep.subr.mxu0 0.0
        %1955 = vmatpush1.msra.mxu0 0.0
        %1956 = vmatprep.subr.mxu0 0.0
        %1957 = vmatpush1.msra.mxu0 0.0
        %1958 = vmatprep.subr.mxu0 0.0
        %1959 = vmatpush1.msra.mxu0 0.0
        %1960 = vmatprep.subr.mxu0 0.0
        %1961 = vmatpush1.msra.mxu0 0.0
        %1962 = vmatprep.subr.mxu0 0.0
        %1963 = vmatpush1.msra.mxu0 0.0
        %1964 = vmatprep.subr.mxu0 0.0
        %1965 = vmatpush1.msra.mxu0 0.0
        %1966 = vmatprep.subr.mxu0 0.0
        %1967 = vmatpush1.msra.mxu0 0.0
        %1968 = vmatprep.subr.mxu0 0.0
        %1969 = vmatpush1.msra.mxu0 0.0
        %1970 = vmatprep.subr.mxu0 0.0
        %1971 = vmatpush1.msra.mxu0 0.0
        %1972 = vmatprep.subr.mxu0 0.0
        %1973 = vmatpush1.msra.mxu0 0.0
        %1974 = vmatprep.subr.mxu0 0.0
        %1975 = vmatpush1.msra.mxu0 0.0
        %1976 = vmatprep.subr.mxu0 0.0
        %1977 = vmatpush1.msra.mxu0 0.0
        %1978 = vmatprep.subr.mxu0 0.0
        %1979 = vmatpush1.msra.mxu0 0.0
        %1980 = vmatprep.subr.mxu0 0.0
        %1981 = vmatpush1.msra.mxu0 0.0
        %1982 = vmatprep.subr.mxu0 0.0
        %1983 = vmatpush1.msra.mxu0 0.0
        %1984 = vmatprep.subr.mxu0 0.0
        %1985 = vmatpush1.msra.mxu0 0.0
        %1986 = vmatprep.subr.mxu0 0.0
        %1987 = vmatpush1.msra.mxu0 0.0
        %1988 = vmatprep.subr.mxu0 0.0
        %1989 = vmatpush1.msra.mxu0 0.0
        %1990 = vmatprep.subr.mxu0 0.0
        %1991 = vmatpush1.msra.mxu0 0.0
        %1992 = vmatprep.subr.mxu0 0.0
        %1993 = vmatpush1.msra.mxu0 0.0
        %1994 = vmatprep.subr.mxu0 0.0
        %1995 = vmatpush1.msra.mxu0 0.0
        %1996 = vmatprep.subr.mxu0 0.0
        %1997 = vmatpush1.msra.mxu0 0.0
        %1998 = vmatprep.subr.mxu0 0.0
        %1999 = vmatpush1.msra.mxu0 0.0
        %2000 = vmatprep.subr.mxu0 0.0
        %2001 = vmatpush1.msra.mxu0 0.0
        %2002 = vmatprep.subr.mxu0 0.0
        %2003 = vmatpush1.msra.mxu0 0.0
        %2004 = vmatprep.mubr.f32.mxu0 0.0
        %2005 = vmatmul.mubr.f32.gmra.mrb[0].mxu0 %v1938
        %v2006 = vpop.f32.mrb[0].mxu0
        %v2007 = vadd.f32 0.0, %v2006
        %v2008 = vpop.f32.mrb[0].mxu0
        %2009 = vdwg.mxu0
        %v2010 = vadd.f32 %v1858, %v2007
        %s2011 = scalar_lea.vmem [#allocation2], 32
        %v2012 = vld [vmem:[%s2011] sm:$0xf]
        %v2014 = vsel %vm794, %v2012, 0
        %2016 = vmatprep.subr.mxu0 0.0
        %2017 = vmatpush1.msra.mxu0 %v788
        %2018 = vmatprep.subr.mxu0 0.0
        %2019 = vmatpush1.msra.mxu0 %v789
        %2020 = vmatprep.subr.mxu0 0.0
        %2021 = vmatpush1.msra.mxu0 %v790
        %2022 = vmatprep.subr.mxu0 0.0
        %2023 = vmatpush1.msra.mxu0 %v791
        %2024 = vmatprep.subr.mxu0 0.0
        %2025 = vmatpush1.msra.mxu0 %v800
        %2026 = vmatprep.subr.mxu0 0.0
        %2027 = vmatpush1.msra.mxu0 0.0
        %2028 = vmatprep.subr.mxu0 0.0
        %2029 = vmatpush1.msra.mxu0 0.0
        %2030 = vmatprep.subr.mxu0 0.0
        %2031 = vmatpush1.msra.mxu0 0.0
        %2032 = vmatprep.subr.mxu0 0.0
        %2033 = vmatpush1.msra.mxu0 0.0
        %2034 = vmatprep.subr.mxu0 0.0
        %2035 = vmatpush1.msra.mxu0 0.0
        %2036 = vmatprep.subr.mxu0 0.0
        %2037 = vmatpush1.msra.mxu0 0.0
        %2038 = vmatprep.subr.mxu0 0.0
        %2039 = vmatpush1.msra.mxu0 0.0
        %2040 = vmatprep.subr.mxu0 0.0
        %2041 = vmatpush1.msra.mxu0 0.0
        %2042 = vmatprep.subr.mxu0 0.0
        %2043 = vmatpush1.msra.mxu0 0.0
        %2044 = vmatprep.subr.mxu0 0.0
        %2045 = vmatpush1.msra.mxu0 0.0
        %2046 = vmatprep.subr.mxu0 0.0
        %2047 = vmatpush1.msra.mxu0 0.0
        %2048 = vmatprep.subr.mxu0 0.0
        %2049 = vmatpush1.msra.mxu0 0.0
        %2050 = vmatprep.subr.mxu0 0.0
        %2051 = vmatpush1.msra.mxu0 0.0
        %2052 = vmatprep.subr.mxu0 0.0
        %2053 = vmatpush1.msra.mxu0 0.0
        %2054 = vmatprep.subr.mxu0 0.0
        %2055 = vmatpush1.msra.mxu0 0.0
        %2056 = vmatprep.subr.mxu0 0.0
        %2057 = vmatpush1.msra.mxu0 0.0
        %2058 = vmatprep.subr.mxu0 0.0
        %2059 = vmatpush1.msra.mxu0 0.0
        %2060 = vmatprep.subr.mxu0 0.0
        %2061 = vmatpush1.msra.mxu0 0.0
        %2062 = vmatprep.subr.mxu0 0.0
        %2063 = vmatpush1.msra.mxu0 0.0
        %2064 = vmatprep.subr.mxu0 0.0
        %2065 = vmatpush1.msra.mxu0 0.0
        %2066 = vmatprep.subr.mxu0 0.0
        %2067 = vmatpush1.msra.mxu0 0.0
        %2068 = vmatprep.subr.mxu0 0.0
        %2069 = vmatpush1.msra.mxu0 0.0
        %2070 = vmatprep.subr.mxu0 0.0
        %2071 = vmatpush1.msra.mxu0 0.0
        %2072 = vmatprep.subr.mxu0 0.0
        %2073 = vmatpush1.msra.mxu0 0.0
        %2074 = vmatprep.subr.mxu0 0.0
        %2075 = vmatpush1.msra.mxu0 0.0
        %2076 = vmatprep.subr.mxu0 0.0
        %2077 = vmatpush1.msra.mxu0 0.0
        %2078 = vmatprep.subr.mxu0 0.0
        %2079 = vmatpush1.msra.mxu0 0.0
        %2080 = vmatprep.mubr.f32.mxu0 0.0
        %2081 = vmatmul.mubr.f32.gmra.mrb[0].mxu0 %v2014
        %v2082 = vpop.f32.mrb[0].mxu0
        %v2083 = vadd.f32 0.0, %v2082
        %v2084 = vpop.f32.mrb[0].mxu0
        %2085 = vdwg.mxu0
        %s2086 = scalar_lea.vmem %s5, 128
        %v2087 = vld [vmem:[%s2086] sm:$0xff]
        %v2088 = vld [vmem:[%s2086 + $0x8] sm:$0xff]
        %v2090 = vsel %vm952, %v2083, 0
        %2092 = vmatprep.subr.mxu0 0.0
        %2093 = vmatpush1.msra.mxu0 %v2087
        %2094 = vmatprep.subr.mxu0 0.0
        %2095 = vmatpush1.msra.mxu0 %v2088
        %2096 = vmatprep.subr.mxu0 0.0
        %2097 = vmatpush1.msra.mxu0 0.0
        %2098 = vmatprep.subr.mxu0 0.0
        %2099 = vmatpush1.msra.mxu0 0.0
        %2100 = vmatprep.subr.mxu0 0.0
        %2101 = vmatpush1.msra.mxu0 0.0
        %2102 = vmatprep.subr.mxu0 0.0
        %2103 = vmatpush1.msra.mxu0 0.0
        %2104 = vmatprep.subr.mxu0 0.0
        %2105 = vmatpush1.msra.mxu0 0.0
        %2106 = vmatprep.subr.mxu0 0.0
        %2107 = vmatpush1.msra.mxu0 0.0
        %2108 = vmatprep.subr.mxu0 0.0
        %2109 = vmatpush1.msra.mxu0 0.0
        %2110 = vmatprep.subr.mxu0 0.0
        %2111 = vmatpush1.msra.mxu0 0.0
        %2112 = vmatprep.subr.mxu0 0.0
        %2113 = vmatpush1.msra.mxu0 0.0
        %2114 = vmatprep.subr.mxu0 0.0
        %2115 = vmatpush1.msra.mxu0 0.0
        %2116 = vmatprep.subr.mxu0 0.0
        %2117 = vmatpush1.msra.mxu0 0.0
        %2118 = vmatprep.subr.mxu0 0.0
        %2119 = vmatpush1.msra.mxu0 0.0
        %2120 = vmatprep.subr.mxu0 0.0
        %2121 = vmatpush1.msra.mxu0 0.0
        %2122 = vmatprep.subr.mxu0 0.0
        %2123 = vmatpush1.msra.mxu0 0.0
        %2124 = vmatprep.subr.mxu0 0.0
        %2125 = vmatpush1.msra.mxu0 0.0
        %2126 = vmatprep.subr.mxu0 0.0
        %2127 = vmatpush1.msra.mxu0 0.0
        %2128 = vmatprep.subr.mxu0 0.0
        %2129 = vmatpush1.msra.mxu0 0.0
        %2130 = vmatprep.subr.mxu0 0.0
        %2131 = vmatpush1.msra.mxu0 0.0
        %2132 = vmatprep.subr.mxu0 0.0
        %2133 = vmatpush1.msra.mxu0 0.0
        %2134 = vmatprep.subr.mxu0 0.0
        %2135 = vmatpush1.msra.mxu0 0.0
        %2136 = vmatprep.subr.mxu0 0.0
        %2137 = vmatpush1.msra.mxu0 0.0
        %2138 = vmatprep.subr.mxu0 0.0
        %2139 = vmatpush1.msra.mxu0 0.0
        %2140 = vmatprep.subr.mxu0 0.0
        %2141 = vmatpush1.msra.mxu0 0.0
        %2142 = vmatprep.subr.mxu0 0.0
        %2143 = vmatpush1.msra.mxu0 0.0
        %2144 = vmatprep.subr.mxu0 0.0
        %2145 = vmatpush1.msra.mxu0 0.0
        %2146 = vmatprep.subr.mxu0 0.0
        %2147 = vmatpush1.msra.mxu0 0.0
        %2148 = vmatprep.subr.mxu0 0.0
        %2149 = vmatpush1.msra.mxu0 0.0
        %2150 = vmatprep.subr.mxu0 0.0
        %2151 = vmatpush1.msra.mxu0 0.0
        %2152 = vmatprep.subr.mxu0 0.0
        %2153 = vmatpush1.msra.mxu0 0.0
        %2154 = vmatprep.subr.mxu0 0.0
        %2155 = vmatpush1.msra.mxu0 0.0
        %2156 = vmatprep.mubr.f32.mxu0 0.0
        %2157 = vmatmul.mubr.f32.gmra.mrb[0].mxu0 %v2090
        %v2158 = vpop.f32.mrb[0].mxu0
        %v2159 = vadd.f32 0.0, %v2158
        %v2160 = vpop.f32.mrb[0].mxu0
        %2161 = vdwg.mxu0
        %v2162 = vadd.f32 %v2010, %v2159
        %v2163 = vld [vmem:[#allocation5] sm:$0x1]
        %v2165 = vlaneseq
        %v2166 = vshrl.u32 %v2165, 7
        %v2167 = vsub.s32 0, %v2166
        %v2168 = vrot.slane %v2163, %v2167
        %v2170 = vadd.f32 %v2162, %v2168
        %v2171 = vmax.f32 %v2170, 0.0
        %vm2172 = vcmask 257024
        %v2173 = vsel %vm2172, %v2171, 0.0
        %v2174 = vrot.slane %v2173, 4
        %v2175 = vadd.f32 %v2173, %v2174
        %v2176 = vrot.slane %v2175, 2
        %v2177 = vadd.f32 %v2175, %v2176
        %v2178 = vrot.slane %v2177, 1
        %v2179 = vadd.f32 %v2177, %v2178
        %v2180 = vld [vmem:[%s7] sm:$0xff]
        %v2181 = vld [vmem:[%s7 + $0x8] sm:$0xff]
        %v2182 = vld [vmem:[%s7 + $0x10] sm:$0xff]
        %v2183 = vld [vmem:[%s7 + $0x18] sm:$0xff]
        %v2184 = vld [vmem:[#allocation7] sm:$0x1]
        %vm2185 = vcmask 261120
        %v2187 = vsel %vm2185, %v2179, 0
        %2189 = vmatprep.subr.mxu0 0.0
        %2190 = vmatpush1.msra.mxu0 %v2180
        %2191 = vmatprep.subr.mxu0 0.0
        %2192 = vmatpush1.msra.mxu0 %v2181
        %2193 = vmatprep.subr.mxu0 0.0
        %2194 = vmatpush1.msra.mxu0 %v2182
        %2195 = vmatprep.subr.mxu0 0.0
        %2196 = vmatpush1.msra.mxu0 %v2183
        %2197 = vmatprep.subr.mxu0 0.0
        %2198 = vmatpush1.msra.mxu0 0.0
        %2199 = vmatprep.subr.mxu0 0.0
        %2200 = vmatpush1.msra.mxu0 0.0
        %2201 = vmatprep.subr.mxu0 0.0
        %2202 = vmatpush1.msra.mxu0 0.0
        %2203 = vmatprep.subr.mxu0 0.0
        %2204 = vmatpush1.msra.mxu0 0.0
        %2205 = vmatprep.subr.mxu0 0.0
        %2206 = vmatpush1.msra.mxu0 0.0
        %2207 = vmatprep.subr.mxu0 0.0
        %2208 = vmatpush1.msra.mxu0 0.0
        %2209 = vmatprep.subr.mxu0 0.0
        %2210 = vmatpush1.msra.mxu0 0.0
        %2211 = vmatprep.subr.mxu0 0.0
        %2212 = vmatpush1.msra.mxu0 0.0
        %2213 = vmatprep.subr.mxu0 0.0
        %2214 = vmatpush1.msra.mxu0 0.0
        %2215 = vmatprep.subr.mxu0 0.0
        %2216 = vmatpush1.msra.mxu0 0.0
        %2217 = vmatprep.subr.mxu0 0.0
        %2218 = vmatpush1.msra.mxu0 0.0
        %2219 = vmatprep.subr.mxu0 0.0
        %2220 = vmatpush1.msra.mxu0 0.0
        %2221 = vmatprep.subr.mxu0 0.0
        %2222 = vmatpush1.msra.mxu0 0.0
        %2223 = vmatprep.subr.mxu0 0.0
        %2224 = vmatpush1.msra.mxu0 0.0
        %2225 = vmatprep.subr.mxu0 0.0
        %2226 = vmatpush1.msra.mxu0 0.0
        %2227 = vmatprep.subr.mxu0 0.0
        %2228 = vmatpush1.msra.mxu0 0.0
        %2229 = vmatprep.subr.mxu0 0.0
        %2230 = vmatpush1.msra.mxu0 0.0
        %2231 = vmatprep.subr.mxu0 0.0
        %2232 = vmatpush1.msra.mxu0 0.0
        %2233 = vmatprep.subr.mxu0 0.0
        %2234 = vmatpush1.msra.mxu0 0.0
        %2235 = vmatprep.subr.mxu0 0.0
        %2236 = vmatpush1.msra.mxu0 0.0
        %2237 = vmatprep.subr.mxu0 0.0
        %2238 = vmatpush1.msra.mxu0 0.0
        %2239 = vmatprep.subr.mxu0 0.0
        %2240 = vmatpush1.msra.mxu0 0.0
        %2241 = vmatprep.subr.mxu0 0.0
        %2242 = vmatpush1.msra.mxu0 0.0
        %2243 = vmatprep.subr.mxu0 0.0
        %2244 = vmatpush1.msra.mxu0 0.0
        %2245 = vmatprep.subr.mxu0 0.0
        %2246 = vmatpush1.msra.mxu0 0.0
        %2247 = vmatprep.subr.mxu0 0.0
        %2248 = vmatpush1.msra.mxu0 0.0
        %2249 = vmatprep.subr.mxu0 0.0
        %2250 = vmatpush1.msra.mxu0 0.0
        %2251 = vmatprep.subr.mxu0 0.0
        %2252 = vmatpush1.msra.mxu0 0.0
        %2253 = vmatprep.mubr.f32.mxu0 0.0
        %2254 = vmatmul.mubr.f32.gmra.mrb[0].mxu0 %v2187
        %v2255 = vpop.f32.mrb[0].mxu0
        %v2256 = vadd.f32 %v2184, %v2255
        %v2257 = vpop.f32.mrb[0].mxu0
        %2258 = vdwg.mxu0
        %v2259 = vld [vmem:[%s655] sm:$0xff]
        %v2260 = vld [vmem:[#allocation8] sm:$0x3]
        %2262 = vset.pattern.permute.xlu0 0
        %2263 = vperm.xlu0 %2262, %v2259
        %v2264 = vpop.permute.xlu0 %2263
        %v2266 = vlaneseq
        %v2267 = vshrl.u32 %v2266, 7
        %v2268 = vsub.s32 0, %v2267
        %v2269 = vrot.slane %v2260, %v2268
        %v2270 = vmul.f32 %v2264, %v2269
        %2271 = vset.pattern.permute.xlu0 1
        %2272 = vperm.xlu0 %2271, %v2259
        %v2273 = vpop.permute.xlu0 %2272
        %v2275 = vlaneseq
        %v2276 = vshrl.u32 %v2275, 7
        %v2277 = vsub.s32 1, %v2276
        %v2278 = vrot.slane %v2260, %v2277
        %v2279 = vmul.f32 %v2273, %v2278
        %v2280 = vadd.f32 %v2270, %v2279
        %v2281 = vld [vmem:[#allocation10] sm:$0x1]
        %v2283 = vlaneseq
        %v2284 = vshrl.u32 %v2283, 7
        %v2285 = vsub.s32 0, %v2284
        %v2286 = vrot.slane %v2281, %v2285
        %v2288 = vadd.f32 %v2280, %v2286
        %v2289 = vmax.f32 %v2288, 0.0
        %v2290 = vld [vmem:[%s11] sm:$0xff]
        %v2291 = vld [vmem:[%s11 + $0x8] sm:$0xff]
        %v2292 = vld [vmem:[%s11 + $0x10] sm:$0xff]
        %v2293 = vld [vmem:[%s11 + $0x18] sm:$0xff]
        %v2294 = vld [vmem:[%s11 + $0x20] sm:$0xff]
        %v2295 = vld [vmem:[%s11 + $0x28] sm:$0xff]
        %v2296 = vld [vmem:[%s11 + $0x30] sm:$0xff]
        %v2297 = vld [vmem:[%s11 + $0x38] sm:$0xff]
        %v2298 = vld [vmem:[%s12] sm:$0x1]
        %v2300 = vlaneseq
        %v2301 = vshrl.u32 %v2300, 7
        %v2302 = vsub.s32 0, %v2301
        %v2303 = vrot.slane %v2298, %v2302
        %vm2305 = vcmask 523264
        %v2307 = vsel %vm2305, %v2289, 0
        %2309 = vmatprep.subr.mxu0 0.0
        %2310 = vmatpush1.msra.mxu0 %v2290
        %2311 = vmatprep.subr.mxu0 0.0
        %2312 = vmatpush1.msra.mxu0 %v2291
        %2313 = vmatprep.subr.mxu0 0.0
        %2314 = vmatpush1.msra.mxu0 %v2292
        %2315 = vmatprep.subr.mxu0 0.0
        %2316 = vmatpush1.msra.mxu0 %v2293
        %2317 = vmatprep.subr.mxu0 0.0
        %2318 = vmatpush1.msra.mxu0 %v2294
        %2319 = vmatprep.subr.mxu0 0.0
        %2320 = vmatpush1.msra.mxu0 %v2295
        %2321 = vmatprep.subr.mxu0 0.0
        %2322 = vmatpush1.msra.mxu0 %v2296
        %2323 = vmatprep.subr.mxu0 0.0
        %2324 = vmatpush1.msra.mxu0 %v2297
        %2325 = vmatprep.subr.mxu0 0.0
        %2326 = vmatpush1.msra.mxu0 0.0
        %2327 = vmatprep.subr.mxu0 0.0
        %2328 = vmatpush1.msra.mxu0 0.0
        %2329 = vmatprep.subr.mxu0 0.0
        %2330 = vmatpush1.msra.mxu0 0.0
        %2331 = vmatprep.subr.mxu0 0.0
        %2332 = vmatpush1.msra.mxu0 0.0
        %2333 = vmatprep.subr.mxu0 0.0
        %2334 = vmatpush1.msra.mxu0 0.0
        %2335 = vmatprep.subr.mxu0 0.0
        %2336 = vmatpush1.msra.mxu0 0.0
        %2337 = vmatprep.subr.mxu0 0.0
        %2338 = vmatpush1.msra.mxu0 0.0
        %2339 = vmatprep.subr.mxu0 0.0
        %2340 = vmatpush1.msra.mxu0 0.0
        %2341 = vmatprep.subr.mxu0 0.0
        %2342 = vmatpush1.msra.mxu0 0.0
        %2343 = vmatprep.subr.mxu0 0.0
        %2344 = vmatpush1.msra.mxu0 0.0
        %2345 = vmatprep.subr.mxu0 0.0
        %2346 = vmatpush1.msra.mxu0 0.0
        %2347 = vmatprep.subr.mxu0 0.0
        %2348 = vmatpush1.msra.mxu0 0.0
        %2349 = vmatprep.subr.mxu0 0.0
        %2350 = vmatpush1.msra.mxu0 0.0
        %2351 = vmatprep.subr.mxu0 0.0
        %2352 = vmatpush1.msra.mxu0 0.0
        %2353 = vmatprep.subr.mxu0 0.0
        %2354 = vmatpush1.msra.mxu0 0.0
        %2355 = vmatprep.subr.mxu0 0.0
        %2356 = vmatpush1.msra.mxu0 0.0
        %2357 = vmatprep.subr.mxu0 0.0
        %2358 = vmatpush1.msra.mxu0 0.0
        %2359 = vmatprep.subr.mxu0 0.0
        %2360 = vmatpush1.msra.mxu0 0.0
        %2361 = vmatprep.subr.mxu0 0.0
        %2362 = vmatpush1.msra.mxu0 0.0
        %2363 = vmatprep.subr.mxu0 0.0
        %2364 = vmatpush1.msra.mxu0 0.0
        %2365 = vmatprep.subr.mxu0 0.0
        %2366 = vmatpush1.msra.mxu0 0.0
        %2367 = vmatprep.subr.mxu0 0.0
        %2368 = vmatpush1.msra.mxu0 0.0
        %2369 = vmatprep.subr.mxu0 0.0
        %2370 = vmatpush1.msra.mxu0 0.0
        %2371 = vmatprep.subr.mxu0 0.0
        %2372 = vmatpush1.msra.mxu0 0.0
        %2373 = vmatprep.mubr.f32.mxu0 0.0
        %2374 = vmatmul.mubr.f32.gmra.mrb[0].mxu0 %v2307
        %v2375 = vpop.f32.mrb[0].mxu0
        %v2376 = vadd.f32 %v2303, %v2375
        %v2377 = vpop.f32.mrb[0].mxu0
        %2378 = vdwg.mxu0
        %v2379 = vld [vmem:[%s14] sm:$0xff]
        %v2380 = vld [vmem:[%s14 + $0x8] sm:$0xff]
        %v2381 = vld [vmem:[%s14 + $0x10] sm:$0xff]
        %v2382 = vld [vmem:[%s14 + $0x18] sm:$0xff]
        %v2383 = vld [vmem:[%s14 + $0x20] sm:$0xff]
        %v2384 = vld [vmem:[%s14 + $0x28] sm:$0xff]
        %v2385 = vld [vmem:[%s14 + $0x30] sm:$0xff]
        %v2386 = vld [vmem:[%s14 + $0x38] sm:$0xff]
        %v2387 = vld [vmem:[%s14 + $0x40] sm:$0xff]
        %v2388 = vld [vmem:[%s14 + $0x48] sm:$0xff]
        %v2389 = vld [vmem:[%s14 + $0x50] sm:$0xff]
        %v2390 = vld [vmem:[%s14 + $0x58] sm:$0xff]
        %v2391 = vld [vmem:[%s14 + $0x60] sm:$0xff]
        %v2392 = vld [vmem:[%s14 + $0x68] sm:$0xff]
        %v2393 = vld [vmem:[%s14 + $0x70] sm:$0xff]
        %v2394 = vld [vmem:[%s14 + $0x78] sm:$0xff]
        %2395 = vmatprep.subr.mxu0 0.0
        %2396 = vmatpush1.msra.mxu0 %v2379
        %2397 = vmatprep.subr.mxu0 0.0
        %2398 = vmatpush1.msra.mxu0 %v2380
        %2399 = vmatprep.subr.mxu0 0.0
        %2400 = vmatpush1.msra.mxu0 %v2381
        %2401 = vmatprep.subr.mxu0 0.0
        %2402 = vmatpush1.msra.mxu0 %v2382
        %2403 = vmatprep.subr.mxu0 0.0
        %2404 = vmatpush1.msra.mxu0 %v2383
        %2405 = vmatprep.subr.mxu0 0.0
        %2406 = vmatpush1.msra.mxu0 %v2384
        %2407 = vmatprep.subr.mxu0 0.0
        %2408 = vmatpush1.msra.mxu0 %v2385
        %2409 = vmatprep.subr.mxu0 0.0
        %2410 = vmatpush1.msra.mxu0 %v2386
        %2411 = vmatprep.subr.mxu0 0.0
        %2412 = vmatpush1.msra.mxu0 %v2387
        %2413 = vmatprep.subr.mxu0 0.0
        %2414 = vmatpush1.msra.mxu0 %v2388
        %2415 = vmatprep.subr.mxu0 0.0
        %2416 = vmatpush1.msra.mxu0 %v2389
        %2417 = vmatprep.subr.mxu0 0.0
        %2418 = vmatpush1.msra.mxu0 %v2390
        %2419 = vmatprep.subr.mxu0 0.0
        %2420 = vmatpush1.msra.mxu0 %v2391
        %2421 = vmatprep.subr.mxu0 0.0
        %2422 = vmatpush1.msra.mxu0 %v2392
        %2423 = vmatprep.subr.mxu0 0.0
        %2424 = vmatpush1.msra.mxu0 %v2393
        %2425 = vmatprep.subr.mxu0 0.0
        %2426 = vmatpush1.msra.mxu0 %v2394
        %2427 = vmatprep.subr.mxu0 0.0
        %2428 = vmatpush1.msra.mxu0 0.0
        %2429 = vmatprep.subr.mxu0 0.0
        %2430 = vmatpush1.msra.mxu0 0.0
        %2431 = vmatprep.subr.mxu0 0.0
        %2432 = vmatpush1.msra.mxu0 0.0
        %2433 = vmatprep.subr.mxu0 0.0
        %2434 = vmatpush1.msra.mxu0 0.0
        %2435 = vmatprep.subr.mxu0 0.0
        %2436 = vmatpush1.msra.mxu0 0.0
        %2437 = vmatprep.subr.mxu0 0.0
        %2438 = vmatpush1.msra.mxu0 0.0
        %2439 = vmatprep.subr.mxu0 0.0
        %2440 = vmatpush1.msra.mxu0 0.0
        %2441 = vmatprep.subr.mxu0 0.0
        %2442 = vmatpush1.msra.mxu0 0.0
        %2443 = vmatprep.subr.mxu0 0.0
        %2444 = vmatpush1.msra.mxu0 0.0
        %2445 = vmatprep.subr.mxu0 0.0
        %2446 = vmatpush1.msra.mxu0 0.0
        %2447 = vmatprep.subr.mxu0 0.0
        %2448 = vmatpush1.msra.mxu0 0.0
        %2449 = vmatprep.subr.mxu0 0.0
        %2450 = vmatpush1.msra.mxu0 0.0
        %2451 = vmatprep.subr.mxu0 0.0
        %2452 = vmatpush1.msra.mxu0 0.0
        %2453 = vmatprep.subr.mxu0 0.0
        %2454 = vmatpush1.msra.mxu0 0.0
        %2455 = vmatprep.subr.mxu0 0.0
        %2456 = vmatpush1.msra.mxu0 0.0
        %2457 = vmatprep.subr.mxu0 0.0
        %2458 = vmatpush1.msra.mxu0 0.0
        %2459 = vmatprep.mubr.f32.mxu0 0.0
        %2460 = vmatmul.mubr.f32.gmra.mrb[0].mxu0 %v2256
        %v2461 = vpop.f32.mrb[0].mxu0
        %v2462 = vadd.f32 0.0, %v2461
        %v2463 = vpop.f32.mrb[0].mxu0
        %2464 = vdwg.mxu0
        %v2465 = vld [vmem:[%s13] sm:$0xff]
        %v2466 = vld [vmem:[%s13 + $0x8] sm:$0xff]
        %v2467 = vld [vmem:[%s13 + $0x10] sm:$0xff]
        %v2468 = vld [vmem:[%s13 + $0x18] sm:$0xff]
        %v2469 = vld [vmem:[%s13 + $0x20] sm:$0xff]
        %v2470 = vld [vmem:[%s13 + $0x28] sm:$0xff]
        %v2471 = vld [vmem:[%s13 + $0x30] sm:$0xff]
        %v2472 = vld [vmem:[%s13 + $0x38] sm:$0xff]
        %v2473 = vlaneseq
        %v2474 = vshrl.u32 %v2473, 7
        %v2475 = vsub.s32 0, %v2474
        %v2476 = vrot.slane %v2462, %v2475
        %v2478 = vsel %vm2305, %v2376, 0
        %2480 = vmatprep.subr.mxu0 0.0
        %2481 = vmatpush1.msra.mxu0 %v2465
        %2482 = vmatprep.subr.mxu0 0.0
        %2483 = vmatpush1.msra.mxu0 %v2466
        %2484 = vmatprep.subr.mxu0 0.0
        %2485 = vmatpush1.msra.mxu0 %v2467
        %2486 = vmatprep.subr.mxu0 0.0
        %2487 = vmatpush1.msra.mxu0 %v2468
        %2488 = vmatprep.subr.mxu0 0.0
        %2489 = vmatpush1.msra.mxu0 %v2469
        %2490 = vmatprep.subr.mxu0 0.0
        %2491 = vmatpush1.msra.mxu0 %v2470
        %2492 = vmatprep.subr.mxu0 0.0
        %2493 = vmatpush1.msra.mxu0 %v2471
        %2494 = vmatprep.subr.mxu0 0.0
        %2495 = vmatpush1.msra.mxu0 %v2472
        %2496 = vmatprep.subr.mxu0 0.0
        %2497 = vmatpush1.msra.mxu0 0.0
        %2498 = vmatprep.subr.mxu0 0.0
        %2499 = vmatpush1.msra.mxu0 0.0
        %2500 = vmatprep.subr.mxu0 0.0
        %2501 = vmatpush1.msra.mxu0 0.0
        %2502 = vmatprep.subr.mxu0 0.0
        %2503 = vmatpush1.msra.mxu0 0.0
        %2504 = vmatprep.subr.mxu0 0.0
        %2505 = vmatpush1.msra.mxu0 0.0
        %2506 = vmatprep.subr.mxu0 0.0
        %2507 = vmatpush1.msra.mxu0 0.0
        %2508 = vmatprep.subr.mxu0 0.0
        %2509 = vmatpush1.msra.mxu0 0.0
        %2510 = vmatprep.subr.mxu0 0.0
        %2511 = vmatpush1.msra.mxu0 0.0
        %2512 = vmatprep.subr.mxu0 0.0
        %2513 = vmatpush1.msra.mxu0 0.0
        %2514 = vmatprep.subr.mxu0 0.0
        %2515 = vmatpush1.msra.mxu0 0.0
        %2516 = vmatprep.subr.mxu0 0.0
        %2517 = vmatpush1.msra.mxu0 0.0
        %2518 = vmatprep.subr.mxu0 0.0
        %2519 = vmatpush1.msra.mxu0 0.0
        %2520 = vmatprep.subr.mxu0 0.0
        %2521 = vmatpush1.msra.mxu0 0.0
        %2522 = vmatprep.subr.mxu0 0.0
        %2523 = vmatpush1.msra.mxu0 0.0
        %2524 = vmatprep.subr.mxu0 0.0
        %2525 = vmatpush1.msra.mxu0 0.0
        %2526 = vmatprep.subr.mxu0 0.0
        %2527 = vmatpush1.msra.mxu0 0.0
        %2528 = vmatprep.subr.mxu0 0.0
        %2529 = vmatpush1.msra.mxu0 0.0
        %2530 = vmatprep.subr.mxu0 0.0
        %2531 = vmatpush1.msra.mxu0 0.0
        %2532 = vmatprep.subr.mxu0 0.0
        %2533 = vmatpush1.msra.mxu0 0.0
        %2534 = vmatprep.subr.mxu0 0.0
        %2535 = vmatpush1.msra.mxu0 0.0
        %2536 = vmatprep.subr.mxu0 0.0
        %2537 = vmatpush1.msra.mxu0 0.0
        %2538 = vmatprep.subr.mxu0 0.0
        %2539 = vmatpush1.msra.mxu0 0.0
        %2540 = vmatprep.subr.mxu0 0.0
        %2541 = vmatpush1.msra.mxu0 0.0
        %2542 = vmatprep.subr.mxu0 0.0
        %2543 = vmatpush1.msra.mxu0 0.0
        %2544 = vmatprep.mubr.f32.mxu0 0.0
        %2545 = vmatmul.mubr.f32.gmra.mrb[0].mxu0 %v2478
        %v2546 = vpop.f32.mrb[0].mxu0
        %v2547 = vadd.f32 %v2476, %v2546
        %v2548 = vpop.f32.mrb[0].mxu0
        %2549 = vdwg.mxu0
        %v2550 = vld [vmem:[%s15] sm:$0x1]
        %v2552 = vlaneseq
        %v2553 = vshrl.u32 %v2552, 7
        %v2554 = vsub.s32 0, %v2553
        %v2555 = vrot.slane %v2550, %v2554
        %v2557 = vadd.f32 %v2547, %v2555
        %v2558 = vmax.f32 %v2557, 0.0
        %v2559 = vld [vmem:[%s16] sm:$0xff]
        %v2560 = vld [vmem:[%s16 + $0x8] sm:$0xff]
        %v2561 = vld [vmem:[%s16 + $0x10] sm:$0xff]
        %v2562 = vld [vmem:[%s16 + $0x18] sm:$0xff]
        %v2563 = vld [vmem:[%s16 + $0x20] sm:$0xff]
        %v2564 = vld [vmem:[%s16 + $0x28] sm:$0xff]
        %v2565 = vld [vmem:[%s16 + $0x30] sm:$0xff]
        %v2566 = vld [vmem:[%s16 + $0x38] sm:$0xff]
        %v2567 = vld [vmem:[%s16 + $0x40] sm:$0xff]
        %v2568 = vld [vmem:[%s16 + $0x48] sm:$0xff]
        %v2569 = vld [vmem:[%s16 + $0x50] sm:$0xff]
        %v2570 = vld [vmem:[%s16 + $0x58] sm:$0xff]
        %v2571 = vld [vmem:[%s16 + $0x60] sm:$0xff]
        %v2572 = vld [vmem:[%s16 + $0x68] sm:$0xff]
        %v2573 = vld [vmem:[%s16 + $0x70] sm:$0xff]
        %v2574 = vld [vmem:[%s16 + $0x78] sm:$0xff]
        %v2575 = vld [vmem:[%s17] sm:$0x1]
        %v2577 = vlaneseq
        %v2578 = vshrl.u32 %v2577, 7
        %v2579 = vsub.s32 0, %v2578
        %v2580 = vrot.slane %v2575, %v2579
        %2582 = vmatprep.subr.mxu0 0.0
        %2583 = vmatpush1.msra.mxu0 %v2559
        %2584 = vmatprep.subr.mxu0 0.0
        %2585 = vmatpush1.msra.mxu0 %v2560
        %2586 = vmatprep.subr.mxu0 0.0
        %2587 = vmatpush1.msra.mxu0 %v2561
        %2588 = vmatprep.subr.mxu0 0.0
        %2589 = vmatpush1.msra.mxu0 %v2562
        %2590 = vmatprep.subr.mxu0 0.0
        %2591 = vmatpush1.msra.mxu0 %v2563
        %2592 = vmatprep.subr.mxu0 0.0
        %2593 = vmatpush1.msra.mxu0 %v2564
        %2594 = vmatprep.subr.mxu0 0.0
        %2595 = vmatpush1.msra.mxu0 %v2565
        %2596 = vmatprep.subr.mxu0 0.0
        %2597 = vmatpush1.msra.mxu0 %v2566
        %2598 = vmatprep.subr.mxu0 0.0
        %2599 = vmatpush1.msra.mxu0 %v2567
        %2600 = vmatprep.subr.mxu0 0.0
        %2601 = vmatpush1.msra.mxu0 %v2568
        %2602 = vmatprep.subr.mxu0 0.0
        %2603 = vmatpush1.msra.mxu0 %v2569
        %2604 = vmatprep.subr.mxu0 0.0
        %2605 = vmatpush1.msra.mxu0 %v2570
        %2606 = vmatprep.subr.mxu0 0.0
        %2607 = vmatpush1.msra.mxu0 %v2571
        %2608 = vmatprep.subr.mxu0 0.0
        %2609 = vmatpush1.msra.mxu0 %v2572
        %2610 = vmatprep.subr.mxu0 0.0
        %2611 = vmatpush1.msra.mxu0 %v2573
        %2612 = vmatprep.subr.mxu0 0.0
        %2613 = vmatpush1.msra.mxu0 %v2574
        %2614 = vmatprep.subr.mxu0 0.0
        %2615 = vmatpush1.msra.mxu0 0.0
        %2616 = vmatprep.subr.mxu0 0.0
        %2617 = vmatpush1.msra.mxu0 0.0
        %2618 = vmatprep.subr.mxu0 0.0
        %2619 = vmatpush1.msra.mxu0 0.0
        %2620 = vmatprep.subr.mxu0 0.0
        %2621 = vmatpush1.msra.mxu0 0.0
        %2622 = vmatprep.subr.mxu0 0.0
        %2623 = vmatpush1.msra.mxu0 0.0
        %2624 = vmatprep.subr.mxu0 0.0
        %2625 = vmatpush1.msra.mxu0 0.0
        %2626 = vmatprep.subr.mxu0 0.0
        %2627 = vmatpush1.msra.mxu0 0.0
        %2628 = vmatprep.subr.mxu0 0.0
        %2629 = vmatpush1.msra.mxu0 0.0
        %2630 = vmatprep.subr.mxu0 0.0
        %2631 = vmatpush1.msra.mxu0 0.0
        %2632 = vmatprep.subr.mxu0 0.0
        %2633 = vmatpush1.msra.mxu0 0.0
        %2634 = vmatprep.subr.mxu0 0.0
        %2635 = vmatpush1.msra.mxu0 0.0
        %2636 = vmatprep.subr.mxu0 0.0
        %2637 = vmatpush1.msra.mxu0 0.0
        %2638 = vmatprep.subr.mxu0 0.0
        %2639 = vmatpush1.msra.mxu0 0.0
        %2640 = vmatprep.subr.mxu0 0.0
        %2641 = vmatpush1.msra.mxu0 0.0
        %2642 = vmatprep.subr.mxu0 0.0
        %2643 = vmatpush1.msra.mxu0 0.0
        %2644 = vmatprep.subr.mxu0 0.0
        %2645 = vmatpush1.msra.mxu0 0.0
        %2646 = vmatprep.mubr.f32.mxu0 0.0
        %2647 = vmatmul.mubr.f32.gmra.mrb[0].mxu0 %v2558
        %v2648 = vpop.f32.mrb[0].mxu0
        %v2649 = vadd.f32 %v2580, %v2648
        %v2650 = vpop.f32.mrb[0].mxu0
        %2651 = vdwg.mxu0
        %2652 = vst.msk [vmem:[%s646] sm:$0xff] %vm952, %v2649
        %s2653 = sand.u32 %s431, 1
        %s2654 = scalar_lea.sflag [#allocation4], %s2653
        %s2655 = sand.u32 %s431, 1
        %s2656 = smul.addr %s2655, 8
        %s2657 = scalar_lea.vmem [#allocation11], %s2656
        // Predicated region
        $region113: #{tpu_custom_call.1} parent=91 // pred_check
          %p2658 = pneg %p441
        $region114: #{tpu_custom_call.1} parent=91 // pred_check_branch
          %2660 = sbr.rel (%p2658) target = $region116
        $region115: #{tpu_custom_call.1} parent=91 // pred_region
          %s2662 = ssub.s32 128, 128
          %2663 = vsyncadd %s2654, %s2662
          %s2664 = smul.addr %s35, 128
          %s2665 = scalar_lea.hbm %s18, %s2664
          %s2667 = sshll.u32 %s2657, 4
          %s2668 = int_to_ptr.vmem [resolvable:$true] %s2667
          %2670 = dma.vmem_to_hbm [thread:$0]  %s2668, 128, %s2665, %s2654
        $region116: #{tpu_custom_call.1} parent=91 // pred_fallthru
          _
      $region92: #{tpu_custom_call.1} parent=5 // pred_fallthru
        _
      %p2671 = scmp.le.s32.totalorder 2, %s30
      // Predicated region
      $region117: #{tpu_custom_call.1} parent=5 // pred_check
        %p2672 = pneg %p2671
      $region118: #{tpu_custom_call.1} parent=5 // pred_check_branch
        %2674 = sbr.rel (%p2672) target = $region120
      $region119: #{tpu_custom_call.1} parent=5 // pred_region
        %s2675 = ssub.s32 %s30, 2
        // Predicated region
        $region121: #{tpu_custom_call.1} parent=119 // pred_check
          %p2676 = pneg %p447
        $region122: #{tpu_custom_call.1} parent=119 // pred_check_branch
          %2678 = sbr.rel (%p2676) target = $region124
        $region123: #{tpu_custom_call.1} parent=119 // pred_region
          %s2679 = sand.u32 %s432, 1
          %s2680 = scalar_lea.sflag [#allocation4], %s2679
          %s2681 = sand.u32 %s432, 1
          %s2682 = smul.addr %s2681, 8
          %s2683 = scalar_lea.vmem [#allocation11], %s2682
          %2684 = dma.done %s2680, 128
        $region124: #{tpu_custom_call.1} parent=119 // pred_fallthru
          _
      $region120: #{tpu_custom_call.1} parent=5 // pred_fallthru
        _
    $region6: #{tpu_custom_call.1} parent=1 // loop_footer
      %s34 = sadd.s32 1, %s30
    $region7: #{tpu_custom_call.1} parent=1 // loop_footer_branch
      %29 = sbr.rel target = $region3
    $region8: #{tpu_custom_call.1} parent=1 // loop_exit
      _
    %2685 = vsyncpa [#allocation3], 1
    %s2686 = scalar_lea.sflag [#allocation3], 1
    %2687 = vsyncpa %s2686, 1
    %2688 = vsyncpa [#allocation6], 1
    %2689 = vsyncpa [#allocation9], 1
    %2690 = vsyncpa [#allocation4], 1
    %s2691 = scalar_lea.sflag [#allocation4], 1
    %2692 = vsyncpa %s2691, 1

</llo_original>
